<compile_context>
chip_gen: v5e
topology: v5e:2x2
jax: 0.10.0
libtpu: 0.0.40
codegen_flags: <defaults>
</compile_context>

<pallas_src>
import functools

import jax
import jax.numpy as jnp
from jax import lax
from jax.experimental import pallas as pl
from jax.experimental.pallas import tpu as pltpu

# Sized against the default scoped VMEM limits (v5e 16 MiB, v6e/v7x 32 MiB);
# raise when tiles grow, staying under v7x's 64 MiB physical VMEM per core.
_VMEM_LIMIT_BYTES = 32 * 1024 * 1024
_VMEM = pl.BlockSpec(memory_space=pltpu.MemorySpace.VMEM)


# ---------------------------------------------------------------------------
# Kernels
# ---------------------------------------------------------------------------

def lstm_kernel(*refs, T, B_pad, x_preprojected):
    """2-layer LSTM over a time-major, batch-padded input.

    Inputs (VMEM refs), when x_preprojected=False:
      x     : (T*B_pad, V_pad)     dense inputs, rows t*B_pad..+B_pad-1 = step t
      wih0  : (V_pad, 4*H_pad)     layer-0 input weights (gate blocks i|f|g|o)
      b0    : (1, 4*H_pad) f32     layer-0 bias (b_ih + b_hh)
      whh0  : (H_pad, 4*H_pad)     layer-0 recurrent weights (UN-split)
      wih1, b1, whh1               layer-1 equivalents
      hc0   : (4, B_pad, H_pad)    initial [h_l0, h_l1, c_l0, c_l1], f32
    When x_preprojected=True the first ref is already xg0 = x @ wih0 + b0
    with shape (T*B_pad, 4*H_pad) and wih0/b0 are not passed.

    Outputs:
      hseq  : (T*B_pad, H_pad)     layer-1 hidden sequence (head input)
      state : (4, B_pad, H_pad)    final [h_l0, h_l1, c_l0, c_l1]
    Scratch:
      xg    : (T*B_pad, 4*H_pad) f32  batched gate pre-activations
      h0seq : (T*B_pad, H_pad)   f32  layer-0 hidden sequence
    """
    if x_preprojected:
        (x_ref, whh0_ref, wih1_ref, b1_ref, whh1_ref, hc0_ref,
         hseq_ref, state_ref, xg_ref, h0seq_ref) = refs
        wih0_ref = b0_ref = None
    else:
        (x_ref, wih0_ref, b0_ref, whh0_ref, wih1_ref, b1_ref, whh1_ref, hc0_ref,
         hseq_ref, state_ref, xg_ref, h0seq_ref) = refs

    Hp = whh0_ref.shape[0]

    def recur(layer, whh_ref, out_seq_ref):
        # Serial critical path: ONE fused (B_pad,H)@(H,4H) matmul per step;
        # gates are lane slices of the (B_pad,4H) slab; each step's h goes
        # straight into the time-major VMEM slab (no per-step value list).
        whh = whh_ref[...]                                    # (Hp, 4*Hp)

        def step(t, carry):
            h, c = carry
            r0 = pl.multiple_of(t * B_pad, B_pad)             # sublane-aligned
            g = xg_ref[pl.ds(r0, B_pad), :] + jnp.dot(
                h.astype(whh.dtype), whh, preferred_element_type=jnp.float32)
            sig = jax.nn.sigmoid(g)                           # full-slab EUP
            tah = jnp.tanh(g)
            c = sig[:, Hp:2 * Hp] * c + sig[:, :Hp] * tah[:, 2 * Hp:3 * Hp]
            h = sig[:, 3 * Hp:] * jnp.tanh(c)
            out_seq_ref[pl.ds(r0, B_pad), :] = h
            return h, c

        h_init = hc0_ref[layer].astype(jnp.float32)
        c_init = hc0_ref[layer + 2].astype(jnp.float32)
        return lax.fori_loop(0, T, step, (h_init, c_init), unroll=True)

    # ---- layer 0: batched input projection (one lane-dense matmul) ---------
    if x_preprojected:
        xg_ref[...] = x_ref[...]
    else:
        xg_ref[...] = (jnp.dot(x_ref[...], wih0_ref[...],
                               preferred_element_type=jnp.float32)
                       + b0_ref[...])
    h_l0, c_l0 = recur(0, whh0_ref, h0seq_ref)

    # ---- layer 1: batched input projection from the layer-0 sequence -------
    xg_ref[...] = (jnp.dot(h0seq_ref[...].astype(wih1_ref.dtype), wih1_ref[...],
                           preferred_element_type=jnp.float32)
                   + b1_ref[...])
    h_l1, c_l1 = recur(1, whh1_ref, hseq_ref)

    # One packed, aligned store of the final states.
    state_ref[...] = jnp.stack([h_l0, h_l1, c_l0, c_l1], axis=0)


def head_kernel(h_ref, w_ref, b_ref, o_ref):
    """Output-head tile: (tm, H_pad) @ (H_pad, tn) + bias, lane-dense store."""
    o_ref[...] = (jnp.dot(h_ref[...].astype(w_ref.dtype), w_ref[...],
                          preferred_element_type=jnp.float32)
                  + b_ref[...]).astype(o_ref.dtype)


# ---------------------------------------------------------------------------
# Wrapper (padding, pallas_call plumbing, unpadding)
# ---------------------------------------------------------------------------

def _round_up(n, m):
    return ((n + m - 1) // m) * m


def _pad_axis(a, target, axis):
    pad = target - a.shape[axis]
    if pad == 0:
        return a
    widths = [(0, 0)] * a.ndim
    widths[axis] = (0, pad)
    return jnp.pad(a, widths)


def _pad_gate_cols(w, H, Hp):
    """(in, 4H) -> (in, 4*Hp): zero-pad each gate block (i,f,g,o) to Hp lanes."""
    if Hp == H:
        return w
    lead = w.shape[0]
    return _pad_axis(w.reshape(lead, 4, H), Hp, 2).reshape(lead, 4 * Hp)


def _prepare_params(params, B, V, param_dtype):
    H = params["whh0"].shape[0]
    Bp = _round_up(max(B, 8), 8)       # sublane granularity
    Hp = _round_up(H, 128)             # lane granularity
    Vp = _round_up(V, 128)
    wd = param_dtype
    pp = {
        "wih0": _pad_axis(_pad_gate_cols(params["wih0"], H, Hp), Vp, 0).astype(wd),
        "whh0": _pad_axis(_pad_gate_cols(params["whh0"], H, Hp), Hp, 0).astype(wd),
        "b0":   _pad_gate_cols(params["b0"], H, Hp).astype(jnp.float32),
        "wih1": _pad_axis(_pad_gate_cols(params["wih1"], H, Hp), Hp, 0).astype(wd),
        "whh1": _pad_axis(_pad_gate_cols(params["whh1"], H, Hp), Hp, 0).astype(wd),
        "b1":   _pad_gate_cols(params["b1"], H, Hp).astype(jnp.float32),
        "wout": _pad_axis(_pad_axis(params["wout"], Hp, 0), Vp, 1).astype(wd),
        "bout": _pad_axis(params["bout"], Vp, 1).astype(jnp.float32),
    }
    return pp, (H, Bp, Hp, Vp)


def _pack_init_state(h0, c0, B, H, Bp, Hp):
    if h0 is None:
        return jnp.zeros((4, Bp, Hp), jnp.float32)
    hc = jnp.concatenate([jnp.asarray(h0, jnp.float32),
                          jnp.asarray(c0, jnp.float32)], axis=0)   # (4, B, H)
    return _pad_axis(_pad_axis(hc, Bp, 1), Hp, 2)


def _lstm_call(x0, pp, dims, T, hc0, x_preprojected):
    H, Bp, Hp, Vp = dims
    M = T * Bp
    kernel = functools.partial(lstm_kernel, T=T, B_pad=Bp,
                               x_preprojected=x_preprojected)
    if x_preprojected:
        inputs = (x0, pp["whh0"], pp["wih1"], pp["b1"], pp["whh1"], hc0)
    else:
        inputs = (x0, pp["wih0"], pp["b0"], pp["whh0"],
                  pp["wih1"], pp["b1"], pp["whh1"], hc0)
    # TODO(synk): for very long T, stream xg / hseq through HBM in time blocks
    # instead of keeping the full (T*B_pad, 4*H_pad) slab resident in VMEM.
    return pl.pallas_call(
        kernel,
        out_shape=(jax.ShapeDtypeStruct((M, Hp), jnp.float32),
                   jax.ShapeDtypeStruct((4, Bp, Hp), jnp.float32)),
        in_specs=[_VMEM] * len(inputs),
        out_specs=(_VMEM, _VMEM),
        scratch_shapes=[pltpu.VMEM((M, 4 * Hp), jnp.float32),
                        pltpu.VMEM((M, Hp), jnp.float32)],
        compiler_params=pltpu.CompilerParams(
            vmem_limit_bytes=_VMEM_LIMIT_BYTES),
    )(*inputs)


def _head_call(h1seq, pp, dims):
    H, Bp, Hp, Vp = dims
    M = h1seq.shape[0]
    tm = min(M, 256)                   # row tile (multiple of 8 / full)
    tn = min(Vp, 512)                  # vocab tile (multiple of 128)
    return pl.pallas_call(
        head_kernel,
        out_shape=jax.ShapeDtypeStruct((M, Vp), jnp.float32),
        grid=(pl.cdiv(M, tm), pl.cdiv(Vp, tn)),
        in_specs=[pl.BlockSpec((tm, Hp), lambda i, j: (i, 0)),
                  pl.BlockSpec((Hp, tn), lambda i, j: (0, j)),
                  pl.BlockSpec((1, tn), lambda i, j: (0, j))],
        out_specs=pl.BlockSpec((tm, tn), lambda i, j: (i, j)),
        compiler_params=pltpu.CompilerParams(
            dimension_semantics=("parallel", "parallel"),
            vmem_limit_bytes=_VMEM_LIMIT_BYTES),
    )(h1seq, pp["wout"], pp["bout"])


def _unpack_outputs(logits, state, B, T, V, H, Bp, Vp):
    out = logits.reshape(T, Bp, Vp)[:, :B, :V].transpose(1, 0, 2)   # (B, T, V)
    h = state[0:2, :B, :H]
    c = state[2:4, :B, :H]
    return out, (h, c)


def text_generation_forward(x, params, h0=None, c0=None,
                            param_dtype=jnp.float32):
    """Dense-input forward, same semantics as the PyTorch module:
    x (B, T, V) -> (logits (B, T, V), (h (2, B, H), c (2, B, H)))."""
    B, T, V = x.shape
    pp, dims = _prepare_params(params, B, V, param_dtype)
    H, Bp, Hp, Vp = dims
    # time-major, batch/vocab zero-padded: rows t*Bp .. t*Bp+B-1 hold step t
    x_tm = jnp.transpose(x, (1, 0, 2))
    x_tm = _pad_axis(_pad_axis(x_tm, Vp, 2), Bp, 1)
    x_flat = x_tm.reshape(T * Bp, Vp).astype(param_dtype)
    hc0 = _pack_init_state(h0, c0, B, H, Bp, Hp)
    # TODO(synk): at realistic V the dense (V, 4H) layer-0 weight is not
    # VMEM-resident; use text_generation_forward_from_ids (gather) instead.
    h1seq, state = _lstm_call(x_flat, pp, dims, T, hc0, x_preprojected=False)
    logits = _head_call(h1seq, pp, dims)
    return _unpack_outputs(logits, state, B, T, V, H, Bp, Vp)


def text_generation_forward_from_ids(ids, params, h0=None, c0=None,
                                     param_dtype=jnp.float32):
    """One-hot fast path: int32 token ids (B, T).  Replaces the one-hot @
    weight_ih_l0 matmul with an embedding-row gather (never materializes the
    (T*B, V) one-hot); the gather itself is wrapper-side jnp.take (XLA)."""
    B, T = ids.shape
    V = params["wout"].shape[1]
    pp, dims = _prepare_params(params, B, V, param_dtype)
    H, Bp, Hp, Vp = dims
    emb = jnp.take(pp["wih0"], ids, axis=0)                  # (B, T, 4*Hp)
    emb = jnp.transpose(emb, (1, 0, 2))                      # (T, B, 4*Hp)
    emb = _pad_axis(emb, Bp, 1)
    xg0 = (emb.astype(jnp.float32) + pp["b0"]).reshape(T * Bp, 4 * Hp)
    hc0 = _pack_init_state(h0, c0, B, H, Bp, Hp)
    h1seq, state = _lstm_call(xg0, pp, dims, T, hc0, x_preprojected=True)
    logits = _head_call(h1seq, pp, dims)
    return _unpack_outputs(logits, state, B, T, V, H, Bp, Vp)


# ---------------------------------------------------------------------------
# Parameters + pure-JAX reference
# ---------------------------------------------------------------------------

def make_params(key, vocab, hidden):
    """Deterministic synthetic parameters, PyTorch-style uniform(-1/sqrt(H), 1/sqrt(H)).
    Weights are stored pre-transposed so the kernel does x @ W (right-multiply)."""
    ks = jax.random.split(key, 10)
    s = 1.0 / jnp.sqrt(hidden)
    u = lambda k, shape: jax.random.uniform(k, shape, jnp.float32, -s, s)
    return {
        # layer 0: input V -> hidden H
        "wih0": u(ks[0], (vocab, 4 * hidden)),     # = weight_ih_l0.T
        "whh0": u(ks[1], (hidden, 4 * hidden)),    # = weight_hh_l0.T
        "b0":   u(ks[2], (1, 4 * hidden)) + u(ks[3], (1, 4 * hidden)),  # b_ih+b_hh
        # layer 1: hidden H -> hidden H
        "wih1": u(ks[4], (hidden, 4 * hidden)),
        "whh1": u(ks[5], (hidden, 4 * hidden)),
        "b1":   u(ks[6], (1, 4 * hidden)) + u(ks[7], (1, 4 * hidden)),
        # output Linear: H -> V
        "wout": u(ks[8], (hidden, vocab)),         # = output_layer.weight.T
        "bout": u(ks[9], (1, vocab)),
    }


def _reference_forward(x_btv, params):
    """Pure-JAX reference (same math) for the correctness check."""
    B, T, V = x_btv.shape
    H = params["whh0"].shape[0]

    def cell(x_t, h, c, wih, whh, b):
        g = x_t @ wih + h @ whh + b
        i = jax.nn.sigmoid(g[:, :H])
        f = jax.nn.sigmoid(g[:, H:2 * H])
        gg = jnp.tanh(g[:, 2 * H:3 * H])
        o = jax.nn.sigmoid(g[:, 3 * H:])
        c = f * c + i * gg
        return o * jnp.tanh(c), c

    h0 = c0 = h1 = c1 = jnp.zeros((B, H), jnp.float32)
    outs = []
    for t in range(T):
        h0, c0 = cell(x_btv[:, t, :], h0, c0, params["wih0"], params["whh0"], params["b0"])
        h1, c1 = cell(h0, h1, c1, params["wih1"], params["whh1"], params["b1"])
        outs.append(h1 @ params["wout"] + params["bout"])
    out = jnp.stack(outs, axis=1)
    return out, (jnp.stack([h0, h1]), jnp.stack([c0, c1]))


if __name__ == "__main__":
    # Small shapes consistent with the module: batch=2, seq=8, vocab=32, hidden=32.
    B, T, V, H = 2, 8, 32, 32

    key = jax.random.PRNGKey(0)
    k_x, k_p = jax.random.split(key)
    params = make_params(k_p, V, H)

    # One-hot "character" inputs, as the LSTM text model receives them.
    ids = jax.random.randint(k_x, (B, T), 0, V)
    x = jax.nn.one_hot(ids, V, dtype=jnp.float32)            # (B, T, V)

    ref_out, (ref_h, ref_c) = _reference_forward(x, params)

    # 1) dense-x path (module-faithful forward), f32 weights
    out, (h, c) = text_generation_forward(x, params)
    jax.block_until_ready((out, h, c))
    assert out.shape == (B, T, V) and h.shape == (2, B, H) and c.shape == (2, B, H)
    assert jnp.allclose(out, ref_out, atol=1e-4)
    assert jnp.allclose(h, ref_h, atol=1e-4)
    assert jnp.allclose(c, ref_c, atol=1e-4)

    # 2) token-id fast path (embedding gather, no one-hot materialized)
    out_i, (h_i, c_i) = text_generation_forward_from_ids(ids, params)
    jax.block_until_ready((out_i, h_i, c_i))
    assert jnp.allclose(out_i, ref_out, atol=1e-4)
    assert jnp.allclose(h_i, ref_h, atol=1e-4)
    assert jnp.allclose(c_i, ref_c, atol=1e-4)

    # 3) bf16-weight variant (realistic-size config), explicit zero init states
    z = jnp.zeros((2, B, H), jnp.float32)
    out_b, (h_b, c_b) = text_generation_forward_from_ids(
        ids, params, h0=z, c0=z, param_dtype=jnp.bfloat16)
    jax.block_until_ready((out_b, h_b, c_b))
    assert jnp.allclose(out_b, ref_out, atol=1e-1)
    assert jnp.allclose(h_b, ref_h, atol=1e-1)
    assert jnp.allclose(c_b, ref_c, atol=1e-1)

    print("KERNEL_OK")
</pallas_src>

<mosaic_0001>
module attributes {stable_mosaic.version = 11 : i64} {
  func.func @lstm_kernel(%arg0: memref<64x128xf32, #tpu.memory_space<vmem>>, %arg1: memref<128x512xf32, #tpu.memory_space<vmem>>, %arg2: memref<1x512xf32, #tpu.memory_space<vmem>>, %arg3: memref<128x512xf32, #tpu.memory_space<vmem>>, %arg4: memref<128x512xf32, #tpu.memory_space<vmem>>, %arg5: memref<1x512xf32, #tpu.memory_space<vmem>>, %arg6: memref<128x512xf32, #tpu.memory_space<vmem>>, %arg7: memref<4x8x128xf32, #tpu.memory_space<vmem>>, %arg8: memref<64x128xf32, #tpu.memory_space<vmem>>, %arg9: memref<4x8x128xf32, #tpu.memory_space<vmem>>, %arg10: memref<64x512xf32, #tpu.memory_space<vmem>>, %arg11: memref<64x128xf32, #tpu.memory_space<vmem>>) attributes {dimension_semantics = [], scalar_prefetch = 0 : i64, scratch_operands = 2 : i64, tpu.core_type = #tpu.core_type<tc>} {
    %c0 = arith.constant 0 : index
    %c0_0 = arith.constant 0 : index
    %0 = vector.load %arg0[%c0, %c0_0] : memref<64x128xf32, #tpu.memory_space<vmem>>, vector<64x128xf32>
    %c0_1 = arith.constant 0 : index
    %c0_2 = arith.constant 0 : index
    %1 = vector.load %arg1[%c0_1, %c0_2] : memref<128x512xf32, #tpu.memory_space<vmem>>, vector<128x512xf32>
    %cst = arith.constant dense<0.000000e+00> : vector<64x512xf32>
    %2 = tpu.matmul %0, %1, %cst {dimension_numbers = #tpu.dot_dimension_numbers<[1], [0], [0], [1], [0, 0, 1, 1], [], []>} : vector<64x128xf32>, vector<128x512xf32>, vector<64x512xf32> -> vector<64x512xf32>
    %c0_3 = arith.constant 0 : index
    %c0_4 = arith.constant 0 : index
    %3 = vector.load %arg2[%c0_3, %c0_4] : memref<1x512xf32, #tpu.memory_space<vmem>>, vector<1x512xf32>
    %4 = vector.broadcast %3 : vector<1x512xf32> to vector<64x512xf32>
    %5 = arith.addf %2, %4 : vector<64x512xf32>
    %c0_5 = arith.constant 0 : index
    %c0_6 = arith.constant 0 : index
    %6 = vector.load %arg10[%c0_5, %c0_6] : memref<64x512xf32, #tpu.memory_space<vmem>>, vector<64x512xf32>
    tpu.vector_store %arg10[%c0_5, %c0_6], %5 {strides = array<i32>} : memref<64x512xf32, #tpu.memory_space<vmem>>, vector<64x512xf32>,
    %c0_7 = arith.constant 0 : index
    %c0_8 = arith.constant 0 : index
    %7 = vector.load %arg3[%c0_7, %c0_8] : memref<128x512xf32, #tpu.memory_space<vmem>>, vector<128x512xf32>
    %c0_9 = arith.constant 0 : index
    %c0_10 = arith.constant 0 : index
    %c0_11 = arith.constant 0 : index
    %8 = vector.load %arg7[%c0_9, %c0_10, %c0_11] : memref<4x8x128xf32, #tpu.memory_space<vmem>>, vector<1x8x128xf32>
    %9 = vector.shape_cast %8 : vector<1x8x128xf32> to vector<8x128xf32>
    %c2 = arith.constant 2 : index
    %c0_12 = arith.constant 0 : index
    %c0_13 = arith.constant 0 : index
    %10 = vector.load %arg7[%c2, %c0_12, %c0_13] : memref<4x8x128xf32, #tpu.memory_space<vmem>>, vector<1x8x128xf32>
    %11 = vector.shape_cast %10 : vector<1x8x128xf32> to vector<8x128xf32>
    %c0_i32 = arith.constant 0 : i32
    %c8_i32 = arith.constant 8 : i32
    %12 = arith.muli %c0_i32, %c8_i32 : i32
    %13 = tpu.assume_multiple %12, 8 : i32
    %14 = arith.index_cast %13 : i32 to index
    %c0_14 = arith.constant 0 : index
    %15 = vector.load %arg10[%14, %c0_14] : memref<64x512xf32, #tpu.memory_space<vmem>>, vector<8x512xf32>
    %cst_15 = arith.constant dense<0.000000e+00> : vector<8x512xf32>
    %16 = tpu.matmul %9, %7, %cst_15 {dimension_numbers = #tpu.dot_dimension_numbers<[1], [0], [0], [1], [0, 0, 1, 1], [], []>} : vector<8x128xf32>, vector<128x512xf32>, vector<8x512xf32> -> vector<8x512xf32>
    %17 = arith.addf %15, %16 : vector<8x512xf32>
    %18 = arith.negf %17 : vector<8x512xf32>
    %19 = math.exp %18 : vector<8x512xf32>
    %cst_16 = arith.constant 1.000000e+00 : f32
    %20 = vector.broadcast %cst_16 : f32 to vector<8x512xf32>
    %21 = arith.addf %20, %19 : vector<8x512xf32>
    %22 = arith.divf %20, %21 : vector<8x512xf32>
    %23 = math.tanh %17 : vector<8x512xf32>
    %24 = vector.extract_strided_slice %22 {offsets = [0, 128], sizes = [8, 128], strides = [1, 1]} : vector<8x512xf32> to vector<8x128xf32>
    %25 = arith.mulf %24, %11 : vector<8x128xf32>
    %26 = vector.extract_strided_slice %22 {offsets = [0, 0], sizes = [8, 128], strides = [1, 1]} : vector<8x512xf32> to vector<8x128xf32>
    %27 = vector.extract_strided_slice %23 {offsets = [0, 256], sizes = [8, 128], strides = [1, 1]} : vector<8x512xf32> to vector<8x128xf32>
    %28 = arith.mulf %26, %27 : vector<8x128xf32>
    %29 = arith.addf %25, %28 : vector<8x128xf32>
    %30 = vector.extract_strided_slice %22 {offsets = [0, 384], sizes = [8, 128], strides = [1, 1]} : vector<8x512xf32> to vector<8x128xf32>
    %31 = math.tanh %29 : vector<8x128xf32>
    %32 = arith.mulf %30, %31 : vector<8x128xf32>
    %33 = arith.index_cast %13 : i32 to index
    %c0_17 = arith.constant 0 : index
    %34 = vector.load %arg11[%33, %c0_17] : memref<64x128xf32, #tpu.memory_space<vmem>>, vector<8x128xf32>
    tpu.vector_store %arg11[%33, %c0_17], %32 {strides = array<i32>} : memref<64x128xf32, #tpu.memory_space<vmem>>, vector<8x128xf32>,
    %c1_i32 = arith.constant 1 : i32
    %c8_i32_18 = arith.constant 8 : i32
    %35 = arith.muli %c1_i32, %c8_i32_18 : i32
    %36 = tpu.assume_multiple %35, 8 : i32
    %37 = arith.index_cast %36 : i32 to index
    %c0_19 = arith.constant 0 : index
    %38 = vector.load %arg10[%37, %c0_19] : memref<64x512xf32, #tpu.memory_space<vmem>>, vector<8x512xf32>
    %cst_20 = arith.constant dense<0.000000e+00> : vector<8x512xf32>
    %39 = tpu.matmul %32, %7, %cst_20 {dimension_numbers = #tpu.dot_dimension_numbers<[1], [0], [0], [1], [0, 0, 1, 1], [], []>} : vector<8x128xf32>, vector<128x512xf32>, vector<8x512xf32> -> vector<8x512xf32>
    %40 = arith.addf %38, %39 : vector<8x512xf32>
    %41 = arith.negf %40 : vector<8x512xf32>
    %42 = math.exp %41 : vector<8x512xf32>
    %cst_21 = arith.constant 1.000000e+00 : f32
    %43 = vector.broadcast %cst_21 : f32 to vector<8x512xf32>
    %44 = arith.addf %43, %42 : vector<8x512xf32>
    %45 = arith.divf %43, %44 : vector<8x512xf32>
    %46 = math.tanh %40 : vector<8x512xf32>
    %47 = vector.extract_strided_slice %45 {offsets = [0, 128], sizes = [8, 128], strides = [1, 1]} : vector<8x512xf32> to vector<8x128xf32>
    %48 = arith.mulf %47, %29 : vector<8x128xf32>
    %49 = vector.extract_strided_slice %45 {offsets = [0, 0], sizes = [8, 128], strides = [1, 1]} : vector<8x512xf32> to vector<8x128xf32>
    %50 = vector.extract_strided_slice %46 {offsets = [0, 256], sizes = [8, 128], strides = [1, 1]} : vector<8x512xf32> to vector<8x128xf32>
    %51 = arith.mulf %49, %50 : vector<8x128xf32>
    %52 = arith.addf %48, %51 : vector<8x128xf32>
    %53 = vector.extract_strided_slice %45 {offsets = [0, 384], sizes = [8, 128], strides = [1, 1]} : vector<8x512xf32> to vector<8x128xf32>
    %54 = math.tanh %52 : vector<8x128xf32>
    %55 = arith.mulf %53, %54 : vector<8x128xf32>
    %56 = arith.index_cast %36 : i32 to index
    %c0_22 = arith.constant 0 : index
    %57 = vector.load %arg11[%56, %c0_22] : memref<64x128xf32, #tpu.memory_space<vmem>>, vector<8x128xf32>
    tpu.vector_store %arg11[%56, %c0_22], %55 {strides = array<i32>} : memref<64x128xf32, #tpu.memory_space<vmem>>, vector<8x128xf32>,
    %c2_i32 = arith.constant 2 : i32
    %c8_i32_23 = arith.constant 8 : i32
    %58 = arith.muli %c2_i32, %c8_i32_23 : i32
    %59 = tpu.assume_multiple %58, 8 : i32
    %60 = arith.index_cast %59 : i32 to index
    %c0_24 = arith.constant 0 : index
    %61 = vector.load %arg10[%60, %c0_24] : memref<64x512xf32, #tpu.memory_space<vmem>>, vector<8x512xf32>
    %cst_25 = arith.constant dense<0.000000e+00> : vector<8x512xf32>
    %62 = tpu.matmul %55, %7, %cst_25 {dimension_numbers = #tpu.dot_dimension_numbers<[1], [0], [0], [1], [0, 0, 1, 1], [], []>} : vector<8x128xf32>, vector<128x512xf32>, vector<8x512xf32> -> vector<8x512xf32>
    %63 = arith.addf %61, %62 : vector<8x512xf32>
    %64 = arith.negf %63 : vector<8x512xf32>
    %65 = math.exp %64 : vector<8x512xf32>
    %cst_26 = arith.constant 1.000000e+00 : f32
    %66 = vector.broadcast %cst_26 : f32 to vector<8x512xf32>
    %67 = arith.addf %66, %65 : vector<8x512xf32>
    %68 = arith.divf %66, %67 : vector<8x512xf32>
    %69 = math.tanh %63 : vector<8x512xf32>
    %70 = vector.extract_strided_slice %68 {offsets = [0, 128], sizes = [8, 128], strides = [1, 1]} : vector<8x512xf32> to vector<8x128xf32>
    %71 = arith.mulf %70, %52 : vector<8x128xf32>
    %72 = vector.extract_strided_slice %68 {offsets = [0, 0], sizes = [8, 128], strides = [1, 1]} : vector<8x512xf32> to vector<8x128xf32>
    %73 = vector.extract_strided_slice %69 {offsets = [0, 256], sizes = [8, 128], strides = [1, 1]} : vector<8x512xf32> to vector<8x128xf32>
    %74 = arith.mulf %72, %73 : vector<8x128xf32>
    %75 = arith.addf %71, %74 : vector<8x128xf32>
    %76 = vector.extract_strided_slice %68 {offsets = [0, 384], sizes = [8, 128], strides = [1, 1]} : vector<8x512xf32> to vector<8x128xf32>
    %77 = math.tanh %75 : vector<8x128xf32>
    %78 = arith.mulf %76, %77 : vector<8x128xf32>
    %79 = arith.index_cast %59 : i32 to index
    %c0_27 = arith.constant 0 : index
    %80 = vector.load %arg11[%79, %c0_27] : memref<64x128xf32, #tpu.memory_space<vmem>>, vector<8x128xf32>
    tpu.vector_store %arg11[%79, %c0_27], %78 {strides = array<i32>} : memref<64x128xf32, #tpu.memory_space<vmem>>, vector<8x128xf32>,
    %c3_i32 = arith.constant 3 : i32
    %c8_i32_28 = arith.constant 8 : i32
    %81 = arith.muli %c3_i32, %c8_i32_28 : i32
    %82 = tpu.assume_multiple %81, 8 : i32
    %83 = arith.index_cast %82 : i32 to index
    %c0_29 = arith.constant 0 : index
    %84 = vector.load %arg10[%83, %c0_29] : memref<64x512xf32, #tpu.memory_space<vmem>>, vector<8x512xf32>
    %cst_30 = arith.constant dense<0.000000e+00> : vector<8x512xf32>
    %85 = tpu.matmul %78, %7, %cst_30 {dimension_numbers = #tpu.dot_dimension_numbers<[1], [0], [0], [1], [0, 0, 1, 1], [], []>} : vector<8x128xf32>, vector<128x512xf32>, vector<8x512xf32> -> vector<8x512xf32>
    %86 = arith.addf %84, %85 : vector<8x512xf32>
    %87 = arith.negf %86 : vector<8x512xf32>
    %88 = math.exp %87 : vector<8x512xf32>
    %cst_31 = arith.constant 1.000000e+00 : f32
    %89 = vector.broadcast %cst_31 : f32 to vector<8x512xf32>
    %90 = arith.addf %89, %88 : vector<8x512xf32>
    %91 = arith.divf %89, %90 : vector<8x512xf32>
    %92 = math.tanh %86 : vector<8x512xf32>
    %93 = vector.extract_strided_slice %91 {offsets = [0, 128], sizes = [8, 128], strides = [1, 1]} : vector<8x512xf32> to vector<8x128xf32>
    %94 = arith.mulf %93, %75 : vector<8x128xf32>
    %95 = vector.extract_strided_slice %91 {offsets = [0, 0], sizes = [8, 128], strides = [1, 1]} : vector<8x512xf32> to vector<8x128xf32>
    %96 = vector.extract_strided_slice %92 {offsets = [0, 256], sizes = [8, 128], strides = [1, 1]} : vector<8x512xf32> to vector<8x128xf32>
    %97 = arith.mulf %95, %96 : vector<8x128xf32>
    %98 = arith.addf %94, %97 : vector<8x128xf32>
    %99 = vector.extract_strided_slice %91 {offsets = [0, 384], sizes = [8, 128], strides = [1, 1]} : vector<8x512xf32> to vector<8x128xf32>
    %100 = math.tanh %98 : vector<8x128xf32>
    %101 = arith.mulf %99, %100 : vector<8x128xf32>
    %102 = arith.index_cast %82 : i32 to index
    %c0_32 = arith.constant 0 : index
    %103 = vector.load %arg11[%102, %c0_32] : memref<64x128xf32, #tpu.memory_space<vmem>>, vector<8x128xf32>
    tpu.vector_store %arg11[%102, %c0_32], %101 {strides = array<i32>} : memref<64x128xf32, #tpu.memory_space<vmem>>, vector<8x128xf32>,
    %c4_i32 = arith.constant 4 : i32
    %c8_i32_33 = arith.constant 8 : i32
    %104 = arith.muli %c4_i32, %c8_i32_33 : i32
    %105 = tpu.assume_multiple %104, 8 : i32
    %106 = arith.index_cast %105 : i32 to index
    %c0_34 = arith.constant 0 : index
    %107 = vector.load %arg10[%106, %c0_34] : memref<64x512xf32, #tpu.memory_space<vmem>>, vector<8x512xf32>
    %cst_35 = arith.constant dense<0.000000e+00> : vector<8x512xf32>
    %108 = tpu.matmul %101, %7, %cst_35 {dimension_numbers = #tpu.dot_dimension_numbers<[1], [0], [0], [1], [0, 0, 1, 1], [], []>} : vector<8x128xf32>, vector<128x512xf32>, vector<8x512xf32> -> vector<8x512xf32>
    %109 = arith.addf %107, %108 : vector<8x512xf32>
    %110 = arith.negf %109 : vector<8x512xf32>
    %111 = math.exp %110 : vector<8x512xf32>
    %cst_36 = arith.constant 1.000000e+00 : f32
    %112 = vector.broadcast %cst_36 : f32 to vector<8x512xf32>
    %113 = arith.addf %112, %111 : vector<8x512xf32>
    %114 = arith.divf %112, %113 : vector<8x512xf32>
    %115 = math.tanh %109 : vector<8x512xf32>
    %116 = vector.extract_strided_slice %114 {offsets = [0, 128], sizes = [8, 128], strides = [1, 1]} : vector<8x512xf32> to vector<8x128xf32>
    %117 = arith.mulf %116, %98 : vector<8x128xf32>
    %118 = vector.extract_strided_slice %114 {offsets = [0, 0], sizes = [8, 128], strides = [1, 1]} : vector<8x512xf32> to vector<8x128xf32>
    %119 = vector.extract_strided_slice %115 {offsets = [0, 256], sizes = [8, 128], strides = [1, 1]} : vector<8x512xf32> to vector<8x128xf32>
    %120 = arith.mulf %118, %119 : vector<8x128xf32>
    %121 = arith.addf %117, %120 : vector<8x128xf32>
    %122 = vector.extract_strided_slice %114 {offsets = [0, 384], sizes = [8, 128], strides = [1, 1]} : vector<8x512xf32> to vector<8x128xf32>
    %123 = math.tanh %121 : vector<8x128xf32>
    %124 = arith.mulf %122, %123 : vector<8x128xf32>
    %125 = arith.index_cast %105 : i32 to index
    %c0_37 = arith.constant 0 : index
    %126 = vector.load %arg11[%125, %c0_37] : memref<64x128xf32, #tpu.memory_space<vmem>>, vector<8x128xf32>
    tpu.vector_store %arg11[%125, %c0_37], %124 {strides = array<i32>} : memref<64x128xf32, #tpu.memory_space<vmem>>, vector<8x128xf32>,
    %c5_i32 = arith.constant 5 : i32
    %c8_i32_38 = arith.constant 8 : i32
    %127 = arith.muli %c5_i32, %c8_i32_38 : i32
    %128 = tpu.assume_multiple %127, 8 : i32
    %129 = arith.index_cast %128 : i32 to index
    %c0_39 = arith.constant 0 : index
    %130 = vector.load %arg10[%129, %c0_39] : memref<64x512xf32, #tpu.memory_space<vmem>>, vector<8x512xf32>
    %cst_40 = arith.constant dense<0.000000e+00> : vector<8x512xf32>
    %131 = tpu.matmul %124, %7, %cst_40 {dimension_numbers = #tpu.dot_dimension_numbers<[1], [0], [0], [1], [0, 0, 1, 1], [], []>} : vector<8x128xf32>, vector<128x512xf32>, vector<8x512xf32> -> vector<8x512xf32>
    %132 = arith.addf %130, %131 : vector<8x512xf32>
    %133 = arith.negf %132 : vector<8x512xf32>
    %134 = math.exp %133 : vector<8x512xf32>
    %cst_41 = arith.constant 1.000000e+00 : f32
    %135 = vector.broadcast %cst_41 : f32 to vector<8x512xf32>
    %136 = arith.addf %135, %134 : vector<8x512xf32>
    %137 = arith.divf %135, %136 : vector<8x512xf32>
    %138 = math.tanh %132 : vector<8x512xf32>
    %139 = vector.extract_strided_slice %137 {offsets = [0, 128], sizes = [8, 128], strides = [1, 1]} : vector<8x512xf32> to vector<8x128xf32>
    %140 = arith.mulf %139, %121 : vector<8x128xf32>
    %141 = vector.extract_strided_slice %137 {offsets = [0, 0], sizes = [8, 128], strides = [1, 1]} : vector<8x512xf32> to vector<8x128xf32>
    %142 = vector.extract_strided_slice %138 {offsets = [0, 256], sizes = [8, 128], strides = [1, 1]} : vector<8x512xf32> to vector<8x128xf32>
    %143 = arith.mulf %141, %142 : vector<8x128xf32>
    %144 = arith.addf %140, %143 : vector<8x128xf32>
    %145 = vector.extract_strided_slice %137 {offsets = [0, 384], sizes = [8, 128], strides = [1, 1]} : vector<8x512xf32> to vector<8x128xf32>
    %146 = math.tanh %144 : vector<8x128xf32>
    %147 = arith.mulf %145, %146 : vector<8x128xf32>
    %148 = arith.index_cast %128 : i32 to index
    %c0_42 = arith.constant 0 : index
    %149 = vector.load %arg11[%148, %c0_42] : memref<64x128xf32, #tpu.memory_space<vmem>>, vector<8x128xf32>
    tpu.vector_store %arg11[%148, %c0_42], %147 {strides = array<i32>} : memref<64x128xf32, #tpu.memory_space<vmem>>, vector<8x128xf32>,
    %c6_i32 = arith.constant 6 : i32
    %c8_i32_43 = arith.constant 8 : i32
    %150 = arith.muli %c6_i32, %c8_i32_43 : i32
    %151 = tpu.assume_multiple %150, 8 : i32
    %152 = arith.index_cast %151 : i32 to index
    %c0_44 = arith.constant 0 : index
    %153 = vector.load %arg10[%152, %c0_44] : memref<64x512xf32, #tpu.memory_space<vmem>>, vector<8x512xf32>
    %cst_45 = arith.constant dense<0.000000e+00> : vector<8x512xf32>
    %154 = tpu.matmul %147, %7, %cst_45 {dimension_numbers = #tpu.dot_dimension_numbers<[1], [0], [0], [1], [0, 0, 1, 1], [], []>} : vector<8x128xf32>, vector<128x512xf32>, vector<8x512xf32> -> vector<8x512xf32>
    %155 = arith.addf %153, %154 : vector<8x512xf32>
    %156 = arith.negf %155 : vector<8x512xf32>
    %157 = math.exp %156 : vector<8x512xf32>
    %cst_46 = arith.constant 1.000000e+00 : f32
    %158 = vector.broadcast %cst_46 : f32 to vector<8x512xf32>
    %159 = arith.addf %158, %157 : vector<8x512xf32>
    %160 = arith.divf %158, %159 : vector<8x512xf32>
    %161 = math.tanh %155 : vector<8x512xf32>
    %162 = vector.extract_strided_slice %160 {offsets = [0, 128], sizes = [8, 128], strides = [1, 1]} : vector<8x512xf32> to vector<8x128xf32>
    %163 = arith.mulf %162, %144 : vector<8x128xf32>
    %164 = vector.extract_strided_slice %160 {offsets = [0, 0], sizes = [8, 128], strides = [1, 1]} : vector<8x512xf32> to vector<8x128xf32>
    %165 = vector.extract_strided_slice %161 {offsets = [0, 256], sizes = [8, 128], strides = [1, 1]} : vector<8x512xf32> to vector<8x128xf32>
    %166 = arith.mulf %164, %165 : vector<8x128xf32>
    %167 = arith.addf %163, %166 : vector<8x128xf32>
    %168 = vector.extract_strided_slice %160 {offsets = [0, 384], sizes = [8, 128], strides = [1, 1]} : vector<8x512xf32> to vector<8x128xf32>
    %169 = math.tanh %167 : vector<8x128xf32>
    %170 = arith.mulf %168, %169 : vector<8x128xf32>
    %171 = arith.index_cast %151 : i32 to index
    %c0_47 = arith.constant 0 : index
    %172 = vector.load %arg11[%171, %c0_47] : memref<64x128xf32, #tpu.memory_space<vmem>>, vector<8x128xf32>
    tpu.vector_store %arg11[%171, %c0_47], %170 {strides = array<i32>} : memref<64x128xf32, #tpu.memory_space<vmem>>, vector<8x128xf32>,
    %c7_i32 = arith.constant 7 : i32
    %c8_i32_48 = arith.constant 8 : i32
    %173 = arith.muli %c7_i32, %c8_i32_48 : i32
    %174 = tpu.assume_multiple %173, 8 : i32
    %175 = arith.index_cast %174 : i32 to index
    %c0_49 = arith.constant 0 : index
    %176 = vector.load %arg10[%175, %c0_49] : memref<64x512xf32, #tpu.memory_space<vmem>>, vector<8x512xf32>
    %cst_50 = arith.constant dense<0.000000e+00> : vector<8x512xf32>
    %177 = tpu.matmul %170, %7, %cst_50 {dimension_numbers = #tpu.dot_dimension_numbers<[1], [0], [0], [1], [0, 0, 1, 1], [], []>} : vector<8x128xf32>, vector<128x512xf32>, vector<8x512xf32> -> vector<8x512xf32>
    %178 = arith.addf %176, %177 : vector<8x512xf32>
    %179 = arith.negf %178 : vector<8x512xf32>
    %180 = math.exp %179 : vector<8x512xf32>
    %cst_51 = arith.constant 1.000000e+00 : f32
    %181 = vector.broadcast %cst_51 : f32 to vector<8x512xf32>
    %182 = arith.addf %181, %180 : vector<8x512xf32>
    %183 = arith.divf %181, %182 : vector<8x512xf32>
    %184 = math.tanh %178 : vector<8x512xf32>
    %185 = vector.extract_strided_slice %183 {offsets = [0, 128], sizes = [8, 128], strides = [1, 1]} : vector<8x512xf32> to vector<8x128xf32>
    %186 = arith.mulf %185, %167 : vector<8x128xf32>
    %187 = vector.extract_strided_slice %183 {offsets = [0, 0], sizes = [8, 128], strides = [1, 1]} : vector<8x512xf32> to vector<8x128xf32>
    %188 = vector.extract_strided_slice %184 {offsets = [0, 256], sizes = [8, 128], strides = [1, 1]} : vector<8x512xf32> to vector<8x128xf32>
    %189 = arith.mulf %187, %188 : vector<8x128xf32>
    %190 = arith.addf %186, %189 : vector<8x128xf32>
    %191 = vector.extract_strided_slice %183 {offsets = [0, 384], sizes = [8, 128], strides = [1, 1]} : vector<8x512xf32> to vector<8x128xf32>
    %192 = math.tanh %190 : vector<8x128xf32>
    %193 = arith.mulf %191, %192 : vector<8x128xf32>
    %194 = arith.index_cast %174 : i32 to index
    %c0_52 = arith.constant 0 : index
    %195 = vector.load %arg11[%194, %c0_52] : memref<64x128xf32, #tpu.memory_space<vmem>>, vector<8x128xf32>
    tpu.vector_store %arg11[%194, %c0_52], %193 {strides = array<i32>} : memref<64x128xf32, #tpu.memory_space<vmem>>, vector<8x128xf32>,
    %c8_i32_53 = arith.constant 8 : i32
    %c0_54 = arith.constant 0 : index
    %c0_55 = arith.constant 0 : index
    %196 = vector.load %arg11[%c0_54, %c0_55] : memref<64x128xf32, #tpu.memory_space<vmem>>, vector<64x128xf32>
    %c0_56 = arith.constant 0 : index
    %c0_57 = arith.constant 0 : index
    %197 = vector.load %arg4[%c0_56, %c0_57] : memref<128x512xf32, #tpu.memory_space<vmem>>, vector<128x512xf32>
    %cst_58 = arith.constant dense<0.000000e+00> : vector<64x512xf32>
    %198 = tpu.matmul %196, %197, %cst_58 {dimension_numbers = #tpu.dot_dimension_numbers<[1], [0], [0], [1], [0, 0, 1, 1], [], []>} : vector<64x128xf32>, vector<128x512xf32>, vector<64x512xf32> -> vector<64x512xf32>
    %c0_59 = arith.constant 0 : index
    %c0_60 = arith.constant 0 : index
    %199 = vector.load %arg5[%c0_59, %c0_60] : memref<1x512xf32, #tpu.memory_space<vmem>>, vector<1x512xf32>
    %200 = vector.broadcast %199 : vector<1x512xf32> to vector<64x512xf32>
    %201 = arith.addf %198, %200 : vector<64x512xf32>
    %c0_61 = arith.constant 0 : index
    %c0_62 = arith.constant 0 : index
    %202 = vector.load %arg10[%c0_61, %c0_62] : memref<64x512xf32, #tpu.memory_space<vmem>>, vector<64x512xf32>
    tpu.vector_store %arg10[%c0_61, %c0_62], %201 {strides = array<i32>} : memref<64x512xf32, #tpu.memory_space<vmem>>, vector<64x512xf32>,
    %c0_63 = arith.constant 0 : index
    %c0_64 = arith.constant 0 : index
    %203 = vector.load %arg6[%c0_63, %c0_64] : memref<128x512xf32, #tpu.memory_space<vmem>>, vector<128x512xf32>
    %c1 = arith.constant 1 : index
    %c0_65 = arith.constant 0 : index
    %c0_66 = arith.constant 0 : index
    %204 = vector.load %arg7[%c1, %c0_65, %c0_66] : memref<4x8x128xf32, #tpu.memory_space<vmem>>, vector<1x8x128xf32>
    %205 = vector.shape_cast %204 : vector<1x8x128xf32> to vector<8x128xf32>
    %c3 = arith.constant 3 : index
    %c0_67 = arith.constant 0 : index
    %c0_68 = arith.constant 0 : index
    %206 = vector.load %arg7[%c3, %c0_67, %c0_68] : memref<4x8x128xf32, #tpu.memory_space<vmem>>, vector<1x8x128xf32>
    %207 = vector.shape_cast %206 : vector<1x8x128xf32> to vector<8x128xf32>
    %c0_i32_69 = arith.constant 0 : i32
    %c8_i32_70 = arith.constant 8 : i32
    %208 = arith.muli %c0_i32_69, %c8_i32_70 : i32
    %209 = tpu.assume_multiple %208, 8 : i32
    %210 = arith.index_cast %209 : i32 to index
    %c0_71 = arith.constant 0 : index
    %211 = vector.load %arg10[%210, %c0_71] : memref<64x512xf32, #tpu.memory_space<vmem>>, vector<8x512xf32>
    %cst_72 = arith.constant dense<0.000000e+00> : vector<8x512xf32>
    %212 = tpu.matmul %205, %203, %cst_72 {dimension_numbers = #tpu.dot_dimension_numbers<[1], [0], [0], [1], [0, 0, 1, 1], [], []>} : vector<8x128xf32>, vector<128x512xf32>, vector<8x512xf32> -> vector<8x512xf32>
    %213 = arith.addf %211, %212 : vector<8x512xf32>
    %214 = arith.negf %213 : vector<8x512xf32>
    %215 = math.exp %214 : vector<8x512xf32>
    %cst_73 = arith.constant 1.000000e+00 : f32
    %216 = vector.broadcast %cst_73 : f32 to vector<8x512xf32>
    %217 = arith.addf %216, %215 : vector<8x512xf32>
    %218 = arith.divf %216, %217 : vector<8x512xf32>
    %219 = math.tanh %213 : vector<8x512xf32>
    %220 = vector.extract_strided_slice %218 {offsets = [0, 128], sizes = [8, 128], strides = [1, 1]} : vector<8x512xf32> to vector<8x128xf32>
    %221 = arith.mulf %220, %207 : vector<8x128xf32>
    %222 = vector.extract_strided_slice %218 {offsets = [0, 0], sizes = [8, 128], strides = [1, 1]} : vector<8x512xf32> to vector<8x128xf32>
    %223 = vector.extract_strided_slice %219 {offsets = [0, 256], sizes = [8, 128], strides = [1, 1]} : vector<8x512xf32> to vector<8x128xf32>
    %224 = arith.mulf %222, %223 : vector<8x128xf32>
    %225 = arith.addf %221, %224 : vector<8x128xf32>
    %226 = vector.extract_strided_slice %218 {offsets = [0, 384], sizes = [8, 128], strides = [1, 1]} : vector<8x512xf32> to vector<8x128xf32>
    %227 = math.tanh %225 : vector<8x128xf32>
    %228 = arith.mulf %226, %227 : vector<8x128xf32>
    %229 = arith.index_cast %209 : i32 to index
    %c0_74 = arith.constant 0 : index
    %230 = vector.load %arg8[%229, %c0_74] : memref<64x128xf32, #tpu.memory_space<vmem>>, vector<8x128xf32>
    tpu.vector_store %arg8[%229, %c0_74], %228 {strides = array<i32>} : memref<64x128xf32, #tpu.memory_space<vmem>>, vector<8x128xf32>,
    %c1_i32_75 = arith.constant 1 : i32
    %c8_i32_76 = arith.constant 8 : i32
    %231 = arith.muli %c1_i32_75, %c8_i32_76 : i32
    %232 = tpu.assume_multiple %231, 8 : i32
    %233 = arith.index_cast %232 : i32 to index
    %c0_77 = arith.constant 0 : index
    %234 = vector.load %arg10[%233, %c0_77] : memref<64x512xf32, #tpu.memory_space<vmem>>, vector<8x512xf32>
    %cst_78 = arith.constant dense<0.000000e+00> : vector<8x512xf32>
    %235 = tpu.matmul %228, %203, %cst_78 {dimension_numbers = #tpu.dot_dimension_numbers<[1], [0], [0], [1], [0, 0, 1, 1], [], []>} : vector<8x128xf32>, vector<128x512xf32>, vector<8x512xf32> -> vector<8x512xf32>
    %236 = arith.addf %234, %235 : vector<8x512xf32>
    %237 = arith.negf %236 : vector<8x512xf32>
    %238 = math.exp %237 : vector<8x512xf32>
    %cst_79 = arith.constant 1.000000e+00 : f32
    %239 = vector.broadcast %cst_79 : f32 to vector<8x512xf32>
    %240 = arith.addf %239, %238 : vector<8x512xf32>
    %241 = arith.divf %239, %240 : vector<8x512xf32>
    %242 = math.tanh %236 : vector<8x512xf32>
    %243 = vector.extract_strided_slice %241 {offsets = [0, 128], sizes = [8, 128], strides = [1, 1]} : vector<8x512xf32> to vector<8x128xf32>
    %244 = arith.mulf %243, %225 : vector<8x128xf32>
    %245 = vector.extract_strided_slice %241 {offsets = [0, 0], sizes = [8, 128], strides = [1, 1]} : vector<8x512xf32> to vector<8x128xf32>
    %246 = vector.extract_strided_slice %242 {offsets = [0, 256], sizes = [8, 128], strides = [1, 1]} : vector<8x512xf32> to vector<8x128xf32>
    %247 = arith.mulf %245, %246 : vector<8x128xf32>
    %248 = arith.addf %244, %247 : vector<8x128xf32>
    %249 = vector.extract_strided_slice %241 {offsets = [0, 384], sizes = [8, 128], strides = [1, 1]} : vector<8x512xf32> to vector<8x128xf32>
    %250 = math.tanh %248 : vector<8x128xf32>
    %251 = arith.mulf %249, %250 : vector<8x128xf32>
    %252 = arith.index_cast %232 : i32 to index
    %c0_80 = arith.constant 0 : index
    %253 = vector.load %arg8[%252, %c0_80] : memref<64x128xf32, #tpu.memory_space<vmem>>, vector<8x128xf32>
    tpu.vector_store %arg8[%252, %c0_80], %251 {strides = array<i32>} : memref<64x128xf32, #tpu.memory_space<vmem>>, vector<8x128xf32>,
    %c2_i32_81 = arith.constant 2 : i32
    %c8_i32_82 = arith.constant 8 : i32
    %254 = arith.muli %c2_i32_81, %c8_i32_82 : i32
    %255 = tpu.assume_multiple %254, 8 : i32
    %256 = arith.index_cast %255 : i32 to index
    %c0_83 = arith.constant 0 : index
    %257 = vector.load %arg10[%256, %c0_83] : memref<64x512xf32, #tpu.memory_space<vmem>>, vector<8x512xf32>
    %cst_84 = arith.constant dense<0.000000e+00> : vector<8x512xf32>
    %258 = tpu.matmul %251, %203, %cst_84 {dimension_numbers = #tpu.dot_dimension_numbers<[1], [0], [0], [1], [0, 0, 1, 1], [], []>} : vector<8x128xf32>, vector<128x512xf32>, vector<8x512xf32> -> vector<8x512xf32>
    %259 = arith.addf %257, %258 : vector<8x512xf32>
    %260 = arith.negf %259 : vector<8x512xf32>
    %261 = math.exp %260 : vector<8x512xf32>
    %cst_85 = arith.constant 1.000000e+00 : f32
    %262 = vector.broadcast %cst_85 : f32 to vector<8x512xf32>
    %263 = arith.addf %262, %261 : vector<8x512xf32>
    %264 = arith.divf %262, %263 : vector<8x512xf32>
    %265 = math.tanh %259 : vector<8x512xf32>
    %266 = vector.extract_strided_slice %264 {offsets = [0, 128], sizes = [8, 128], strides = [1, 1]} : vector<8x512xf32> to vector<8x128xf32>
    %267 = arith.mulf %266, %248 : vector<8x128xf32>
    %268 = vector.extract_strided_slice %264 {offsets = [0, 0], sizes = [8, 128], strides = [1, 1]} : vector<8x512xf32> to vector<8x128xf32>
    %269 = vector.extract_strided_slice %265 {offsets = [0, 256], sizes = [8, 128], strides = [1, 1]} : vector<8x512xf32> to vector<8x128xf32>
    %270 = arith.mulf %268, %269 : vector<8x128xf32>
    %271 = arith.addf %267, %270 : vector<8x128xf32>
    %272 = vector.extract_strided_slice %264 {offsets = [0, 384], sizes = [8, 128], strides = [1, 1]} : vector<8x512xf32> to vector<8x128xf32>
    %273 = math.tanh %271 : vector<8x128xf32>
    %274 = arith.mulf %272, %273 : vector<8x128xf32>
    %275 = arith.index_cast %255 : i32 to index
    %c0_86 = arith.constant 0 : index
    %276 = vector.load %arg8[%275, %c0_86] : memref<64x128xf32, #tpu.memory_space<vmem>>, vector<8x128xf32>
    tpu.vector_store %arg8[%275, %c0_86], %274 {strides = array<i32>} : memref<64x128xf32, #tpu.memory_space<vmem>>, vector<8x128xf32>,
    %c3_i32_87 = arith.constant 3 : i32
    %c8_i32_88 = arith.constant 8 : i32
    %277 = arith.muli %c3_i32_87, %c8_i32_88 : i32
    %278 = tpu.assume_multiple %277, 8 : i32
    %279 = arith.index_cast %278 : i32 to index
    %c0_89 = arith.constant 0 : index
    %280 = vector.load %arg10[%279, %c0_89] : memref<64x512xf32, #tpu.memory_space<vmem>>, vector<8x512xf32>
    %cst_90 = arith.constant dense<0.000000e+00> : vector<8x512xf32>
    %281 = tpu.matmul %274, %203, %cst_90 {dimension_numbers = #tpu.dot_dimension_numbers<[1], [0], [0], [1], [0, 0, 1, 1], [], []>} : vector<8x128xf32>, vector<128x512xf32>, vector<8x512xf32> -> vector<8x512xf32>
    %282 = arith.addf %280, %281 : vector<8x512xf32>
    %283 = arith.negf %282 : vector<8x512xf32>
    %284 = math.exp %283 : vector<8x512xf32>
    %cst_91 = arith.constant 1.000000e+00 : f32
    %285 = vector.broadcast %cst_91 : f32 to vector<8x512xf32>
    %286 = arith.addf %285, %284 : vector<8x512xf32>
    %287 = arith.divf %285, %286 : vector<8x512xf32>
    %288 = math.tanh %282 : vector<8x512xf32>
    %289 = vector.extract_strided_slice %287 {offsets = [0, 128], sizes = [8, 128], strides = [1, 1]} : vector<8x512xf32> to vector<8x128xf32>
    %290 = arith.mulf %289, %271 : vector<8x128xf32>
    %291 = vector.extract_strided_slice %287 {offsets = [0, 0], sizes = [8, 128], strides = [1, 1]} : vector<8x512xf32> to vector<8x128xf32>
    %292 = vector.extract_strided_slice %288 {offsets = [0, 256], sizes = [8, 128], strides = [1, 1]} : vector<8x512xf32> to vector<8x128xf32>
    %293 = arith.mulf %291, %292 : vector<8x128xf32>
    %294 = arith.addf %290, %293 : vector<8x128xf32>
    %295 = vector.extract_strided_slice %287 {offsets = [0, 384], sizes = [8, 128], strides = [1, 1]} : vector<8x512xf32> to vector<8x128xf32>
    %296 = math.tanh %294 : vector<8x128xf32>
    %297 = arith.mulf %295, %296 : vector<8x128xf32>
    %298 = arith.index_cast %278 : i32 to index
    %c0_92 = arith.constant 0 : index
    %299 = vector.load %arg8[%298, %c0_92] : memref<64x128xf32, #tpu.memory_space<vmem>>, vector<8x128xf32>
    tpu.vector_store %arg8[%298, %c0_92], %297 {strides = array<i32>} : memref<64x128xf32, #tpu.memory_space<vmem>>, vector<8x128xf32>,
    %c4_i32_93 = arith.constant 4 : i32
    %c8_i32_94 = arith.constant 8 : i32
    %300 = arith.muli %c4_i32_93, %c8_i32_94 : i32
    %301 = tpu.assume_multiple %300, 8 : i32
    %302 = arith.index_cast %301 : i32 to index
    %c0_95 = arith.constant 0 : index
    %303 = vector.load %arg10[%302, %c0_95] : memref<64x512xf32, #tpu.memory_space<vmem>>, vector<8x512xf32>
    %cst_96 = arith.constant dense<0.000000e+00> : vector<8x512xf32>
    %304 = tpu.matmul %297, %203, %cst_96 {dimension_numbers = #tpu.dot_dimension_numbers<[1], [0], [0], [1], [0, 0, 1, 1], [], []>} : vector<8x128xf32>, vector<128x512xf32>, vector<8x512xf32> -> vector<8x512xf32>
    %305 = arith.addf %303, %304 : vector<8x512xf32>
    %306 = arith.negf %305 : vector<8x512xf32>
    %307 = math.exp %306 : vector<8x512xf32>
    %cst_97 = arith.constant 1.000000e+00 : f32
    %308 = vector.broadcast %cst_97 : f32 to vector<8x512xf32>
    %309 = arith.addf %308, %307 : vector<8x512xf32>
    %310 = arith.divf %308, %309 : vector<8x512xf32>
    %311 = math.tanh %305 : vector<8x512xf32>
    %312 = vector.extract_strided_slice %310 {offsets = [0, 128], sizes = [8, 128], strides = [1, 1]} : vector<8x512xf32> to vector<8x128xf32>
    %313 = arith.mulf %312, %294 : vector<8x128xf32>
    %314 = vector.extract_strided_slice %310 {offsets = [0, 0], sizes = [8, 128], strides = [1, 1]} : vector<8x512xf32> to vector<8x128xf32>
    %315 = vector.extract_strided_slice %311 {offsets = [0, 256], sizes = [8, 128], strides = [1, 1]} : vector<8x512xf32> to vector<8x128xf32>
    %316 = arith.mulf %314, %315 : vector<8x128xf32>
    %317 = arith.addf %313, %316 : vector<8x128xf32>
    %318 = vector.extract_strided_slice %310 {offsets = [0, 384], sizes = [8, 128], strides = [1, 1]} : vector<8x512xf32> to vector<8x128xf32>
    %319 = math.tanh %317 : vector<8x128xf32>
    %320 = arith.mulf %318, %319 : vector<8x128xf32>
    %321 = arith.index_cast %301 : i32 to index
    %c0_98 = arith.constant 0 : index
    %322 = vector.load %arg8[%321, %c0_98] : memref<64x128xf32, #tpu.memory_space<vmem>>, vector<8x128xf32>
    tpu.vector_store %arg8[%321, %c0_98], %320 {strides = array<i32>} : memref<64x128xf32, #tpu.memory_space<vmem>>, vector<8x128xf32>,
    %c5_i32_99 = arith.constant 5 : i32
    %c8_i32_100 = arith.constant 8 : i32
    %323 = arith.muli %c5_i32_99, %c8_i32_100 : i32
    %324 = tpu.assume_multiple %323, 8 : i32
    %325 = arith.index_cast %324 : i32 to index
    %c0_101 = arith.constant 0 : index
    %326 = vector.load %arg10[%325, %c0_101] : memref<64x512xf32, #tpu.memory_space<vmem>>, vector<8x512xf32>
    %cst_102 = arith.constant dense<0.000000e+00> : vector<8x512xf32>
    %327 = tpu.matmul %320, %203, %cst_102 {dimension_numbers = #tpu.dot_dimension_numbers<[1], [0], [0], [1], [0, 0, 1, 1], [], []>} : vector<8x128xf32>, vector<128x512xf32>, vector<8x512xf32> -> vector<8x512xf32>
    %328 = arith.addf %326, %327 : vector<8x512xf32>
    %329 = arith.negf %328 : vector<8x512xf32>
    %330 = math.exp %329 : vector<8x512xf32>
    %cst_103 = arith.constant 1.000000e+00 : f32
    %331 = vector.broadcast %cst_103 : f32 to vector<8x512xf32>
    %332 = arith.addf %331, %330 : vector<8x512xf32>
    %333 = arith.divf %331, %332 : vector<8x512xf32>
    %334 = math.tanh %328 : vector<8x512xf32>
    %335 = vector.extract_strided_slice %333 {offsets = [0, 128], sizes = [8, 128], strides = [1, 1]} : vector<8x512xf32> to vector<8x128xf32>
    %336 = arith.mulf %335, %317 : vector<8x128xf32>
    %337 = vector.extract_strided_slice %333 {offsets = [0, 0], sizes = [8, 128], strides = [1, 1]} : vector<8x512xf32> to vector<8x128xf32>
    %338 = vector.extract_strided_slice %334 {offsets = [0, 256], sizes = [8, 128], strides = [1, 1]} : vector<8x512xf32> to vector<8x128xf32>
    %339 = arith.mulf %337, %338 : vector<8x128xf32>
    %340 = arith.addf %336, %339 : vector<8x128xf32>
    %341 = vector.extract_strided_slice %333 {offsets = [0, 384], sizes = [8, 128], strides = [1, 1]} : vector<8x512xf32> to vector<8x128xf32>
    %342 = math.tanh %340 : vector<8x128xf32>
    %343 = arith.mulf %341, %342 : vector<8x128xf32>
    %344 = arith.index_cast %324 : i32 to index
    %c0_104 = arith.constant 0 : index
    %345 = vector.load %arg8[%344, %c0_104] : memref<64x128xf32, #tpu.memory_space<vmem>>, vector<8x128xf32>
    tpu.vector_store %arg8[%344, %c0_104], %343 {strides = array<i32>} : memref<64x128xf32, #tpu.memory_space<vmem>>, vector<8x128xf32>,
    %c6_i32_105 = arith.constant 6 : i32
    %c8_i32_106 = arith.constant 8 : i32
    %346 = arith.muli %c6_i32_105, %c8_i32_106 : i32
    %347 = tpu.assume_multiple %346, 8 : i32
    %348 = arith.index_cast %347 : i32 to index
    %c0_107 = arith.constant 0 : index
    %349 = vector.load %arg10[%348, %c0_107] : memref<64x512xf32, #tpu.memory_space<vmem>>, vector<8x512xf32>
    %cst_108 = arith.constant dense<0.000000e+00> : vector<8x512xf32>
    %350 = tpu.matmul %343, %203, %cst_108 {dimension_numbers = #tpu.dot_dimension_numbers<[1], [0], [0], [1], [0, 0, 1, 1], [], []>} : vector<8x128xf32>, vector<128x512xf32>, vector<8x512xf32> -> vector<8x512xf32>
    %351 = arith.addf %349, %350 : vector<8x512xf32>
    %352 = arith.negf %351 : vector<8x512xf32>
    %353 = math.exp %352 : vector<8x512xf32>
    %cst_109 = arith.constant 1.000000e+00 : f32
    %354 = vector.broadcast %cst_109 : f32 to vector<8x512xf32>
    %355 = arith.addf %354, %353 : vector<8x512xf32>
    %356 = arith.divf %354, %355 : vector<8x512xf32>
    %357 = math.tanh %351 : vector<8x512xf32>
    %358 = vector.extract_strided_slice %356 {offsets = [0, 128], sizes = [8, 128], strides = [1, 1]} : vector<8x512xf32> to vector<8x128xf32>
    %359 = arith.mulf %358, %340 : vector<8x128xf32>
    %360 = vector.extract_strided_slice %356 {offsets = [0, 0], sizes = [8, 128], strides = [1, 1]} : vector<8x512xf32> to vector<8x128xf32>
    %361 = vector.extract_strided_slice %357 {offsets = [0, 256], sizes = [8, 128], strides = [1, 1]} : vector<8x512xf32> to vector<8x128xf32>
    %362 = arith.mulf %360, %361 : vector<8x128xf32>
    %363 = arith.addf %359, %362 : vector<8x128xf32>
    %364 = vector.extract_strided_slice %356 {offsets = [0, 384], sizes = [8, 128], strides = [1, 1]} : vector<8x512xf32> to vector<8x128xf32>
    %365 = math.tanh %363 : vector<8x128xf32>
    %366 = arith.mulf %364, %365 : vector<8x128xf32>
    %367 = arith.index_cast %347 : i32 to index
    %c0_110 = arith.constant 0 : index
    %368 = vector.load %arg8[%367, %c0_110] : memref<64x128xf32, #tpu.memory_space<vmem>>, vector<8x128xf32>
    tpu.vector_store %arg8[%367, %c0_110], %366 {strides = array<i32>} : memref<64x128xf32, #tpu.memory_space<vmem>>, vector<8x128xf32>,
    %c7_i32_111 = arith.constant 7 : i32
    %c8_i32_112 = arith.constant 8 : i32
    %369 = arith.muli %c7_i32_111, %c8_i32_112 : i32
    %370 = tpu.assume_multiple %369, 8 : i32
    %371 = arith.index_cast %370 : i32 to index
    %c0_113 = arith.constant 0 : index
    %372 = vector.load %arg10[%371, %c0_113] : memref<64x512xf32, #tpu.memory_space<vmem>>, vector<8x512xf32>
    %cst_114 = arith.constant dense<0.000000e+00> : vector<8x512xf32>
    %373 = tpu.matmul %366, %203, %cst_114 {dimension_numbers = #tpu.dot_dimension_numbers<[1], [0], [0], [1], [0, 0, 1, 1], [], []>} : vector<8x128xf32>, vector<128x512xf32>, vector<8x512xf32> -> vector<8x512xf32>
    %374 = arith.addf %372, %373 : vector<8x512xf32>
    %375 = arith.negf %374 : vector<8x512xf32>
    %376 = math.exp %375 : vector<8x512xf32>
    %cst_115 = arith.constant 1.000000e+00 : f32
    %377 = vector.broadcast %cst_115 : f32 to vector<8x512xf32>
    %378 = arith.addf %377, %376 : vector<8x512xf32>
    %379 = arith.divf %377, %378 : vector<8x512xf32>
    %380 = math.tanh %374 : vector<8x512xf32>
    %381 = vector.extract_strided_slice %379 {offsets = [0, 128], sizes = [8, 128], strides = [1, 1]} : vector<8x512xf32> to vector<8x128xf32>
    %382 = arith.mulf %381, %363 : vector<8x128xf32>
    %383 = vector.extract_strided_slice %379 {offsets = [0, 0], sizes = [8, 128], strides = [1, 1]} : vector<8x512xf32> to vector<8x128xf32>
    %384 = vector.extract_strided_slice %380 {offsets = [0, 256], sizes = [8, 128], strides = [1, 1]} : vector<8x512xf32> to vector<8x128xf32>
    %385 = arith.mulf %383, %384 : vector<8x128xf32>
    %386 = arith.addf %382, %385 : vector<8x128xf32>
    %387 = vector.extract_strided_slice %379 {offsets = [0, 384], sizes = [8, 128], strides = [1, 1]} : vector<8x512xf32> to vector<8x128xf32>
    %388 = math.tanh %386 : vector<8x128xf32>
    %389 = arith.mulf %387, %388 : vector<8x128xf32>
    %390 = arith.index_cast %370 : i32 to index
    %c0_116 = arith.constant 0 : index
    %391 = vector.load %arg8[%390, %c0_116] : memref<64x128xf32, #tpu.memory_space<vmem>>, vector<8x128xf32>
    tpu.vector_store %arg8[%390, %c0_116], %389 {strides = array<i32>} : memref<64x128xf32, #tpu.memory_space<vmem>>, vector<8x128xf32>,
    %c8_i32_117 = arith.constant 8 : i32
    %392 = vector.shape_cast %193 : vector<8x128xf32> to vector<1x8x128xf32>
    %393 = vector.shape_cast %389 : vector<8x128xf32> to vector<1x8x128xf32>
    %394 = vector.shape_cast %190 : vector<8x128xf32> to vector<1x8x128xf32>
    %395 = vector.shape_cast %386 : vector<8x128xf32> to vector<1x8x128xf32>
    %396 = tpu.concatenate %392, %393, %394, %395 in 0 : vector<1x8x128xf32>, vector<1x8x128xf32>, vector<1x8x128xf32>, vector<1x8x128xf32> -> vector<4x8x128xf32>
    %c0_118 = arith.constant 0 : index
    %c0_119 = arith.constant 0 : index
    %c0_120 = arith.constant 0 : index
    %397 = vector.load %arg9[%c0_118, %c0_119, %c0_120] : memref<4x8x128xf32, #tpu.memory_space<vmem>>, vector<4x8x128xf32>
    tpu.vector_store %arg9[%c0_118, %c0_119, %c0_120], %396 {strides = array<i32>} : memref<4x8x128xf32, #tpu.memory_space<vmem>>, vector<4x8x128xf32>,
    return
  }
}

</mosaic_0001>

<llo_original>
// kernel: tpu_custom_call.1
$region0: #{tpu_custom_call.1}
  #allocation0 [shape = 'u32[]', space=smem, size = 0x4, offset = 0x4, fixed_abs, tag = 'smem constant byte address 0x4 - core index']
  #allocation1 [shape = 'u32[72,128]{1,0:T(1,128)}', space=vmem, size = 0x9000, scoped, tag = 'internal scratch']
  #allocation2 [shape = 'f32[64,512]{1,0:T(8,128)}', space=vmem, size = 0x20000, scoped, tag = 'scratch operand']
  #allocation3 [shape = 'f32[64,128]{1,0:T(8,128)}', space=vmem, size = 0x8000, scoped, tag = 'scratch operand']
  %s0 = inlined_call_operand.hbm [shape: f32[64,128], index: 0, kind: input, shape index: {}]
  %s1 = inlined_call_operand.hbm [shape: f32[128,512], index: 1, kind: input, shape index: {}]
  %s2 = inlined_call_operand.hbm [shape: f32[1,512], index: 2, kind: input, shape index: {}]
  %s3 = inlined_call_operand.hbm [shape: f32[128,512], index: 3, kind: input, shape index: {}]
  %s4 = inlined_call_operand.hbm [shape: f32[128,512], index: 4, kind: input, shape index: {}]
  %s5 = inlined_call_operand.vmem [shape: f32[1,512], index: 5, kind: input, shape index: {}]
  %s6 = inlined_call_operand.hbm [shape: f32[128,512], index: 6, kind: input, shape index: {}]
  %s7 = inlined_call_operand.hbm [shape: f32[4,8,128], index: 7, kind: input, shape index: {}]
  %s8 = inlined_call_operand.hbm [shape: f32[64,128], index: 8, kind: output, shape index: {0}]
  %s9 = inlined_call_operand.hbm [shape: f32[4,8,128], index: 9, kind: output, shape index: {1}]
  %10 = xla_tuple %s8, %s9
  %s11 = sld [smem:[#allocation0]]
  $region78: #{tpu_custom_call.1} parent=0
    _
  %s13 = ssub.s32 1, %s11
  %s14 = scalar_select 0, %s13, %s11
  $region1: #{tpu_custom_call.1} parent=0
    #allocation4 [shape = 'u8[32768]{0}', space=vmem, size = 0x8000, scoped, tag = 'input window, operand 0, single buffered']
    #allocation5 [shape = 's32[1]{0}', space=sflag, size = 0x4, scoped, tag = 'scoped memory for tpu_custom_call.1']
    #allocation6 [shape = 's32[1]{0}', space=sflag, size = 0x4, scoped, tag = 'scoped memory for tpu_custom_call.1']
    #allocation7 [shape = 'u8[262144]{0}', space=vmem, size = 0x40000, scoped, tag = 'input window, operand 1, single buffered']
    #allocation8 [shape = 's32[1]{0}', space=sflag, size = 0x4, scoped, tag = 'scoped memory for tpu_custom_call.1']
    #allocation9 [shape = 'u8[2048]{0}', space=vmem, size = 0x800, scoped, tag = 'input window, operand 2, single buffered']
    #allocation10 [shape = 'u8[262144]{0}', space=vmem, size = 0x40000, scoped, tag = 'input window, operand 3, single buffered']
    #allocation11 [shape = 's32[1]{0}', space=sflag, size = 0x4, scoped, tag = 'scoped memory for tpu_custom_call.1']
    #allocation12 [shape = 'u8[262144]{0}', space=vmem, size = 0x40000, scoped, tag = 'input window, operand 4, single buffered']
    #allocation13 [shape = 'u8[262144]{0}', space=vmem, size = 0x40000, scoped, tag = 'input window, operand 6, single buffered']
    #allocation14 [shape = 's32[1]{0}', space=sflag, size = 0x4, scoped, tag = 'scoped memory for tpu_custom_call.1']
    #allocation15 [shape = 'u8[16384]{0}', space=vmem, size = 0x4000, scoped, tag = 'input window, operand 7, single buffered']
    #allocation16 [shape = 'u8[32768]{0}', space=vmem, size = 0x8000, scoped, tag = 'output window, operand 0, single buffered']
    #allocation17 [shape = 'u8[16384]{0}', space=vmem, size = 0x4000, scoped, tag = 'output window, operand 1, single buffered']
    #allocation18 [shape = 's32[1]{0}', space=sflag, size = 0x4, scoped, tag = 'scoped memory for tpu_custom_call.1']
    %15 = vsyncpa [#allocation5], 0
    %16 = vsyncpa [#allocation8], 0
    %17 = vsyncpa [#allocation11], 0
    %18 = vsyncpa [#allocation14], 0
    %19 = vsyncpa [#allocation6], 0
    %20 = vsyncpa [#allocation18], 0
    // Predicated region
    $region2: #{tpu_custom_call.1} parent=1 // pred_check
      _
    $region3: #{tpu_custom_call.1} parent=1 // pred_check_branch
      %22 = sbr.rel (0) target = $region5
    $region4: #{tpu_custom_call.1} parent=1 // pred_region
      %24 = vsyncadd [#allocation5], 0
      %s25 = sshll.u32 %s0, 4
      %s26 = int_to_ptr.hbm [resolvable:$true] %s25
      %s27 = sshll.u32 [#allocation4], 4
      %s28 = int_to_ptr.vmem [resolvable:$true] %s27
      %33 = dma.hbm_to_vmem [thread:$0]  %s26, 1024, %s28, [#allocation5], 128, 128, 8
    $region5: #{tpu_custom_call.1} parent=1 // pred_fallthru
      _
    // Predicated region
    $region6: #{tpu_custom_call.1} parent=1 // pred_check
      _
    $region7: #{tpu_custom_call.1} parent=1 // pred_check_branch
      %35 = sbr.rel (0) target = $region9
    $region8: #{tpu_custom_call.1} parent=1 // pred_region
      %37 = vsyncadd [#allocation8], 0
      %s38 = sshll.u32 %s1, 4
      %s39 = int_to_ptr.hbm [resolvable:$true] %s38
      %s40 = sshll.u32 [#allocation7], 4
      %s41 = int_to_ptr.vmem [resolvable:$true] %s40
      %46 = dma.hbm_to_vmem [thread:$0]  %s39, 8192, %s41, [#allocation8], 512, 512, 32
    $region9: #{tpu_custom_call.1} parent=1 // pred_fallthru
      _
    // Predicated region
    $region10: #{tpu_custom_call.1} parent=1 // pred_check
      _
    $region11: #{tpu_custom_call.1} parent=1 // pred_check_branch
      %48 = sbr.rel (0) target = $region13
    $region12: #{tpu_custom_call.1} parent=1 // pred_region
      %50 = vsyncadd [#allocation8], 0
      %s52 = sshll.u32 %s2, 4
      %s53 = int_to_ptr.hbm [resolvable:$true] %s52
      %s54 = sshll.u32 [#allocation9], 4
      %s55 = int_to_ptr.vmem [resolvable:$true] %s54
      %57 = dma.hbm_to_vmem [thread:$0]  %s53, 64, %s55, [#allocation8]
    $region13: #{tpu_custom_call.1} parent=1 // pred_fallthru
      _
    // Predicated region
    $region14: #{tpu_custom_call.1} parent=1 // pred_check
      _
    $region15: #{tpu_custom_call.1} parent=1 // pred_check_branch
      %59 = sbr.rel (0) target = $region17
    $region16: #{tpu_custom_call.1} parent=1 // pred_region
      %61 = vsyncadd [#allocation11], 0
      %s62 = sshll.u32 %s3, 4
      %s63 = int_to_ptr.hbm [resolvable:$true] %s62
      %s64 = sshll.u32 [#allocation10], 4
      %s65 = int_to_ptr.vmem [resolvable:$true] %s64
      %70 = dma.hbm_to_vmem [thread:$0]  %s63, 8192, %s65, [#allocation11], 512, 512, 32
    $region17: #{tpu_custom_call.1} parent=1 // pred_fallthru
      _
    // Predicated region
    $region18: #{tpu_custom_call.1} parent=1 // pred_check
      _
    $region19: #{tpu_custom_call.1} parent=1 // pred_check_branch
      %72 = sbr.rel (0) target = $region21
    $region20: #{tpu_custom_call.1} parent=1 // pred_region
      %74 = vsyncadd [#allocation11], 0
      %s75 = sshll.u32 %s4, 4
      %s76 = int_to_ptr.hbm [resolvable:$true] %s75
      %s77 = sshll.u32 [#allocation12], 4
      %s78 = int_to_ptr.vmem [resolvable:$true] %s77
      %83 = dma.hbm_to_vmem [thread:$0]  %s76, 8192, %s78, [#allocation11], 512, 512, 32
    $region21: #{tpu_custom_call.1} parent=1 // pred_fallthru
      _
    // Predicated region
    $region22: #{tpu_custom_call.1} parent=1 // pred_check
      _
    $region23: #{tpu_custom_call.1} parent=1 // pred_check_branch
      %85 = sbr.rel (0) target = $region25
    $region24: #{tpu_custom_call.1} parent=1 // pred_region
      _
    $region25: #{tpu_custom_call.1} parent=1 // pred_fallthru
      _
    // Predicated region
    $region26: #{tpu_custom_call.1} parent=1 // pred_check
      _
    $region27: #{tpu_custom_call.1} parent=1 // pred_check_branch
      %87 = sbr.rel (0) target = $region29
    $region28: #{tpu_custom_call.1} parent=1 // pred_region
      %89 = vsyncadd [#allocation14], 0
      %s90 = sshll.u32 %s6, 4
      %s91 = int_to_ptr.hbm [resolvable:$true] %s90
      %s92 = sshll.u32 [#allocation13], 4
      %s93 = int_to_ptr.vmem [resolvable:$true] %s92
      %98 = dma.hbm_to_vmem [thread:$0]  %s91, 8192, %s93, [#allocation14], 512, 512, 32
    $region29: #{tpu_custom_call.1} parent=1 // pred_fallthru
      _
    // Predicated region
    $region30: #{tpu_custom_call.1} parent=1 // pred_check
      _
    $region31: #{tpu_custom_call.1} parent=1 // pred_check_branch
      %100 = sbr.rel (0) target = $region33
    $region32: #{tpu_custom_call.1} parent=1 // pred_region
      %102 = vsyncadd [#allocation14], 0
      %s103 = sshll.u32 %s7, 4
      %s104 = int_to_ptr.hbm [resolvable:$true] %s103
      %s105 = sshll.u32 [#allocation15], 4
      %s106 = int_to_ptr.vmem [resolvable:$true] %s105
      %111 = dma.hbm_to_vmem [thread:$0]  %s104, 512, %s106, [#allocation14], 128, 128, 8
    $region33: #{tpu_custom_call.1} parent=1 // pred_fallthru
      _
    // Predicated region
    $region34: #{tpu_custom_call.1} parent=1 // pred_check
      _
    $region35: #{tpu_custom_call.1} parent=1 // pred_check_branch
      %113 = sbr.rel (0) target = $region37
    $region36: #{tpu_custom_call.1} parent=1 // pred_region
      %115 = dma.done [#allocation5], 1024
    $region37: #{tpu_custom_call.1} parent=1 // pred_fallthru
      _
    // Predicated region
    $region38: #{tpu_custom_call.1} parent=1 // pred_check
      _
    $region39: #{tpu_custom_call.1} parent=1 // pred_check_branch
      %117 = sbr.rel (0) target = $region41
    $region40: #{tpu_custom_call.1} parent=1 // pred_region
      %119 = dma.done [#allocation8], 8192
    $region41: #{tpu_custom_call.1} parent=1 // pred_fallthru
      _
    // Predicated region
    $region42: #{tpu_custom_call.1} parent=1 // pred_check
      _
    $region43: #{tpu_custom_call.1} parent=1 // pred_check_branch
      %121 = sbr.rel (0) target = $region45
    $region44: #{tpu_custom_call.1} parent=1 // pred_region
      %123 = dma.done [#allocation8], 64
    $region45: #{tpu_custom_call.1} parent=1 // pred_fallthru
      _
    // Predicated region
    $region46: #{tpu_custom_call.1} parent=1 // pred_check
      _
    $region47: #{tpu_custom_call.1} parent=1 // pred_check_branch
      %125 = sbr.rel (0) target = $region49
    $region48: #{tpu_custom_call.1} parent=1 // pred_region
      %127 = dma.done [#allocation11], 8192
    $region49: #{tpu_custom_call.1} parent=1 // pred_fallthru
      _
    // Predicated region
    $region50: #{tpu_custom_call.1} parent=1 // pred_check
      _
    $region51: #{tpu_custom_call.1} parent=1 // pred_check_branch
      %129 = sbr.rel (0) target = $region53
    $region52: #{tpu_custom_call.1} parent=1 // pred_region
      %131 = dma.done [#allocation11], 8192
    $region53: #{tpu_custom_call.1} parent=1 // pred_fallthru
      _
    // Predicated region
    $region54: #{tpu_custom_call.1} parent=1 // pred_check
      _
    $region55: #{tpu_custom_call.1} parent=1 // pred_check_branch
      %133 = sbr.rel (0) target = $region57
    $region56: #{tpu_custom_call.1} parent=1 // pred_region
      %135 = dma.done [#allocation14], 8192
    $region57: #{tpu_custom_call.1} parent=1 // pred_fallthru
      _
    // Predicated region
    $region58: #{tpu_custom_call.1} parent=1 // pred_check
      _
    $region59: #{tpu_custom_call.1} parent=1 // pred_check_branch
      %137 = sbr.rel (0) target = $region61
    $region60: #{tpu_custom_call.1} parent=1 // pred_region
      %139 = dma.done [#allocation14], 512
    $region61: #{tpu_custom_call.1} parent=1 // pred_fallthru
      _
    %v140 = vld [vmem:[#allocation4] sm:$0xff]
    %v141 = vld [vmem:[#allocation4 + $0x8] sm:$0xff]
    %v142 = vld [vmem:[#allocation4 + $0x10] sm:$0xff]
    %v143 = vld [vmem:[#allocation4 + $0x18] sm:$0xff]
    %v144 = vld [vmem:[#allocation4 + $0x20] sm:$0xff]
    %v145 = vld [vmem:[#allocation4 + $0x28] sm:$0xff]
    %v146 = vld [vmem:[#allocation4 + $0x30] sm:$0xff]
    %v147 = vld [vmem:[#allocation4 + $0x38] sm:$0xff]
    %v148 = vld [vmem:[#allocation7] sm:$0xff]
    %v149 = vld [vmem:[#allocation7 + $0x8] sm:$0xff]
    %v150 = vld [vmem:[#allocation7 + $0x10] sm:$0xff]
    %v151 = vld [vmem:[#allocation7 + $0x18] sm:$0xff]
    %v152 = vld [vmem:[#allocation7 + $0x20] sm:$0xff]
    %v153 = vld [vmem:[#allocation7 + $0x28] sm:$0xff]
    %v154 = vld [vmem:[#allocation7 + $0x30] sm:$0xff]
    %v155 = vld [vmem:[#allocation7 + $0x38] sm:$0xff]
    %v156 = vld [vmem:[#allocation7 + $0x40] sm:$0xff]
    %v157 = vld [vmem:[#allocation7 + $0x48] sm:$0xff]
    %v158 = vld [vmem:[#allocation7 + $0x50] sm:$0xff]
    %v159 = vld [vmem:[#allocation7 + $0x58] sm:$0xff]
    %v160 = vld [vmem:[#allocation7 + $0x60] sm:$0xff]
    %v161 = vld [vmem:[#allocation7 + $0x68] sm:$0xff]
    %v162 = vld [vmem:[#allocation7 + $0x70] sm:$0xff]
    %v163 = vld [vmem:[#allocation7 + $0x78] sm:$0xff]
    %v164 = vld [vmem:[#allocation7 + $0x80] sm:$0xff]
    %v165 = vld [vmem:[#allocation7 + $0x88] sm:$0xff]
    %v166 = vld [vmem:[#allocation7 + $0x90] sm:$0xff]
    %v167 = vld [vmem:[#allocation7 + $0x98] sm:$0xff]
    %v168 = vld [vmem:[#allocation7 + $0xa0] sm:$0xff]
    %v169 = vld [vmem:[#allocation7 + $0xa8] sm:$0xff]
    %v170 = vld [vmem:[#allocation7 + $0xb0] sm:$0xff]
    %v171 = vld [vmem:[#allocation7 + $0xb8] sm:$0xff]
    %v172 = vld [vmem:[#allocation7 + $0xc0] sm:$0xff]
    %v173 = vld [vmem:[#allocation7 + $0xc8] sm:$0xff]
    %v174 = vld [vmem:[#allocation7 + $0xd0] sm:$0xff]
    %v175 = vld [vmem:[#allocation7 + $0xd8] sm:$0xff]
    %v176 = vld [vmem:[#allocation7 + $0xe0] sm:$0xff]
    %v177 = vld [vmem:[#allocation7 + $0xe8] sm:$0xff]
    %v178 = vld [vmem:[#allocation7 + $0xf0] sm:$0xff]
    %v179 = vld [vmem:[#allocation7 + $0xf8] sm:$0xff]
    %v180 = vld [vmem:[#allocation7 + $0x100] sm:$0xff]
    %v181 = vld [vmem:[#allocation7 + $0x108] sm:$0xff]
    %v182 = vld [vmem:[#allocation7 + $0x110] sm:$0xff]
    %v183 = vld [vmem:[#allocation7 + $0x118] sm:$0xff]
    %v184 = vld [vmem:[#allocation7 + $0x120] sm:$0xff]
    %v185 = vld [vmem:[#allocation7 + $0x128] sm:$0xff]
    %v186 = vld [vmem:[#allocation7 + $0x130] sm:$0xff]
    %v187 = vld [vmem:[#allocation7 + $0x138] sm:$0xff]
    %v188 = vld [vmem:[#allocation7 + $0x140] sm:$0xff]
    %v189 = vld [vmem:[#allocation7 + $0x148] sm:$0xff]
    %v190 = vld [vmem:[#allocation7 + $0x150] sm:$0xff]
    %v191 = vld [vmem:[#allocation7 + $0x158] sm:$0xff]
    %v192 = vld [vmem:[#allocation7 + $0x160] sm:$0xff]
    %v193 = vld [vmem:[#allocation7 + $0x168] sm:$0xff]
    %v194 = vld [vmem:[#allocation7 + $0x170] sm:$0xff]
    %v195 = vld [vmem:[#allocation7 + $0x178] sm:$0xff]
    %v196 = vld [vmem:[#allocation7 + $0x180] sm:$0xff]
    %v197 = vld [vmem:[#allocation7 + $0x188] sm:$0xff]
    %v198 = vld [vmem:[#allocation7 + $0x190] sm:$0xff]
    %v199 = vld [vmem:[#allocation7 + $0x198] sm:$0xff]
    %v200 = vld [vmem:[#allocation7 + $0x1a0] sm:$0xff]
    %v201 = vld [vmem:[#allocation7 + $0x1a8] sm:$0xff]
    %v202 = vld [vmem:[#allocation7 + $0x1b0] sm:$0xff]
    %v203 = vld [vmem:[#allocation7 + $0x1b8] sm:$0xff]
    %v204 = vld [vmem:[#allocation7 + $0x1c0] sm:$0xff]
    %v205 = vld [vmem:[#allocation7 + $0x1c8] sm:$0xff]
    %v206 = vld [vmem:[#allocation7 + $0x1d0] sm:$0xff]
    %v207 = vld [vmem:[#allocation7 + $0x1d8] sm:$0xff]
    %v208 = vld [vmem:[#allocation7 + $0x1e0] sm:$0xff]
    %v209 = vld [vmem:[#allocation7 + $0x1e8] sm:$0xff]
    %v210 = vld [vmem:[#allocation7 + $0x1f0] sm:$0xff]
    %v211 = vld [vmem:[#allocation7 + $0x1f8] sm:$0xff]
    %v212 = vld [vmem:[#allocation9] sm:$0xf]
    %v214 = vperm.slane %v212, 0
    %v215 = vperm.slane %v212, 1
    %v216 = vperm.slane %v212, 2
    %v217 = vperm.slane %v212, 3
    %222 = vmatpush.msra.mxu0 %v208
    %223 = vmatpush.msra.mxu0 %v204
    %224 = vmatpush.msra.mxu0 %v200
    %225 = vmatpush.msra.mxu0 %v196
    %226 = vmatpush.msra.mxu0 %v192
    %227 = vmatpush.msra.mxu0 %v188
    %228 = vmatpush.msra.mxu0 %v184
    %229 = vmatpush.msra.mxu0 %v180
    %230 = vmatpush.msra.mxu0 %v176
    %231 = vmatpush.msra.mxu0 %v172
    %232 = vmatpush.msra.mxu0 %v168
    %233 = vmatpush.msra.mxu0 %v164
    %234 = vmatpush.msra.mxu0 %v160
    %235 = vmatpush.msra.mxu0 %v156
    %236 = vmatpush.msra.mxu0 %v152
    %237 = vmatpush.msra.mxu0 %v148
    %238 = vmatmul.f32.gmra.mxu0 %v140
    %v239 = vpop.f32.mrf.mxu0
    %v240 = vadd.f32 %v214, %v239
    %241 = vmatmul.f32.gmra.mxu0 %v141
    %v242 = vpop.f32.mrf.mxu0
    %v243 = vadd.f32 %v214, %v242
    %244 = vmatmul.f32.gmra.mxu0 %v142
    %v245 = vpop.f32.mrf.mxu0
    %v246 = vadd.f32 %v214, %v245
    %247 = vmatmul.f32.gmra.mxu0 %v143
    %v248 = vpop.f32.mrf.mxu0
    %v249 = vadd.f32 %v214, %v248
    %250 = vmatmul.f32.gmra.mxu0 %v144
    %v251 = vpop.f32.mrf.mxu0
    %v252 = vadd.f32 %v214, %v251
    %253 = vmatmul.f32.gmra.mxu0 %v145
    %v254 = vpop.f32.mrf.mxu0
    %v255 = vadd.f32 %v214, %v254
    %256 = vmatmul.f32.gmra.mxu0 %v146
    %v257 = vpop.f32.mrf.mxu0
    %v258 = vadd.f32 %v214, %v257
    %259 = vmatmul.f32.gmra.mxu0 %v147
    %v260 = vpop.f32.mrf.mxu0
    %v261 = vadd.f32 %v214, %v260
    %262 = vdwg.mxu0
    %263 = vmatpush.msra.mxu0 %v209
    %264 = vmatpush.msra.mxu0 %v205
    %265 = vmatpush.msra.mxu0 %v201
    %266 = vmatpush.msra.mxu0 %v197
    %267 = vmatpush.msra.mxu0 %v193
    %268 = vmatpush.msra.mxu0 %v189
    %269 = vmatpush.msra.mxu0 %v185
    %270 = vmatpush.msra.mxu0 %v181
    %271 = vmatpush.msra.mxu0 %v177
    %272 = vmatpush.msra.mxu0 %v173
    %273 = vmatpush.msra.mxu0 %v169
    %274 = vmatpush.msra.mxu0 %v165
    %275 = vmatpush.msra.mxu0 %v161
    %276 = vmatpush.msra.mxu0 %v157
    %277 = vmatpush.msra.mxu0 %v153
    %278 = vmatpush.msra.mxu0 %v149
    %279 = vmatmul.f32.gmra.mxu0 %v140
    %v280 = vpop.f32.mrf.mxu0
    %v281 = vadd.f32 %v215, %v280
    %282 = vmatmul.f32.gmra.mxu0 %v141
    %v283 = vpop.f32.mrf.mxu0
    %v284 = vadd.f32 %v215, %v283
    %285 = vmatmul.f32.gmra.mxu0 %v142
    %v286 = vpop.f32.mrf.mxu0
    %v287 = vadd.f32 %v215, %v286
    %288 = vmatmul.f32.gmra.mxu0 %v143
    %v289 = vpop.f32.mrf.mxu0
    %v290 = vadd.f32 %v215, %v289
    %291 = vmatmul.f32.gmra.mxu0 %v144
    %v292 = vpop.f32.mrf.mxu0
    %v293 = vadd.f32 %v215, %v292
    %294 = vmatmul.f32.gmra.mxu0 %v145
    %v295 = vpop.f32.mrf.mxu0
    %v296 = vadd.f32 %v215, %v295
    %297 = vmatmul.f32.gmra.mxu0 %v146
    %v298 = vpop.f32.mrf.mxu0
    %v299 = vadd.f32 %v215, %v298
    %300 = vmatmul.f32.gmra.mxu0 %v147
    %v301 = vpop.f32.mrf.mxu0
    %v302 = vadd.f32 %v215, %v301
    %303 = vdwg.mxu0
    %304 = vmatpush.msra.mxu0 %v210
    %305 = vmatpush.msra.mxu0 %v206
    %306 = vmatpush.msra.mxu0 %v202
    %307 = vmatpush.msra.mxu0 %v198
    %308 = vmatpush.msra.mxu0 %v194
    %309 = vmatpush.msra.mxu0 %v190
    %310 = vmatpush.msra.mxu0 %v186
    %311 = vmatpush.msra.mxu0 %v182
    %312 = vmatpush.msra.mxu0 %v178
    %313 = vmatpush.msra.mxu0 %v174
    %314 = vmatpush.msra.mxu0 %v170
    %315 = vmatpush.msra.mxu0 %v166
    %316 = vmatpush.msra.mxu0 %v162
    %317 = vmatpush.msra.mxu0 %v158
    %318 = vmatpush.msra.mxu0 %v154
    %319 = vmatpush.msra.mxu0 %v150
    %320 = vmatmul.f32.gmra.mxu0 %v140
    %v321 = vpop.f32.mrf.mxu0
    %v322 = vadd.f32 %v216, %v321
    %323 = vmatmul.f32.gmra.mxu0 %v141
    %v324 = vpop.f32.mrf.mxu0
    %v325 = vadd.f32 %v216, %v324
    %326 = vmatmul.f32.gmra.mxu0 %v142
    %v327 = vpop.f32.mrf.mxu0
    %v328 = vadd.f32 %v216, %v327
    %329 = vmatmul.f32.gmra.mxu0 %v143
    %v330 = vpop.f32.mrf.mxu0
    %v331 = vadd.f32 %v216, %v330
    %332 = vmatmul.f32.gmra.mxu0 %v144
    %v333 = vpop.f32.mrf.mxu0
    %v334 = vadd.f32 %v216, %v333
    %335 = vmatmul.f32.gmra.mxu0 %v145
    %v336 = vpop.f32.mrf.mxu0
    %v337 = vadd.f32 %v216, %v336
    %338 = vmatmul.f32.gmra.mxu0 %v146
    %v339 = vpop.f32.mrf.mxu0
    %v340 = vadd.f32 %v216, %v339
    %341 = vmatmul.f32.gmra.mxu0 %v147
    %v342 = vpop.f32.mrf.mxu0
    %v343 = vadd.f32 %v216, %v342
    %344 = vdwg.mxu0
    %345 = vmatpush.msra.mxu0 %v211
    %346 = vmatpush.msra.mxu0 %v207
    %347 = vmatpush.msra.mxu0 %v203
    %348 = vmatpush.msra.mxu0 %v199
    %349 = vmatpush.msra.mxu0 %v195
    %350 = vmatpush.msra.mxu0 %v191
    %351 = vmatpush.msra.mxu0 %v187
    %352 = vmatpush.msra.mxu0 %v183
    %353 = vmatpush.msra.mxu0 %v179
    %354 = vmatpush.msra.mxu0 %v175
    %355 = vmatpush.msra.mxu0 %v171
    %356 = vmatpush.msra.mxu0 %v167
    %357 = vmatpush.msra.mxu0 %v163
    %358 = vmatpush.msra.mxu0 %v159
    %359 = vmatpush.msra.mxu0 %v155
    %360 = vmatpush.msra.mxu0 %v151
    %361 = vmatmul.f32.gmra.mxu0 %v140
    %v362 = vpop.f32.mrf.mxu0
    %v363 = vadd.f32 %v217, %v362
    %364 = vmatmul.f32.gmra.mxu0 %v141
    %v365 = vpop.f32.mrf.mxu0
    %v366 = vadd.f32 %v217, %v365
    %367 = vmatmul.f32.gmra.mxu0 %v142
    %v368 = vpop.f32.mrf.mxu0
    %v369 = vadd.f32 %v217, %v368
    %370 = vmatmul.f32.gmra.mxu0 %v143
    %v371 = vpop.f32.mrf.mxu0
    %v372 = vadd.f32 %v217, %v371
    %373 = vmatmul.f32.gmra.mxu0 %v144
    %v374 = vpop.f32.mrf.mxu0
    %v375 = vadd.f32 %v217, %v374
    %376 = vmatmul.f32.gmra.mxu0 %v145
    %v377 = vpop.f32.mrf.mxu0
    %v378 = vadd.f32 %v217, %v377
    %379 = vmatmul.f32.gmra.mxu0 %v146
    %v380 = vpop.f32.mrf.mxu0
    %v381 = vadd.f32 %v217, %v380
    %382 = vmatmul.f32.gmra.mxu0 %v147
    %v383 = vpop.f32.mrf.mxu0
    %v384 = vadd.f32 %v217, %v383
    %385 = vdwg.mxu0
    %386 = vst [vmem:[#allocation2] sm:$0xff] %v240
    %387 = vst [vmem:[#allocation2 + $0x8] sm:$0xff] %v281
    %388 = vst [vmem:[#allocation2 + $0x10] sm:$0xff] %v322
    %389 = vst [vmem:[#allocation2 + $0x18] sm:$0xff] %v363
    %390 = vst [vmem:[#allocation2 + $0x20] sm:$0xff] %v243
    %391 = vst [vmem:[#allocation2 + $0x28] sm:$0xff] %v284
    %392 = vst [vmem:[#allocation2 + $0x30] sm:$0xff] %v325
    %393 = vst [vmem:[#allocation2 + $0x38] sm:$0xff] %v366
    %394 = vst [vmem:[#allocation2 + $0x40] sm:$0xff] %v246
    %395 = vst [vmem:[#allocation2 + $0x48] sm:$0xff] %v287
    %396 = vst [vmem:[#allocation2 + $0x50] sm:$0xff] %v328
    %397 = vst [vmem:[#allocation2 + $0x58] sm:$0xff] %v369
    %398 = vst [vmem:[#allocation2 + $0x60] sm:$0xff] %v249
    %399 = vst [vmem:[#allocation2 + $0x68] sm:$0xff] %v290
    %400 = vst [vmem:[#allocation2 + $0x70] sm:$0xff] %v331
    %401 = vst [vmem:[#allocation2 + $0x78] sm:$0xff] %v372
    %402 = vst [vmem:[#allocation2 + $0x80] sm:$0xff] %v252
    %403 = vst [vmem:[#allocation2 + $0x88] sm:$0xff] %v293
    %404 = vst [vmem:[#allocation2 + $0x90] sm:$0xff] %v334
    %405 = vst [vmem:[#allocation2 + $0x98] sm:$0xff] %v375
    %406 = vst [vmem:[#allocation2 + $0xa0] sm:$0xff] %v255
    %407 = vst [vmem:[#allocation2 + $0xa8] sm:$0xff] %v296
    %408 = vst [vmem:[#allocation2 + $0xb0] sm:$0xff] %v337
    %409 = vst [vmem:[#allocation2 + $0xb8] sm:$0xff] %v378
    %410 = vst [vmem:[#allocation2 + $0xc0] sm:$0xff] %v258
    %411 = vst [vmem:[#allocation2 + $0xc8] sm:$0xff] %v299
    %412 = vst [vmem:[#allocation2 + $0xd0] sm:$0xff] %v340
    %413 = vst [vmem:[#allocation2 + $0xd8] sm:$0xff] %v381
    %414 = vst [vmem:[#allocation2 + $0xe0] sm:$0xff] %v261
    %415 = vst [vmem:[#allocation2 + $0xe8] sm:$0xff] %v302
    %416 = vst [vmem:[#allocation2 + $0xf0] sm:$0xff] %v343
    %417 = vst [vmem:[#allocation2 + $0xf8] sm:$0xff] %v384
    %v418 = vld [vmem:[#allocation10] sm:$0xff]
    %v419 = vld [vmem:[#allocation10 + $0x8] sm:$0xff]
    %v420 = vld [vmem:[#allocation10 + $0x10] sm:$0xff]
    %v421 = vld [vmem:[#allocation10 + $0x18] sm:$0xff]
    %v422 = vld [vmem:[#allocation10 + $0x20] sm:$0xff]
    %v423 = vld [vmem:[#allocation10 + $0x28] sm:$0xff]
    %v424 = vld [vmem:[#allocation10 + $0x30] sm:$0xff]
    %v425 = vld [vmem:[#allocation10 + $0x38] sm:$0xff]
    %v426 = vld [vmem:[#allocation10 + $0x40] sm:$0xff]
    %v427 = vld [vmem:[#allocation10 + $0x48] sm:$0xff]
    %v428 = vld [vmem:[#allocation10 + $0x50] sm:$0xff]
    %v429 = vld [vmem:[#allocation10 + $0x58] sm:$0xff]
    %v430 = vld [vmem:[#allocation10 + $0x60] sm:$0xff]
    %v431 = vld [vmem:[#allocation10 + $0x68] sm:$0xff]
    %v432 = vld [vmem:[#allocation10 + $0x70] sm:$0xff]
    %v433 = vld [vmem:[#allocation10 + $0x78] sm:$0xff]
    %v434 = vld [vmem:[#allocation10 + $0x80] sm:$0xff]
    %v435 = vld [vmem:[#allocation10 + $0x88] sm:$0xff]
    %v436 = vld [vmem:[#allocation10 + $0x90] sm:$0xff]
    %v437 = vld [vmem:[#allocation10 + $0x98] sm:$0xff]
    %v438 = vld [vmem:[#allocation10 + $0xa0] sm:$0xff]
    %v439 = vld [vmem:[#allocation10 + $0xa8] sm:$0xff]
    %v440 = vld [vmem:[#allocation10 + $0xb0] sm:$0xff]
    %v441 = vld [vmem:[#allocation10 + $0xb8] sm:$0xff]
    %v442 = vld [vmem:[#allocation10 + $0xc0] sm:$0xff]
    %v443 = vld [vmem:[#allocation10 + $0xc8] sm:$0xff]
    %v444 = vld [vmem:[#allocation10 + $0xd0] sm:$0xff]
    %v445 = vld [vmem:[#allocation10 + $0xd8] sm:$0xff]
    %v446 = vld [vmem:[#allocation10 + $0xe0] sm:$0xff]
    %v447 = vld [vmem:[#allocation10 + $0xe8] sm:$0xff]
    %v448 = vld [vmem:[#allocation10 + $0xf0] sm:$0xff]
    %v449 = vld [vmem:[#allocation10 + $0xf8] sm:$0xff]
    %v450 = vld [vmem:[#allocation10 + $0x100] sm:$0xff]
    %v451 = vld [vmem:[#allocation10 + $0x108] sm:$0xff]
    %v452 = vld [vmem:[#allocation10 + $0x110] sm:$0xff]
    %v453 = vld [vmem:[#allocation10 + $0x118] sm:$0xff]
    %v454 = vld [vmem:[#allocation10 + $0x120] sm:$0xff]
    %v455 = vld [vmem:[#allocation10 + $0x128] sm:$0xff]
    %v456 = vld [vmem:[#allocation10 + $0x130] sm:$0xff]
    %v457 = vld [vmem:[#allocation10 + $0x138] sm:$0xff]
    %v458 = vld [vmem:[#allocation10 + $0x140] sm:$0xff]
    %v459 = vld [vmem:[#allocation10 + $0x148] sm:$0xff]
    %v460 = vld [vmem:[#allocation10 + $0x150] sm:$0xff]
    %v461 = vld [vmem:[#allocation10 + $0x158] sm:$0xff]
    %v462 = vld [vmem:[#allocation10 + $0x160] sm:$0xff]
    %v463 = vld [vmem:[#allocation10 + $0x168] sm:$0xff]
    %v464 = vld [vmem:[#allocation10 + $0x170] sm:$0xff]
    %v465 = vld [vmem:[#allocation10 + $0x178] sm:$0xff]
    %v466 = vld [vmem:[#allocation10 + $0x180] sm:$0xff]
    %v467 = vld [vmem:[#allocation10 + $0x188] sm:$0xff]
    %v468 = vld [vmem:[#allocation10 + $0x190] sm:$0xff]
    %v469 = vld [vmem:[#allocation10 + $0x198] sm:$0xff]
    %v470 = vld [vmem:[#allocation10 + $0x1a0] sm:$0xff]
    %v471 = vld [vmem:[#allocation10 + $0x1a8] sm:$0xff]
    %v472 = vld [vmem:[#allocation10 + $0x1b0] sm:$0xff]
    %v473 = vld [vmem:[#allocation10 + $0x1b8] sm:$0xff]
    %v474 = vld [vmem:[#allocation10 + $0x1c0] sm:$0xff]
    %v475 = vld [vmem:[#allocation10 + $0x1c8] sm:$0xff]
    %v476 = vld [vmem:[#allocation10 + $0x1d0] sm:$0xff]
    %v477 = vld [vmem:[#allocation10 + $0x1d8] sm:$0xff]
    %v478 = vld [vmem:[#allocation10 + $0x1e0] sm:$0xff]
    %v479 = vld [vmem:[#allocation10 + $0x1e8] sm:$0xff]
    %v480 = vld [vmem:[#allocation10 + $0x1f0] sm:$0xff]
    %v481 = vld [vmem:[#allocation10 + $0x1f8] sm:$0xff]
    %v482 = vld [vmem:[#allocation15] sm:$0xff]
    %s483 = scalar_lea.vmem [#allocation15], 16
    %v484 = vld [vmem:[%s483] sm:$0xff]
    %s485 = smul.u32 0, 4
    %s486 = smul.addr %s485, 8
    %s487 = scalar_lea.vmem [#allocation2], %s486
    %v488 = vld [vmem:[%s487] sm:$0xff]
    %v489 = vld [vmem:[%s487 + $0x8] sm:$0xff]
    %v490 = vld [vmem:[%s487 + $0x10] sm:$0xff]
    %v491 = vld [vmem:[%s487 + $0x18] sm:$0xff]
    %492 = vmatpush.msra.mxu0 %v478
    %493 = vmatpush.msra.mxu0 %v474
    %494 = vmatpush.msra.mxu0 %v470
    %495 = vmatpush.msra.mxu0 %v466
    %496 = vmatpush.msra.mxu0 %v462
    %497 = vmatpush.msra.mxu0 %v458
    %498 = vmatpush.msra.mxu0 %v454
    %499 = vmatpush.msra.mxu0 %v450
    %500 = vmatpush.msra.mxu0 %v446
    %501 = vmatpush.msra.mxu0 %v442
    %502 = vmatpush.msra.mxu0 %v438
    %503 = vmatpush.msra.mxu0 %v434
    %504 = vmatpush.msra.mxu0 %v430
    %505 = vmatpush.msra.mxu0 %v426
    %506 = vmatpush.msra.mxu0 %v422
    %507 = vmatpush.msra.mxu0 %v418
    %508 = vmatmul.f32.gmra.mxu0 %v482
    %v509 = vpop.f32.mrf.mxu0
    %v510 = vadd.f32 0.0, %v509
    %511 = vdwg.mxu0
    %512 = vmatpush.msra.mxu0 %v479
    %513 = vmatpush.msra.mxu0 %v475
    %514 = vmatpush.msra.mxu0 %v471
    %515 = vmatpush.msra.mxu0 %v467
    %516 = vmatpush.msra.mxu0 %v463
    %517 = vmatpush.msra.mxu0 %v459
    %518 = vmatpush.msra.mxu0 %v455
    %519 = vmatpush.msra.mxu0 %v451
    %520 = vmatpush.msra.mxu0 %v447
    %521 = vmatpush.msra.mxu0 %v443
    %522 = vmatpush.msra.mxu0 %v439
    %523 = vmatpush.msra.mxu0 %v435
    %524 = vmatpush.msra.mxu0 %v431
    %525 = vmatpush.msra.mxu0 %v427
    %526 = vmatpush.msra.mxu0 %v423
    %527 = vmatpush.msra.mxu0 %v419
    %528 = vmatmul.f32.gmra.mxu0 %v482
    %v529 = vpop.f32.mrf.mxu0
    %v530 = vadd.f32 0.0, %v529
    %531 = vdwg.mxu0
    %532 = vmatpush.msra.mxu0 %v480
    %533 = vmatpush.msra.mxu0 %v476
    %534 = vmatpush.msra.mxu0 %v472
    %535 = vmatpush.msra.mxu0 %v468
    %536 = vmatpush.msra.mxu0 %v464
    %537 = vmatpush.msra.mxu0 %v460
    %538 = vmatpush.msra.mxu0 %v456
    %539 = vmatpush.msra.mxu0 %v452
    %540 = vmatpush.msra.mxu0 %v448
    %541 = vmatpush.msra.mxu0 %v444
    %542 = vmatpush.msra.mxu0 %v440
    %543 = vmatpush.msra.mxu0 %v436
    %544 = vmatpush.msra.mxu0 %v432
    %545 = vmatpush.msra.mxu0 %v428
    %546 = vmatpush.msra.mxu0 %v424
    %547 = vmatpush.msra.mxu0 %v420
    %548 = vmatmul.f32.gmra.mxu0 %v482
    %v549 = vpop.f32.mrf.mxu0
    %v550 = vadd.f32 0.0, %v549
    %551 = vdwg.mxu0
    %552 = vmatpush.msra.mxu0 %v481
    %553 = vmatpush.msra.mxu0 %v477
    %554 = vmatpush.msra.mxu0 %v473
    %555 = vmatpush.msra.mxu0 %v469
    %556 = vmatpush.msra.mxu0 %v465
    %557 = vmatpush.msra.mxu0 %v461
    %558 = vmatpush.msra.mxu0 %v457
    %559 = vmatpush.msra.mxu0 %v453
    %560 = vmatpush.msra.mxu0 %v449
    %561 = vmatpush.msra.mxu0 %v445
    %562 = vmatpush.msra.mxu0 %v441
    %563 = vmatpush.msra.mxu0 %v437
    %564 = vmatpush.msra.mxu0 %v433
    %565 = vmatpush.msra.mxu0 %v429
    %566 = vmatpush.msra.mxu0 %v425
    %567 = vmatpush.msra.mxu0 %v421
    %568 = vmatmul.f32.gmra.mxu0 %v482
    %v569 = vpop.f32.mrf.mxu0
    %v570 = vadd.f32 0.0, %v569
    %571 = vdwg.mxu0
    %v572 = vadd.f32 %v488, %v510
    %v573 = vadd.f32 %v489, %v530
    %v574 = vadd.f32 %v490, %v550
    %v575 = vadd.f32 %v491, %v570
    %v576 = vxor.u32 %v572, 2147483648
    %v577 = vxor.u32 %v573, 2147483648
    %v578 = vxor.u32 %v575, 2147483648
    %v579 = vmul.f32 %v576, 1.442695
    %v580 = vpow.pop %v579
    %v581 = vmul.f32 %v577, 1.442695
    %v582 = vpow.pop %v581
    %v583 = vmul.f32 %v578, 1.442695
    %v584 = vpow.pop %v583
    %v585 = vadd.f32 %v580, 1.0
    %v586 = vadd.f32 %v582, 1.0
    %v587 = vadd.f32 %v584, 1.0
    %v588 = vrcp.pop %v585
    %v589 = vmul.f32 %v585, %v588
    %v590 = vsub.f32 1.0, %v589
    %v591 = vmul.f32 %v588, %v590
    %v592 = vadd.f32 %v588, %v591
    %vm593 = vweird.f32 %v585
    %vm594 = vweird.f32 %v588
    %vm595 = vmor %vm593, %vm594
    %v596 = vsel %vm595, %v588, %v592
    %v597 = vand.u32 2147483647, %v585
    %vm598 = vcmp.eq.f32.partialorder %v597, 8.507059e+37
    %v599 = vand.u32 %v585, 2147483648
    %v600 = vor.u32 1.1754944e-38, %v599
    %v601 = vsel %vm598, %v600, %v596
    %v602 = vmul.f32 1.0, %v601
    %v603 = vrcp.pop %v586
    %v604 = vmul.f32 %v586, %v603
    %v605 = vsub.f32 1.0, %v604
    %v606 = vmul.f32 %v603, %v605
    %v607 = vadd.f32 %v603, %v606
    %vm608 = vweird.f32 %v586
    %vm609 = vweird.f32 %v603
    %vm610 = vmor %vm608, %vm609
    %v611 = vsel %vm610, %v603, %v607
    %v612 = vand.u32 2147483647, %v586
    %vm613 = vcmp.eq.f32.partialorder %v612, 8.507059e+37
    %v614 = vand.u32 %v586, 2147483648
    %v615 = vor.u32 1.1754944e-38, %v614
    %v616 = vsel %vm613, %v615, %v611
    %v617 = vmul.f32 1.0, %v616
    %v618 = vrcp.pop %v587
    %v619 = vmul.f32 %v587, %v618
    %v620 = vsub.f32 1.0, %v619
    %v621 = vmul.f32 %v618, %v620
    %v622 = vadd.f32 %v618, %v621
    %vm623 = vweird.f32 %v587
    %vm624 = vweird.f32 %v618
    %vm625 = vmor %vm623, %vm624
    %v626 = vsel %vm625, %v618, %v622
    %v627 = vand.u32 2147483647, %v587
    %vm628 = vcmp.eq.f32.partialorder %v627, 8.507059e+37
    %v629 = vand.u32 %v587, 2147483648
    %v630 = vor.u32 1.1754944e-38, %v629
    %v631 = vsel %vm628, %v630, %v626
    %v632 = vmul.f32 1.0, %v631
    %v633 = vtanh.pop %v574
    %v634 = vmul.f32 %v617, %v484
    %v635 = vmul.f32 %v602, %v633
    %v636 = vadd.f32 %v634, %v635
    %v637 = vtanh.pop %v636
    %v638 = vmul.f32 %v632, %v637
    %639 = vst [vmem:[#allocation3] sm:$0xff] %v638
    %s640 = smul.u32 1, 4
    %s641 = smul.addr %s640, 8
    %s642 = scalar_lea.vmem [#allocation2], %s641
    %v643 = vld [vmem:[%s642] sm:$0xff]
    %v644 = vld [vmem:[%s642 + $0x8] sm:$0xff]
    %v645 = vld [vmem:[%s642 + $0x10] sm:$0xff]
    %v646 = vld [vmem:[%s642 + $0x18] sm:$0xff]
    %647 = vmatpush.msra.mxu0 %v478
    %648 = vmatpush.msra.mxu0 %v474
    %649 = vmatpush.msra.mxu0 %v470
    %650 = vmatpush.msra.mxu0 %v466
    %651 = vmatpush.msra.mxu0 %v462
    %652 = vmatpush.msra.mxu0 %v458
    %653 = vmatpush.msra.mxu0 %v454
    %654 = vmatpush.msra.mxu0 %v450
    %655 = vmatpush.msra.mxu0 %v446
    %656 = vmatpush.msra.mxu0 %v442
    %657 = vmatpush.msra.mxu0 %v438
    %658 = vmatpush.msra.mxu0 %v434
    %659 = vmatpush.msra.mxu0 %v430
    %660 = vmatpush.msra.mxu0 %v426
    %661 = vmatpush.msra.mxu0 %v422
    %662 = vmatpush.msra.mxu0 %v418
    %663 = vmatmul.f32.gmra.mxu0 %v638
    %v664 = vpop.f32.mrf.mxu0
    %v665 = vadd.f32 0.0, %v664
    %666 = vdwg.mxu0
    %667 = vmatpush.msra.mxu0 %v479
    %668 = vmatpush.msra.mxu0 %v475
    %669 = vmatpush.msra.mxu0 %v471
    %670 = vmatpush.msra.mxu0 %v467
    %671 = vmatpush.msra.mxu0 %v463
    %672 = vmatpush.msra.mxu0 %v459
    %673 = vmatpush.msra.mxu0 %v455
    %674 = vmatpush.msra.mxu0 %v451
    %675 = vmatpush.msra.mxu0 %v447
    %676 = vmatpush.msra.mxu0 %v443
    %677 = vmatpush.msra.mxu0 %v439
    %678 = vmatpush.msra.mxu0 %v435
    %679 = vmatpush.msra.mxu0 %v431
    %680 = vmatpush.msra.mxu0 %v427
    %681 = vmatpush.msra.mxu0 %v423
    %682 = vmatpush.msra.mxu0 %v419
    %683 = vmatmul.f32.gmra.mxu0 %v638
    %v684 = vpop.f32.mrf.mxu0
    %v685 = vadd.f32 0.0, %v684
    %686 = vdwg.mxu0
    %687 = vmatpush.msra.mxu0 %v480
    %688 = vmatpush.msra.mxu0 %v476
    %689 = vmatpush.msra.mxu0 %v472
    %690 = vmatpush.msra.mxu0 %v468
    %691 = vmatpush.msra.mxu0 %v464
    %692 = vmatpush.msra.mxu0 %v460
    %693 = vmatpush.msra.mxu0 %v456
    %694 = vmatpush.msra.mxu0 %v452
    %695 = vmatpush.msra.mxu0 %v448
    %696 = vmatpush.msra.mxu0 %v444
    %697 = vmatpush.msra.mxu0 %v440
    %698 = vmatpush.msra.mxu0 %v436
    %699 = vmatpush.msra.mxu0 %v432
    %700 = vmatpush.msra.mxu0 %v428
    %701 = vmatpush.msra.mxu0 %v424
    %702 = vmatpush.msra.mxu0 %v420
    %703 = vmatmul.f32.gmra.mxu0 %v638
    %v704 = vpop.f32.mrf.mxu0
    %v705 = vadd.f32 0.0, %v704
    %706 = vdwg.mxu0
    %707 = vmatpush.msra.mxu0 %v481
    %708 = vmatpush.msra.mxu0 %v477
    %709 = vmatpush.msra.mxu0 %v473
    %710 = vmatpush.msra.mxu0 %v469
    %711 = vmatpush.msra.mxu0 %v465
    %712 = vmatpush.msra.mxu0 %v461
    %713 = vmatpush.msra.mxu0 %v457
    %714 = vmatpush.msra.mxu0 %v453
    %715 = vmatpush.msra.mxu0 %v449
    %716 = vmatpush.msra.mxu0 %v445
    %717 = vmatpush.msra.mxu0 %v441
    %718 = vmatpush.msra.mxu0 %v437
    %719 = vmatpush.msra.mxu0 %v433
    %720 = vmatpush.msra.mxu0 %v429
    %721 = vmatpush.msra.mxu0 %v425
    %722 = vmatpush.msra.mxu0 %v421
    %723 = vmatmul.f32.gmra.mxu0 %v638
    %v724 = vpop.f32.mrf.mxu0
    %v725 = vadd.f32 0.0, %v724
    %726 = vdwg.mxu0
    %v727 = vadd.f32 %v643, %v665
    %v728 = vadd.f32 %v644, %v685
    %v729 = vadd.f32 %v645, %v705
    %v730 = vadd.f32 %v646, %v725
    %v731 = vxor.u32 %v727, 2147483648
    %v732 = vxor.u32 %v728, 2147483648
    %v733 = vxor.u32 %v730, 2147483648
    %v734 = vmul.f32 %v731, 1.442695
    %v735 = vpow.pop %v734
    %v736 = vmul.f32 %v732, 1.442695
    %v737 = vpow.pop %v736
    %v738 = vmul.f32 %v733, 1.442695
    %v739 = vpow.pop %v738
    %v740 = vadd.f32 %v735, 1.0
    %v741 = vadd.f32 %v737, 1.0
    %v742 = vadd.f32 %v739, 1.0
    %v743 = vrcp.pop %v740
    %v744 = vmul.f32 %v740, %v743
    %v745 = vsub.f32 1.0, %v744
    %v746 = vmul.f32 %v743, %v745
    %v747 = vadd.f32 %v743, %v746
    %vm748 = vweird.f32 %v740
    %vm749 = vweird.f32 %v743
    %vm750 = vmor %vm748, %vm749
    %v751 = vsel %vm750, %v743, %v747
    %v752 = vand.u32 2147483647, %v740
    %vm753 = vcmp.eq.f32.partialorder %v752, 8.507059e+37
    %v754 = vand.u32 %v740, 2147483648
    %v755 = vor.u32 1.1754944e-38, %v754
    %v756 = vsel %vm753, %v755, %v751
    %v757 = vmul.f32 1.0, %v756
    %v758 = vrcp.pop %v741
    %v759 = vmul.f32 %v741, %v758
    %v760 = vsub.f32 1.0, %v759
    %v761 = vmul.f32 %v758, %v760
    %v762 = vadd.f32 %v758, %v761
    %vm763 = vweird.f32 %v741
    %vm764 = vweird.f32 %v758
    %vm765 = vmor %vm763, %vm764
    %v766 = vsel %vm765, %v758, %v762
    %v767 = vand.u32 2147483647, %v741
    %vm768 = vcmp.eq.f32.partialorder %v767, 8.507059e+37
    %v769 = vand.u32 %v741, 2147483648
    %v770 = vor.u32 1.1754944e-38, %v769
    %v771 = vsel %vm768, %v770, %v766
    %v772 = vmul.f32 1.0, %v771
    %v773 = vrcp.pop %v742
    %v774 = vmul.f32 %v742, %v773
    %v775 = vsub.f32 1.0, %v774
    %v776 = vmul.f32 %v773, %v775
    %v777 = vadd.f32 %v773, %v776
    %vm778 = vweird.f32 %v742
    %vm779 = vweird.f32 %v773
    %vm780 = vmor %vm778, %vm779
    %v781 = vsel %vm780, %v773, %v777
    %v782 = vand.u32 2147483647, %v742
    %vm783 = vcmp.eq.f32.partialorder %v782, 8.507059e+37
    %v784 = vand.u32 %v742, 2147483648
    %v785 = vor.u32 1.1754944e-38, %v784
    %v786 = vsel %vm783, %v785, %v781
    %v787 = vmul.f32 1.0, %v786
    %v788 = vtanh.pop %v729
    %v789 = vmul.f32 %v772, %v636
    %v790 = vmul.f32 %v757, %v788
    %v791 = vadd.f32 %v789, %v790
    %v792 = vtanh.pop %v791
    %v793 = vmul.f32 %v787, %v792
    %s794 = scalar_lea.vmem [#allocation3], 8
    %795 = vst [vmem:[%s794] sm:$0xff] %v793
    %s796 = smul.u32 2, 4
    %s797 = smul.addr %s796, 8
    %s798 = scalar_lea.vmem [#allocation2], %s797
    %v799 = vld [vmem:[%s798] sm:$0xff]
    %v800 = vld [vmem:[%s798 + $0x8] sm:$0xff]
    %v801 = vld [vmem:[%s798 + $0x10] sm:$0xff]
    %v802 = vld [vmem:[%s798 + $0x18] sm:$0xff]
    %803 = vmatpush.msra.mxu0 %v478
    %804 = vmatpush.msra.mxu0 %v474
    %805 = vmatpush.msra.mxu0 %v470
    %806 = vmatpush.msra.mxu0 %v466
    %807 = vmatpush.msra.mxu0 %v462
    %808 = vmatpush.msra.mxu0 %v458
    %809 = vmatpush.msra.mxu0 %v454
    %810 = vmatpush.msra.mxu0 %v450
    %811 = vmatpush.msra.mxu0 %v446
    %812 = vmatpush.msra.mxu0 %v442
    %813 = vmatpush.msra.mxu0 %v438
    %814 = vmatpush.msra.mxu0 %v434
    %815 = vmatpush.msra.mxu0 %v430
    %816 = vmatpush.msra.mxu0 %v426
    %817 = vmatpush.msra.mxu0 %v422
    %818 = vmatpush.msra.mxu0 %v418
    %819 = vmatmul.f32.gmra.mxu0 %v793
    %v820 = vpop.f32.mrf.mxu0
    %v821 = vadd.f32 0.0, %v820
    %822 = vdwg.mxu0
    %823 = vmatpush.msra.mxu0 %v479
    %824 = vmatpush.msra.mxu0 %v475
    %825 = vmatpush.msra.mxu0 %v471
    %826 = vmatpush.msra.mxu0 %v467
    %827 = vmatpush.msra.mxu0 %v463
    %828 = vmatpush.msra.mxu0 %v459
    %829 = vmatpush.msra.mxu0 %v455
    %830 = vmatpush.msra.mxu0 %v451
    %831 = vmatpush.msra.mxu0 %v447
    %832 = vmatpush.msra.mxu0 %v443
    %833 = vmatpush.msra.mxu0 %v439
    %834 = vmatpush.msra.mxu0 %v435
    %835 = vmatpush.msra.mxu0 %v431
    %836 = vmatpush.msra.mxu0 %v427
    %837 = vmatpush.msra.mxu0 %v423
    %838 = vmatpush.msra.mxu0 %v419
    %839 = vmatmul.f32.gmra.mxu0 %v793
    %v840 = vpop.f32.mrf.mxu0
    %v841 = vadd.f32 0.0, %v840
    %842 = vdwg.mxu0
    %843 = vmatpush.msra.mxu0 %v480
    %844 = vmatpush.msra.mxu0 %v476
    %845 = vmatpush.msra.mxu0 %v472
    %846 = vmatpush.msra.mxu0 %v468
    %847 = vmatpush.msra.mxu0 %v464
    %848 = vmatpush.msra.mxu0 %v460
    %849 = vmatpush.msra.mxu0 %v456
    %850 = vmatpush.msra.mxu0 %v452
    %851 = vmatpush.msra.mxu0 %v448
    %852 = vmatpush.msra.mxu0 %v444
    %853 = vmatpush.msra.mxu0 %v440
    %854 = vmatpush.msra.mxu0 %v436
    %855 = vmatpush.msra.mxu0 %v432
    %856 = vmatpush.msra.mxu0 %v428
    %857 = vmatpush.msra.mxu0 %v424
    %858 = vmatpush.msra.mxu0 %v420
    %859 = vmatmul.f32.gmra.mxu0 %v793
    %v860 = vpop.f32.mrf.mxu0
    %v861 = vadd.f32 0.0, %v860
    %862 = vdwg.mxu0
    %863 = vmatpush.msra.mxu0 %v481
    %864 = vmatpush.msra.mxu0 %v477
    %865 = vmatpush.msra.mxu0 %v473
    %866 = vmatpush.msra.mxu0 %v469
    %867 = vmatpush.msra.mxu0 %v465
    %868 = vmatpush.msra.mxu0 %v461
    %869 = vmatpush.msra.mxu0 %v457
    %870 = vmatpush.msra.mxu0 %v453
    %871 = vmatpush.msra.mxu0 %v449
    %872 = vmatpush.msra.mxu0 %v445
    %873 = vmatpush.msra.mxu0 %v441
    %874 = vmatpush.msra.mxu0 %v437
    %875 = vmatpush.msra.mxu0 %v433
    %876 = vmatpush.msra.mxu0 %v429
    %877 = vmatpush.msra.mxu0 %v425
    %878 = vmatpush.msra.mxu0 %v421
    %879 = vmatmul.f32.gmra.mxu0 %v793
    %v880 = vpop.f32.mrf.mxu0
    %v881 = vadd.f32 0.0, %v880
    %882 = vdwg.mxu0
    %v883 = vadd.f32 %v799, %v821
    %v884 = vadd.f32 %v800, %v841
    %v885 = vadd.f32 %v801, %v861
    %v886 = vadd.f32 %v802, %v881
    %v887 = vxor.u32 %v883, 2147483648
    %v888 = vxor.u32 %v884, 2147483648
    %v889 = vxor.u32 %v886, 2147483648
    %v890 = vmul.f32 %v887, 1.442695
    %v891 = vpow.pop %v890
    %v892 = vmul.f32 %v888, 1.442695
    %v893 = vpow.pop %v892
    %v894 = vmul.f32 %v889, 1.442695
    %v895 = vpow.pop %v894
    %v896 = vadd.f32 %v891, 1.0
    %v897 = vadd.f32 %v893, 1.0
    %v898 = vadd.f32 %v895, 1.0
    %v899 = vrcp.pop %v896
    %v900 = vmul.f32 %v896, %v899
    %v901 = vsub.f32 1.0, %v900
    %v902 = vmul.f32 %v899, %v901
    %v903 = vadd.f32 %v899, %v902
    %vm904 = vweird.f32 %v896
    %vm905 = vweird.f32 %v899
    %vm906 = vmor %vm904, %vm905
    %v907 = vsel %vm906, %v899, %v903
    %v908 = vand.u32 2147483647, %v896
    %vm909 = vcmp.eq.f32.partialorder %v908, 8.507059e+37
    %v910 = vand.u32 %v896, 2147483648
    %v911 = vor.u32 1.1754944e-38, %v910
    %v912 = vsel %vm909, %v911, %v907
    %v913 = vmul.f32 1.0, %v912
    %v914 = vrcp.pop %v897
    %v915 = vmul.f32 %v897, %v914
    %v916 = vsub.f32 1.0, %v915
    %v917 = vmul.f32 %v914, %v916
    %v918 = vadd.f32 %v914, %v917
    %vm919 = vweird.f32 %v897
    %vm920 = vweird.f32 %v914
    %vm921 = vmor %vm919, %vm920
    %v922 = vsel %vm921, %v914, %v918
    %v923 = vand.u32 2147483647, %v897
    %vm924 = vcmp.eq.f32.partialorder %v923, 8.507059e+37
    %v925 = vand.u32 %v897, 2147483648
    %v926 = vor.u32 1.1754944e-38, %v925
    %v927 = vsel %vm924, %v926, %v922
    %v928 = vmul.f32 1.0, %v927
    %v929 = vrcp.pop %v898
    %v930 = vmul.f32 %v898, %v929
    %v931 = vsub.f32 1.0, %v930
    %v932 = vmul.f32 %v929, %v931
    %v933 = vadd.f32 %v929, %v932
    %vm934 = vweird.f32 %v898
    %vm935 = vweird.f32 %v929
    %vm936 = vmor %vm934, %vm935
    %v937 = vsel %vm936, %v929, %v933
    %v938 = vand.u32 2147483647, %v898
    %vm939 = vcmp.eq.f32.partialorder %v938, 8.507059e+37
    %v940 = vand.u32 %v898, 2147483648
    %v941 = vor.u32 1.1754944e-38, %v940
    %v942 = vsel %vm939, %v941, %v937
    %v943 = vmul.f32 1.0, %v942
    %v944 = vtanh.pop %v885
    %v945 = vmul.f32 %v928, %v791
    %v946 = vmul.f32 %v913, %v944
    %v947 = vadd.f32 %v945, %v946
    %v948 = vtanh.pop %v947
    %v949 = vmul.f32 %v943, %v948
    %s950 = scalar_lea.vmem [#allocation3], 16
    %951 = vst [vmem:[%s950] sm:$0xff] %v949
    %s952 = smul.u32 3, 4
    %s953 = smul.addr %s952, 8
    %s954 = scalar_lea.vmem [#allocation2], %s953
    %v955 = vld [vmem:[%s954] sm:$0xff]
    %v956 = vld [vmem:[%s954 + $0x8] sm:$0xff]
    %v957 = vld [vmem:[%s954 + $0x10] sm:$0xff]
    %v958 = vld [vmem:[%s954 + $0x18] sm:$0xff]
    %959 = vmatpush.msra.mxu0 %v478
    %960 = vmatpush.msra.mxu0 %v474
    %961 = vmatpush.msra.mxu0 %v470
    %962 = vmatpush.msra.mxu0 %v466
    %963 = vmatpush.msra.mxu0 %v462
    %964 = vmatpush.msra.mxu0 %v458
    %965 = vmatpush.msra.mxu0 %v454
    %966 = vmatpush.msra.mxu0 %v450
    %967 = vmatpush.msra.mxu0 %v446
    %968 = vmatpush.msra.mxu0 %v442
    %969 = vmatpush.msra.mxu0 %v438
    %970 = vmatpush.msra.mxu0 %v434
    %971 = vmatpush.msra.mxu0 %v430
    %972 = vmatpush.msra.mxu0 %v426
    %973 = vmatpush.msra.mxu0 %v422
    %974 = vmatpush.msra.mxu0 %v418
    %975 = vmatmul.f32.gmra.mxu0 %v949
    %v976 = vpop.f32.mrf.mxu0
    %v977 = vadd.f32 0.0, %v976
    %978 = vdwg.mxu0
    %979 = vmatpush.msra.mxu0 %v479
    %980 = vmatpush.msra.mxu0 %v475
    %981 = vmatpush.msra.mxu0 %v471
    %982 = vmatpush.msra.mxu0 %v467
    %983 = vmatpush.msra.mxu0 %v463
    %984 = vmatpush.msra.mxu0 %v459
    %985 = vmatpush.msra.mxu0 %v455
    %986 = vmatpush.msra.mxu0 %v451
    %987 = vmatpush.msra.mxu0 %v447
    %988 = vmatpush.msra.mxu0 %v443
    %989 = vmatpush.msra.mxu0 %v439
    %990 = vmatpush.msra.mxu0 %v435
    %991 = vmatpush.msra.mxu0 %v431
    %992 = vmatpush.msra.mxu0 %v427
    %993 = vmatpush.msra.mxu0 %v423
    %994 = vmatpush.msra.mxu0 %v419
    %995 = vmatmul.f32.gmra.mxu0 %v949
    %v996 = vpop.f32.mrf.mxu0
    %v997 = vadd.f32 0.0, %v996
    %998 = vdwg.mxu0
    %999 = vmatpush.msra.mxu0 %v480
    %1000 = vmatpush.msra.mxu0 %v476
    %1001 = vmatpush.msra.mxu0 %v472
    %1002 = vmatpush.msra.mxu0 %v468
    %1003 = vmatpush.msra.mxu0 %v464
    %1004 = vmatpush.msra.mxu0 %v460
    %1005 = vmatpush.msra.mxu0 %v456
    %1006 = vmatpush.msra.mxu0 %v452
    %1007 = vmatpush.msra.mxu0 %v448
    %1008 = vmatpush.msra.mxu0 %v444
    %1009 = vmatpush.msra.mxu0 %v440
    %1010 = vmatpush.msra.mxu0 %v436
    %1011 = vmatpush.msra.mxu0 %v432
    %1012 = vmatpush.msra.mxu0 %v428
    %1013 = vmatpush.msra.mxu0 %v424
    %1014 = vmatpush.msra.mxu0 %v420
    %1015 = vmatmul.f32.gmra.mxu0 %v949
    %v1016 = vpop.f32.mrf.mxu0
    %v1017 = vadd.f32 0.0, %v1016
    %1018 = vdwg.mxu0
    %1019 = vmatpush.msra.mxu0 %v481
    %1020 = vmatpush.msra.mxu0 %v477
    %1021 = vmatpush.msra.mxu0 %v473
    %1022 = vmatpush.msra.mxu0 %v469
    %1023 = vmatpush.msra.mxu0 %v465
    %1024 = vmatpush.msra.mxu0 %v461
    %1025 = vmatpush.msra.mxu0 %v457
    %1026 = vmatpush.msra.mxu0 %v453
    %1027 = vmatpush.msra.mxu0 %v449
    %1028 = vmatpush.msra.mxu0 %v445
    %1029 = vmatpush.msra.mxu0 %v441
    %1030 = vmatpush.msra.mxu0 %v437
    %1031 = vmatpush.msra.mxu0 %v433
    %1032 = vmatpush.msra.mxu0 %v429
    %1033 = vmatpush.msra.mxu0 %v425
    %1034 = vmatpush.msra.mxu0 %v421
    %1035 = vmatmul.f32.gmra.mxu0 %v949
    %v1036 = vpop.f32.mrf.mxu0
    %v1037 = vadd.f32 0.0, %v1036
    %1038 = vdwg.mxu0
    %v1039 = vadd.f32 %v955, %v977
    %v1040 = vadd.f32 %v956, %v997
    %v1041 = vadd.f32 %v957, %v1017
    %v1042 = vadd.f32 %v958, %v1037
    %v1043 = vxor.u32 %v1039, 2147483648
    %v1044 = vxor.u32 %v1040, 2147483648
    %v1045 = vxor.u32 %v1042, 2147483648
    %v1046 = vmul.f32 %v1043, 1.442695
    %v1047 = vpow.pop %v1046
    %v1048 = vmul.f32 %v1044, 1.442695
    %v1049 = vpow.pop %v1048
    %v1050 = vmul.f32 %v1045, 1.442695
    %v1051 = vpow.pop %v1050
    %v1052 = vadd.f32 %v1047, 1.0
    %v1053 = vadd.f32 %v1049, 1.0
    %v1054 = vadd.f32 %v1051, 1.0
    %v1055 = vrcp.pop %v1052
    %v1056 = vmul.f32 %v1052, %v1055
    %v1057 = vsub.f32 1.0, %v1056
    %v1058 = vmul.f32 %v1055, %v1057
    %v1059 = vadd.f32 %v1055, %v1058
    %vm1060 = vweird.f32 %v1052
    %vm1061 = vweird.f32 %v1055
    %vm1062 = vmor %vm1060, %vm1061
    %v1063 = vsel %vm1062, %v1055, %v1059
    %v1064 = vand.u32 2147483647, %v1052
    %vm1065 = vcmp.eq.f32.partialorder %v1064, 8.507059e+37
    %v1066 = vand.u32 %v1052, 2147483648
    %v1067 = vor.u32 1.1754944e-38, %v1066
    %v1068 = vsel %vm1065, %v1067, %v1063
    %v1069 = vmul.f32 1.0, %v1068
    %v1070 = vrcp.pop %v1053
    %v1071 = vmul.f32 %v1053, %v1070
    %v1072 = vsub.f32 1.0, %v1071
    %v1073 = vmul.f32 %v1070, %v1072
    %v1074 = vadd.f32 %v1070, %v1073
    %vm1075 = vweird.f32 %v1053
    %vm1076 = vweird.f32 %v1070
    %vm1077 = vmor %vm1075, %vm1076
    %v1078 = vsel %vm1077, %v1070, %v1074
    %v1079 = vand.u32 2147483647, %v1053
    %vm1080 = vcmp.eq.f32.partialorder %v1079, 8.507059e+37
    %v1081 = vand.u32 %v1053, 2147483648
    %v1082 = vor.u32 1.1754944e-38, %v1081
    %v1083 = vsel %vm1080, %v1082, %v1078
    %v1084 = vmul.f32 1.0, %v1083
    %v1085 = vrcp.pop %v1054
    %v1086 = vmul.f32 %v1054, %v1085
    %v1087 = vsub.f32 1.0, %v1086
    %v1088 = vmul.f32 %v1085, %v1087
    %v1089 = vadd.f32 %v1085, %v1088
    %vm1090 = vweird.f32 %v1054
    %vm1091 = vweird.f32 %v1085
    %vm1092 = vmor %vm1090, %vm1091
    %v1093 = vsel %vm1092, %v1085, %v1089
    %v1094 = vand.u32 2147483647, %v1054
    %vm1095 = vcmp.eq.f32.partialorder %v1094, 8.507059e+37
    %v1096 = vand.u32 %v1054, 2147483648
    %v1097 = vor.u32 1.1754944e-38, %v1096
    %v1098 = vsel %vm1095, %v1097, %v1093
    %v1099 = vmul.f32 1.0, %v1098
    %v1100 = vtanh.pop %v1041
    %v1101 = vmul.f32 %v1084, %v947
    %v1102 = vmul.f32 %v1069, %v1100
    %v1103 = vadd.f32 %v1101, %v1102
    %v1104 = vtanh.pop %v1103
    %v1105 = vmul.f32 %v1099, %v1104
    %s1106 = scalar_lea.vmem [#allocation3], 24
    %1107 = vst [vmem:[%s1106] sm:$0xff] %v1105
    %s1108 = smul.u32 4, 4
    %s1109 = smul.addr %s1108, 8
    %s1110 = scalar_lea.vmem [#allocation2], %s1109
    %v1111 = vld [vmem:[%s1110] sm:$0xff]
    %v1112 = vld [vmem:[%s1110 + $0x8] sm:$0xff]
    %v1113 = vld [vmem:[%s1110 + $0x10] sm:$0xff]
    %v1114 = vld [vmem:[%s1110 + $0x18] sm:$0xff]
    %1115 = vmatpush.msra.mxu0 %v478
    %1116 = vmatpush.msra.mxu0 %v474
    %1117 = vmatpush.msra.mxu0 %v470
    %1118 = vmatpush.msra.mxu0 %v466
    %1119 = vmatpush.msra.mxu0 %v462
    %1120 = vmatpush.msra.mxu0 %v458
    %1121 = vmatpush.msra.mxu0 %v454
    %1122 = vmatpush.msra.mxu0 %v450
    %1123 = vmatpush.msra.mxu0 %v446
    %1124 = vmatpush.msra.mxu0 %v442
    %1125 = vmatpush.msra.mxu0 %v438
    %1126 = vmatpush.msra.mxu0 %v434
    %1127 = vmatpush.msra.mxu0 %v430
    %1128 = vmatpush.msra.mxu0 %v426
    %1129 = vmatpush.msra.mxu0 %v422
    %1130 = vmatpush.msra.mxu0 %v418
    %1131 = vmatmul.f32.gmra.mxu0 %v1105
    %v1132 = vpop.f32.mrf.mxu0
    %v1133 = vadd.f32 0.0, %v1132
    %1134 = vdwg.mxu0
    %1135 = vmatpush.msra.mxu0 %v479
    %1136 = vmatpush.msra.mxu0 %v475
    %1137 = vmatpush.msra.mxu0 %v471
    %1138 = vmatpush.msra.mxu0 %v467
    %1139 = vmatpush.msra.mxu0 %v463
    %1140 = vmatpush.msra.mxu0 %v459
    %1141 = vmatpush.msra.mxu0 %v455
    %1142 = vmatpush.msra.mxu0 %v451
    %1143 = vmatpush.msra.mxu0 %v447
    %1144 = vmatpush.msra.mxu0 %v443
    %1145 = vmatpush.msra.mxu0 %v439
    %1146 = vmatpush.msra.mxu0 %v435
    %1147 = vmatpush.msra.mxu0 %v431
    %1148 = vmatpush.msra.mxu0 %v427
    %1149 = vmatpush.msra.mxu0 %v423
    %1150 = vmatpush.msra.mxu0 %v419
    %1151 = vmatmul.f32.gmra.mxu0 %v1105
    %v1152 = vpop.f32.mrf.mxu0
    %v1153 = vadd.f32 0.0, %v1152
    %1154 = vdwg.mxu0
    %1155 = vmatpush.msra.mxu0 %v480
    %1156 = vmatpush.msra.mxu0 %v476
    %1157 = vmatpush.msra.mxu0 %v472
    %1158 = vmatpush.msra.mxu0 %v468
    %1159 = vmatpush.msra.mxu0 %v464
    %1160 = vmatpush.msra.mxu0 %v460
    %1161 = vmatpush.msra.mxu0 %v456
    %1162 = vmatpush.msra.mxu0 %v452
    %1163 = vmatpush.msra.mxu0 %v448
    %1164 = vmatpush.msra.mxu0 %v444
    %1165 = vmatpush.msra.mxu0 %v440
    %1166 = vmatpush.msra.mxu0 %v436
    %1167 = vmatpush.msra.mxu0 %v432
    %1168 = vmatpush.msra.mxu0 %v428
    %1169 = vmatpush.msra.mxu0 %v424
    %1170 = vmatpush.msra.mxu0 %v420
    %1171 = vmatmul.f32.gmra.mxu0 %v1105
    %v1172 = vpop.f32.mrf.mxu0
    %v1173 = vadd.f32 0.0, %v1172
    %1174 = vdwg.mxu0
    %1175 = vmatpush.msra.mxu0 %v481
    %1176 = vmatpush.msra.mxu0 %v477
    %1177 = vmatpush.msra.mxu0 %v473
    %1178 = vmatpush.msra.mxu0 %v469
    %1179 = vmatpush.msra.mxu0 %v465
    %1180 = vmatpush.msra.mxu0 %v461
    %1181 = vmatpush.msra.mxu0 %v457
    %1182 = vmatpush.msra.mxu0 %v453
    %1183 = vmatpush.msra.mxu0 %v449
    %1184 = vmatpush.msra.mxu0 %v445
    %1185 = vmatpush.msra.mxu0 %v441
    %1186 = vmatpush.msra.mxu0 %v437
    %1187 = vmatpush.msra.mxu0 %v433
    %1188 = vmatpush.msra.mxu0 %v429
    %1189 = vmatpush.msra.mxu0 %v425
    %1190 = vmatpush.msra.mxu0 %v421
    %1191 = vmatmul.f32.gmra.mxu0 %v1105
    %v1192 = vpop.f32.mrf.mxu0
    %v1193 = vadd.f32 0.0, %v1192
    %1194 = vdwg.mxu0
    %v1195 = vadd.f32 %v1111, %v1133
    %v1196 = vadd.f32 %v1112, %v1153
    %v1197 = vadd.f32 %v1113, %v1173
    %v1198 = vadd.f32 %v1114, %v1193
    %v1199 = vxor.u32 %v1195, 2147483648
    %v1200 = vxor.u32 %v1196, 2147483648
    %v1201 = vxor.u32 %v1198, 2147483648
    %v1202 = vmul.f32 %v1199, 1.442695
    %v1203 = vpow.pop %v1202
    %v1204 = vmul.f32 %v1200, 1.442695
    %v1205 = vpow.pop %v1204
    %v1206 = vmul.f32 %v1201, 1.442695
    %v1207 = vpow.pop %v1206
    %v1208 = vadd.f32 %v1203, 1.0
    %v1209 = vadd.f32 %v1205, 1.0
    %v1210 = vadd.f32 %v1207, 1.0
    %v1211 = vrcp.pop %v1208
    %v1212 = vmul.f32 %v1208, %v1211
    %v1213 = vsub.f32 1.0, %v1212
    %v1214 = vmul.f32 %v1211, %v1213
    %v1215 = vadd.f32 %v1211, %v1214
    %vm1216 = vweird.f32 %v1208
    %vm1217 = vweird.f32 %v1211
    %vm1218 = vmor %vm1216, %vm1217
    %v1219 = vsel %vm1218, %v1211, %v1215
    %v1220 = vand.u32 2147483647, %v1208
    %vm1221 = vcmp.eq.f32.partialorder %v1220, 8.507059e+37
    %v1222 = vand.u32 %v1208, 2147483648
    %v1223 = vor.u32 1.1754944e-38, %v1222
    %v1224 = vsel %vm1221, %v1223, %v1219
    %v1225 = vmul.f32 1.0, %v1224
    %v1226 = vrcp.pop %v1209
    %v1227 = vmul.f32 %v1209, %v1226
    %v1228 = vsub.f32 1.0, %v1227
    %v1229 = vmul.f32 %v1226, %v1228
    %v1230 = vadd.f32 %v1226, %v1229
    %vm1231 = vweird.f32 %v1209
    %vm1232 = vweird.f32 %v1226
    %vm1233 = vmor %vm1231, %vm1232
    %v1234 = vsel %vm1233, %v1226, %v1230
    %v1235 = vand.u32 2147483647, %v1209
    %vm1236 = vcmp.eq.f32.partialorder %v1235, 8.507059e+37
    %v1237 = vand.u32 %v1209, 2147483648
    %v1238 = vor.u32 1.1754944e-38, %v1237
    %v1239 = vsel %vm1236, %v1238, %v1234
    %v1240 = vmul.f32 1.0, %v1239
    %v1241 = vrcp.pop %v1210
    %v1242 = vmul.f32 %v1210, %v1241
    %v1243 = vsub.f32 1.0, %v1242
    %v1244 = vmul.f32 %v1241, %v1243
    %v1245 = vadd.f32 %v1241, %v1244
    %vm1246 = vweird.f32 %v1210
    %vm1247 = vweird.f32 %v1241
    %vm1248 = vmor %vm1246, %vm1247
    %v1249 = vsel %vm1248, %v1241, %v1245
    %v1250 = vand.u32 2147483647, %v1210
    %vm1251 = vcmp.eq.f32.partialorder %v1250, 8.507059e+37
    %v1252 = vand.u32 %v1210, 2147483648
    %v1253 = vor.u32 1.1754944e-38, %v1252
    %v1254 = vsel %vm1251, %v1253, %v1249
    %v1255 = vmul.f32 1.0, %v1254
    %v1256 = vtanh.pop %v1197
    %v1257 = vmul.f32 %v1240, %v1103
    %v1258 = vmul.f32 %v1225, %v1256
    %v1259 = vadd.f32 %v1257, %v1258
    %v1260 = vtanh.pop %v1259
    %v1261 = vmul.f32 %v1255, %v1260
    %s1262 = scalar_lea.vmem [#allocation3], 32
    %1263 = vst [vmem:[%s1262] sm:$0xff] %v1261
    %s1264 = smul.u32 5, 4
    %s1265 = smul.addr %s1264, 8
    %s1266 = scalar_lea.vmem [#allocation2], %s1265
    %v1267 = vld [vmem:[%s1266] sm:$0xff]
    %v1268 = vld [vmem:[%s1266 + $0x8] sm:$0xff]
    %v1269 = vld [vmem:[%s1266 + $0x10] sm:$0xff]
    %v1270 = vld [vmem:[%s1266 + $0x18] sm:$0xff]
    %1271 = vmatpush.msra.mxu0 %v478
    %1272 = vmatpush.msra.mxu0 %v474
    %1273 = vmatpush.msra.mxu0 %v470
    %1274 = vmatpush.msra.mxu0 %v466
    %1275 = vmatpush.msra.mxu0 %v462
    %1276 = vmatpush.msra.mxu0 %v458
    %1277 = vmatpush.msra.mxu0 %v454
    %1278 = vmatpush.msra.mxu0 %v450
    %1279 = vmatpush.msra.mxu0 %v446
    %1280 = vmatpush.msra.mxu0 %v442
    %1281 = vmatpush.msra.mxu0 %v438
    %1282 = vmatpush.msra.mxu0 %v434
    %1283 = vmatpush.msra.mxu0 %v430
    %1284 = vmatpush.msra.mxu0 %v426
    %1285 = vmatpush.msra.mxu0 %v422
    %1286 = vmatpush.msra.mxu0 %v418
    %1287 = vmatmul.f32.gmra.mxu0 %v1261
    %v1288 = vpop.f32.mrf.mxu0
    %v1289 = vadd.f32 0.0, %v1288
    %1290 = vdwg.mxu0
    %1291 = vmatpush.msra.mxu0 %v479
    %1292 = vmatpush.msra.mxu0 %v475
    %1293 = vmatpush.msra.mxu0 %v471
    %1294 = vmatpush.msra.mxu0 %v467
    %1295 = vmatpush.msra.mxu0 %v463
    %1296 = vmatpush.msra.mxu0 %v459
    %1297 = vmatpush.msra.mxu0 %v455
    %1298 = vmatpush.msra.mxu0 %v451
    %1299 = vmatpush.msra.mxu0 %v447
    %1300 = vmatpush.msra.mxu0 %v443
    %1301 = vmatpush.msra.mxu0 %v439
    %1302 = vmatpush.msra.mxu0 %v435
    %1303 = vmatpush.msra.mxu0 %v431
    %1304 = vmatpush.msra.mxu0 %v427
    %1305 = vmatpush.msra.mxu0 %v423
    %1306 = vmatpush.msra.mxu0 %v419
    %1307 = vmatmul.f32.gmra.mxu0 %v1261
    %v1308 = vpop.f32.mrf.mxu0
    %v1309 = vadd.f32 0.0, %v1308
    %1310 = vdwg.mxu0
    %1311 = vmatpush.msra.mxu0 %v480
    %1312 = vmatpush.msra.mxu0 %v476
    %1313 = vmatpush.msra.mxu0 %v472
    %1314 = vmatpush.msra.mxu0 %v468
    %1315 = vmatpush.msra.mxu0 %v464
    %1316 = vmatpush.msra.mxu0 %v460
    %1317 = vmatpush.msra.mxu0 %v456
    %1318 = vmatpush.msra.mxu0 %v452
    %1319 = vmatpush.msra.mxu0 %v448
    %1320 = vmatpush.msra.mxu0 %v444
    %1321 = vmatpush.msra.mxu0 %v440
    %1322 = vmatpush.msra.mxu0 %v436
    %1323 = vmatpush.msra.mxu0 %v432
    %1324 = vmatpush.msra.mxu0 %v428
    %1325 = vmatpush.msra.mxu0 %v424
    %1326 = vmatpush.msra.mxu0 %v420
    %1327 = vmatmul.f32.gmra.mxu0 %v1261
    %v1328 = vpop.f32.mrf.mxu0
    %v1329 = vadd.f32 0.0, %v1328
    %1330 = vdwg.mxu0
    %1331 = vmatpush.msra.mxu0 %v481
    %1332 = vmatpush.msra.mxu0 %v477
    %1333 = vmatpush.msra.mxu0 %v473
    %1334 = vmatpush.msra.mxu0 %v469
    %1335 = vmatpush.msra.mxu0 %v465
    %1336 = vmatpush.msra.mxu0 %v461
    %1337 = vmatpush.msra.mxu0 %v457
    %1338 = vmatpush.msra.mxu0 %v453
    %1339 = vmatpush.msra.mxu0 %v449
    %1340 = vmatpush.msra.mxu0 %v445
    %1341 = vmatpush.msra.mxu0 %v441
    %1342 = vmatpush.msra.mxu0 %v437
    %1343 = vmatpush.msra.mxu0 %v433
    %1344 = vmatpush.msra.mxu0 %v429
    %1345 = vmatpush.msra.mxu0 %v425
    %1346 = vmatpush.msra.mxu0 %v421
    %1347 = vmatmul.f32.gmra.mxu0 %v1261
    %v1348 = vpop.f32.mrf.mxu0
    %v1349 = vadd.f32 0.0, %v1348
    %1350 = vdwg.mxu0
    %v1351 = vadd.f32 %v1267, %v1289
    %v1352 = vadd.f32 %v1268, %v1309
    %v1353 = vadd.f32 %v1269, %v1329
    %v1354 = vadd.f32 %v1270, %v1349
    %v1355 = vxor.u32 %v1351, 2147483648
    %v1356 = vxor.u32 %v1352, 2147483648
    %v1357 = vxor.u32 %v1354, 2147483648
    %v1358 = vmul.f32 %v1355, 1.442695
    %v1359 = vpow.pop %v1358
    %v1360 = vmul.f32 %v1356, 1.442695
    %v1361 = vpow.pop %v1360
    %v1362 = vmul.f32 %v1357, 1.442695
    %v1363 = vpow.pop %v1362
    %v1364 = vadd.f32 %v1359, 1.0
    %v1365 = vadd.f32 %v1361, 1.0
    %v1366 = vadd.f32 %v1363, 1.0
    %v1367 = vrcp.pop %v1364
    %v1368 = vmul.f32 %v1364, %v1367
    %v1369 = vsub.f32 1.0, %v1368
    %v1370 = vmul.f32 %v1367, %v1369
    %v1371 = vadd.f32 %v1367, %v1370
    %vm1372 = vweird.f32 %v1364
    %vm1373 = vweird.f32 %v1367
    %vm1374 = vmor %vm1372, %vm1373
    %v1375 = vsel %vm1374, %v1367, %v1371
    %v1376 = vand.u32 2147483647, %v1364
    %vm1377 = vcmp.eq.f32.partialorder %v1376, 8.507059e+37
    %v1378 = vand.u32 %v1364, 2147483648
    %v1379 = vor.u32 1.1754944e-38, %v1378
    %v1380 = vsel %vm1377, %v1379, %v1375
    %v1381 = vmul.f32 1.0, %v1380
    %v1382 = vrcp.pop %v1365
    %v1383 = vmul.f32 %v1365, %v1382
    %v1384 = vsub.f32 1.0, %v1383
    %v1385 = vmul.f32 %v1382, %v1384
    %v1386 = vadd.f32 %v1382, %v1385
    %vm1387 = vweird.f32 %v1365
    %vm1388 = vweird.f32 %v1382
    %vm1389 = vmor %vm1387, %vm1388
    %v1390 = vsel %vm1389, %v1382, %v1386
    %v1391 = vand.u32 2147483647, %v1365
    %vm1392 = vcmp.eq.f32.partialorder %v1391, 8.507059e+37
    %v1393 = vand.u32 %v1365, 2147483648
    %v1394 = vor.u32 1.1754944e-38, %v1393
    %v1395 = vsel %vm1392, %v1394, %v1390
    %v1396 = vmul.f32 1.0, %v1395
    %v1397 = vrcp.pop %v1366
    %v1398 = vmul.f32 %v1366, %v1397
    %v1399 = vsub.f32 1.0, %v1398
    %v1400 = vmul.f32 %v1397, %v1399
    %v1401 = vadd.f32 %v1397, %v1400
    %vm1402 = vweird.f32 %v1366
    %vm1403 = vweird.f32 %v1397
    %vm1404 = vmor %vm1402, %vm1403
    %v1405 = vsel %vm1404, %v1397, %v1401
    %v1406 = vand.u32 2147483647, %v1366
    %vm1407 = vcmp.eq.f32.partialorder %v1406, 8.507059e+37
    %v1408 = vand.u32 %v1366, 2147483648
    %v1409 = vor.u32 1.1754944e-38, %v1408
    %v1410 = vsel %vm1407, %v1409, %v1405
    %v1411 = vmul.f32 1.0, %v1410
    %v1412 = vtanh.pop %v1353
    %v1413 = vmul.f32 %v1396, %v1259
    %v1414 = vmul.f32 %v1381, %v1412
    %v1415 = vadd.f32 %v1413, %v1414
    %v1416 = vtanh.pop %v1415
    %v1417 = vmul.f32 %v1411, %v1416
    %s1418 = scalar_lea.vmem [#allocation3], 40
    %1419 = vst [vmem:[%s1418] sm:$0xff] %v1417
    %s1420 = smul.u32 6, 4
    %s1421 = smul.addr %s1420, 8
    %s1422 = scalar_lea.vmem [#allocation2], %s1421
    %v1423 = vld [vmem:[%s1422] sm:$0xff]
    %v1424 = vld [vmem:[%s1422 + $0x8] sm:$0xff]
    %v1425 = vld [vmem:[%s1422 + $0x10] sm:$0xff]
    %v1426 = vld [vmem:[%s1422 + $0x18] sm:$0xff]
    %1427 = vmatpush.msra.mxu0 %v478
    %1428 = vmatpush.msra.mxu0 %v474
    %1429 = vmatpush.msra.mxu0 %v470
    %1430 = vmatpush.msra.mxu0 %v466
    %1431 = vmatpush.msra.mxu0 %v462
    %1432 = vmatpush.msra.mxu0 %v458
    %1433 = vmatpush.msra.mxu0 %v454
    %1434 = vmatpush.msra.mxu0 %v450
    %1435 = vmatpush.msra.mxu0 %v446
    %1436 = vmatpush.msra.mxu0 %v442
    %1437 = vmatpush.msra.mxu0 %v438
    %1438 = vmatpush.msra.mxu0 %v434
    %1439 = vmatpush.msra.mxu0 %v430
    %1440 = vmatpush.msra.mxu0 %v426
    %1441 = vmatpush.msra.mxu0 %v422
    %1442 = vmatpush.msra.mxu0 %v418
    %1443 = vmatmul.f32.gmra.mxu0 %v1417
    %v1444 = vpop.f32.mrf.mxu0
    %v1445 = vadd.f32 0.0, %v1444
    %1446 = vdwg.mxu0
    %1447 = vmatpush.msra.mxu0 %v479
    %1448 = vmatpush.msra.mxu0 %v475
    %1449 = vmatpush.msra.mxu0 %v471
    %1450 = vmatpush.msra.mxu0 %v467
    %1451 = vmatpush.msra.mxu0 %v463
    %1452 = vmatpush.msra.mxu0 %v459
    %1453 = vmatpush.msra.mxu0 %v455
    %1454 = vmatpush.msra.mxu0 %v451
    %1455 = vmatpush.msra.mxu0 %v447
    %1456 = vmatpush.msra.mxu0 %v443
    %1457 = vmatpush.msra.mxu0 %v439
    %1458 = vmatpush.msra.mxu0 %v435
    %1459 = vmatpush.msra.mxu0 %v431
    %1460 = vmatpush.msra.mxu0 %v427
    %1461 = vmatpush.msra.mxu0 %v423
    %1462 = vmatpush.msra.mxu0 %v419
    %1463 = vmatmul.f32.gmra.mxu0 %v1417
    %v1464 = vpop.f32.mrf.mxu0
    %v1465 = vadd.f32 0.0, %v1464
    %1466 = vdwg.mxu0
    %1467 = vmatpush.msra.mxu0 %v480
    %1468 = vmatpush.msra.mxu0 %v476
    %1469 = vmatpush.msra.mxu0 %v472
    %1470 = vmatpush.msra.mxu0 %v468
    %1471 = vmatpush.msra.mxu0 %v464
    %1472 = vmatpush.msra.mxu0 %v460
    %1473 = vmatpush.msra.mxu0 %v456
    %1474 = vmatpush.msra.mxu0 %v452
    %1475 = vmatpush.msra.mxu0 %v448
    %1476 = vmatpush.msra.mxu0 %v444
    %1477 = vmatpush.msra.mxu0 %v440
    %1478 = vmatpush.msra.mxu0 %v436
    %1479 = vmatpush.msra.mxu0 %v432
    %1480 = vmatpush.msra.mxu0 %v428
    %1481 = vmatpush.msra.mxu0 %v424
    %1482 = vmatpush.msra.mxu0 %v420
    %1483 = vmatmul.f32.gmra.mxu0 %v1417
    %v1484 = vpop.f32.mrf.mxu0
    %v1485 = vadd.f32 0.0, %v1484
    %1486 = vdwg.mxu0
    %1487 = vmatpush.msra.mxu0 %v481
    %1488 = vmatpush.msra.mxu0 %v477
    %1489 = vmatpush.msra.mxu0 %v473
    %1490 = vmatpush.msra.mxu0 %v469
    %1491 = vmatpush.msra.mxu0 %v465
    %1492 = vmatpush.msra.mxu0 %v461
    %1493 = vmatpush.msra.mxu0 %v457
    %1494 = vmatpush.msra.mxu0 %v453
    %1495 = vmatpush.msra.mxu0 %v449
    %1496 = vmatpush.msra.mxu0 %v445
    %1497 = vmatpush.msra.mxu0 %v441
    %1498 = vmatpush.msra.mxu0 %v437
    %1499 = vmatpush.msra.mxu0 %v433
    %1500 = vmatpush.msra.mxu0 %v429
    %1501 = vmatpush.msra.mxu0 %v425
    %1502 = vmatpush.msra.mxu0 %v421
    %1503 = vmatmul.f32.gmra.mxu0 %v1417
    %v1504 = vpop.f32.mrf.mxu0
    %v1505 = vadd.f32 0.0, %v1504
    %1506 = vdwg.mxu0
    %v1507 = vadd.f32 %v1423, %v1445
    %v1508 = vadd.f32 %v1424, %v1465
    %v1509 = vadd.f32 %v1425, %v1485
    %v1510 = vadd.f32 %v1426, %v1505
    %v1511 = vxor.u32 %v1507, 2147483648
    %v1512 = vxor.u32 %v1508, 2147483648
    %v1513 = vxor.u32 %v1510, 2147483648
    %v1514 = vmul.f32 %v1511, 1.442695
    %v1515 = vpow.pop %v1514
    %v1516 = vmul.f32 %v1512, 1.442695
    %v1517 = vpow.pop %v1516
    %v1518 = vmul.f32 %v1513, 1.442695
    %v1519 = vpow.pop %v1518
    %v1520 = vadd.f32 %v1515, 1.0
    %v1521 = vadd.f32 %v1517, 1.0
    %v1522 = vadd.f32 %v1519, 1.0
    %v1523 = vrcp.pop %v1520
    %v1524 = vmul.f32 %v1520, %v1523
    %v1525 = vsub.f32 1.0, %v1524
    %v1526 = vmul.f32 %v1523, %v1525
    %v1527 = vadd.f32 %v1523, %v1526
    %vm1528 = vweird.f32 %v1520
    %vm1529 = vweird.f32 %v1523
    %vm1530 = vmor %vm1528, %vm1529
    %v1531 = vsel %vm1530, %v1523, %v1527
    %v1532 = vand.u32 2147483647, %v1520
    %vm1533 = vcmp.eq.f32.partialorder %v1532, 8.507059e+37
    %v1534 = vand.u32 %v1520, 2147483648
    %v1535 = vor.u32 1.1754944e-38, %v1534
    %v1536 = vsel %vm1533, %v1535, %v1531
    %v1537 = vmul.f32 1.0, %v1536
    %v1538 = vrcp.pop %v1521
    %v1539 = vmul.f32 %v1521, %v1538
    %v1540 = vsub.f32 1.0, %v1539
    %v1541 = vmul.f32 %v1538, %v1540
    %v1542 = vadd.f32 %v1538, %v1541
    %vm1543 = vweird.f32 %v1521
    %vm1544 = vweird.f32 %v1538
    %vm1545 = vmor %vm1543, %vm1544
    %v1546 = vsel %vm1545, %v1538, %v1542
    %v1547 = vand.u32 2147483647, %v1521
    %vm1548 = vcmp.eq.f32.partialorder %v1547, 8.507059e+37
    %v1549 = vand.u32 %v1521, 2147483648
    %v1550 = vor.u32 1.1754944e-38, %v1549
    %v1551 = vsel %vm1548, %v1550, %v1546
    %v1552 = vmul.f32 1.0, %v1551
    %v1553 = vrcp.pop %v1522
    %v1554 = vmul.f32 %v1522, %v1553
    %v1555 = vsub.f32 1.0, %v1554
    %v1556 = vmul.f32 %v1553, %v1555
    %v1557 = vadd.f32 %v1553, %v1556
    %vm1558 = vweird.f32 %v1522
    %vm1559 = vweird.f32 %v1553
    %vm1560 = vmor %vm1558, %vm1559
    %v1561 = vsel %vm1560, %v1553, %v1557
    %v1562 = vand.u32 2147483647, %v1522
    %vm1563 = vcmp.eq.f32.partialorder %v1562, 8.507059e+37
    %v1564 = vand.u32 %v1522, 2147483648
    %v1565 = vor.u32 1.1754944e-38, %v1564
    %v1566 = vsel %vm1563, %v1565, %v1561
    %v1567 = vmul.f32 1.0, %v1566
    %v1568 = vtanh.pop %v1509
    %v1569 = vmul.f32 %v1552, %v1415
    %v1570 = vmul.f32 %v1537, %v1568
    %v1571 = vadd.f32 %v1569, %v1570
    %v1572 = vtanh.pop %v1571
    %v1573 = vmul.f32 %v1567, %v1572
    %s1574 = scalar_lea.vmem [#allocation3], 48
    %1575 = vst [vmem:[%s1574] sm:$0xff] %v1573
    %s1576 = smul.u32 7, 4
    %s1577 = smul.addr %s1576, 8
    %s1578 = scalar_lea.vmem [#allocation2], %s1577
    %v1579 = vld [vmem:[%s1578] sm:$0xff]
    %v1580 = vld [vmem:[%s1578 + $0x8] sm:$0xff]
    %v1581 = vld [vmem:[%s1578 + $0x10] sm:$0xff]
    %v1582 = vld [vmem:[%s1578 + $0x18] sm:$0xff]
    %1583 = vmatpush.msra.mxu0 %v478
    %1584 = vmatpush.msra.mxu0 %v474
    %1585 = vmatpush.msra.mxu0 %v470
    %1586 = vmatpush.msra.mxu0 %v466
    %1587 = vmatpush.msra.mxu0 %v462
    %1588 = vmatpush.msra.mxu0 %v458
    %1589 = vmatpush.msra.mxu0 %v454
    %1590 = vmatpush.msra.mxu0 %v450
    %1591 = vmatpush.msra.mxu0 %v446
    %1592 = vmatpush.msra.mxu0 %v442
    %1593 = vmatpush.msra.mxu0 %v438
    %1594 = vmatpush.msra.mxu0 %v434
    %1595 = vmatpush.msra.mxu0 %v430
    %1596 = vmatpush.msra.mxu0 %v426
    %1597 = vmatpush.msra.mxu0 %v422
    %1598 = vmatpush.msra.mxu0 %v418
    %1599 = vmatmul.f32.gmra.mxu0 %v1573
    %v1600 = vpop.f32.mrf.mxu0
    %v1601 = vadd.f32 0.0, %v1600
    %1602 = vdwg.mxu0
    %1603 = vmatpush.msra.mxu0 %v479
    %1604 = vmatpush.msra.mxu0 %v475
    %1605 = vmatpush.msra.mxu0 %v471
    %1606 = vmatpush.msra.mxu0 %v467
    %1607 = vmatpush.msra.mxu0 %v463
    %1608 = vmatpush.msra.mxu0 %v459
    %1609 = vmatpush.msra.mxu0 %v455
    %1610 = vmatpush.msra.mxu0 %v451
    %1611 = vmatpush.msra.mxu0 %v447
    %1612 = vmatpush.msra.mxu0 %v443
    %1613 = vmatpush.msra.mxu0 %v439
    %1614 = vmatpush.msra.mxu0 %v435
    %1615 = vmatpush.msra.mxu0 %v431
    %1616 = vmatpush.msra.mxu0 %v427
    %1617 = vmatpush.msra.mxu0 %v423
    %1618 = vmatpush.msra.mxu0 %v419
    %1619 = vmatmul.f32.gmra.mxu0 %v1573
    %v1620 = vpop.f32.mrf.mxu0
    %v1621 = vadd.f32 0.0, %v1620
    %1622 = vdwg.mxu0
    %1623 = vmatpush.msra.mxu0 %v480
    %1624 = vmatpush.msra.mxu0 %v476
    %1625 = vmatpush.msra.mxu0 %v472
    %1626 = vmatpush.msra.mxu0 %v468
    %1627 = vmatpush.msra.mxu0 %v464
    %1628 = vmatpush.msra.mxu0 %v460
    %1629 = vmatpush.msra.mxu0 %v456
    %1630 = vmatpush.msra.mxu0 %v452
    %1631 = vmatpush.msra.mxu0 %v448
    %1632 = vmatpush.msra.mxu0 %v444
    %1633 = vmatpush.msra.mxu0 %v440
    %1634 = vmatpush.msra.mxu0 %v436
    %1635 = vmatpush.msra.mxu0 %v432
    %1636 = vmatpush.msra.mxu0 %v428
    %1637 = vmatpush.msra.mxu0 %v424
    %1638 = vmatpush.msra.mxu0 %v420
    %1639 = vmatmul.f32.gmra.mxu0 %v1573
    %v1640 = vpop.f32.mrf.mxu0
    %v1641 = vadd.f32 0.0, %v1640
    %1642 = vdwg.mxu0
    %1643 = vmatpush.msra.mxu0 %v481
    %1644 = vmatpush.msra.mxu0 %v477
    %1645 = vmatpush.msra.mxu0 %v473
    %1646 = vmatpush.msra.mxu0 %v469
    %1647 = vmatpush.msra.mxu0 %v465
    %1648 = vmatpush.msra.mxu0 %v461
    %1649 = vmatpush.msra.mxu0 %v457
    %1650 = vmatpush.msra.mxu0 %v453
    %1651 = vmatpush.msra.mxu0 %v449
    %1652 = vmatpush.msra.mxu0 %v445
    %1653 = vmatpush.msra.mxu0 %v441
    %1654 = vmatpush.msra.mxu0 %v437
    %1655 = vmatpush.msra.mxu0 %v433
    %1656 = vmatpush.msra.mxu0 %v429
    %1657 = vmatpush.msra.mxu0 %v425
    %1658 = vmatpush.msra.mxu0 %v421
    %1659 = vmatmul.f32.gmra.mxu0 %v1573
    %v1660 = vpop.f32.mrf.mxu0
    %v1661 = vadd.f32 0.0, %v1660
    %1662 = vdwg.mxu0
    %v1663 = vadd.f32 %v1579, %v1601
    %v1664 = vadd.f32 %v1580, %v1621
    %v1665 = vadd.f32 %v1581, %v1641
    %v1666 = vadd.f32 %v1582, %v1661
    %v1667 = vxor.u32 %v1663, 2147483648
    %v1668 = vxor.u32 %v1664, 2147483648
    %v1669 = vxor.u32 %v1666, 2147483648
    %v1670 = vmul.f32 %v1667, 1.442695
    %v1671 = vpow.pop %v1670
    %v1672 = vmul.f32 %v1668, 1.442695
    %v1673 = vpow.pop %v1672
    %v1674 = vmul.f32 %v1669, 1.442695
    %v1675 = vpow.pop %v1674
    %v1676 = vadd.f32 %v1671, 1.0
    %v1677 = vadd.f32 %v1673, 1.0
    %v1678 = vadd.f32 %v1675, 1.0
    %v1679 = vrcp.pop %v1676
    %v1680 = vmul.f32 %v1676, %v1679
    %v1681 = vsub.f32 1.0, %v1680
    %v1682 = vmul.f32 %v1679, %v1681
    %v1683 = vadd.f32 %v1679, %v1682
    %vm1684 = vweird.f32 %v1676
    %vm1685 = vweird.f32 %v1679
    %vm1686 = vmor %vm1684, %vm1685
    %v1687 = vsel %vm1686, %v1679, %v1683
    %v1688 = vand.u32 2147483647, %v1676
    %vm1689 = vcmp.eq.f32.partialorder %v1688, 8.507059e+37
    %v1690 = vand.u32 %v1676, 2147483648
    %v1691 = vor.u32 1.1754944e-38, %v1690
    %v1692 = vsel %vm1689, %v1691, %v1687
    %v1693 = vmul.f32 1.0, %v1692
    %v1694 = vrcp.pop %v1677
    %v1695 = vmul.f32 %v1677, %v1694
    %v1696 = vsub.f32 1.0, %v1695
    %v1697 = vmul.f32 %v1694, %v1696
    %v1698 = vadd.f32 %v1694, %v1697
    %vm1699 = vweird.f32 %v1677
    %vm1700 = vweird.f32 %v1694
    %vm1701 = vmor %vm1699, %vm1700
    %v1702 = vsel %vm1701, %v1694, %v1698
    %v1703 = vand.u32 2147483647, %v1677
    %vm1704 = vcmp.eq.f32.partialorder %v1703, 8.507059e+37
    %v1705 = vand.u32 %v1677, 2147483648
    %v1706 = vor.u32 1.1754944e-38, %v1705
    %v1707 = vsel %vm1704, %v1706, %v1702
    %v1708 = vmul.f32 1.0, %v1707
    %v1709 = vrcp.pop %v1678
    %v1710 = vmul.f32 %v1678, %v1709
    %v1711 = vsub.f32 1.0, %v1710
    %v1712 = vmul.f32 %v1709, %v1711
    %v1713 = vadd.f32 %v1709, %v1712
    %vm1714 = vweird.f32 %v1678
    %vm1715 = vweird.f32 %v1709
    %vm1716 = vmor %vm1714, %vm1715
    %v1717 = vsel %vm1716, %v1709, %v1713
    %v1718 = vand.u32 2147483647, %v1678
    %vm1719 = vcmp.eq.f32.partialorder %v1718, 8.507059e+37
    %v1720 = vand.u32 %v1678, 2147483648
    %v1721 = vor.u32 1.1754944e-38, %v1720
    %v1722 = vsel %vm1719, %v1721, %v1717
    %v1723 = vmul.f32 1.0, %v1722
    %v1724 = vtanh.pop %v1665
    %v1725 = vmul.f32 %v1708, %v1571
    %v1726 = vmul.f32 %v1693, %v1724
    %v1727 = vadd.f32 %v1725, %v1726
    %v1728 = vtanh.pop %v1727
    %v1729 = vmul.f32 %v1723, %v1728
    %s1730 = scalar_lea.vmem [#allocation3], 56
    %1731 = vst [vmem:[%s1730] sm:$0xff] %v1729
    %v1732 = vld [vmem:[#allocation3] sm:$0xff]
    %v1733 = vld [vmem:[#allocation3 + $0x8] sm:$0xff]
    %v1734 = vld [vmem:[#allocation3 + $0x10] sm:$0xff]
    %v1735 = vld [vmem:[#allocation3 + $0x18] sm:$0xff]
    %v1736 = vld [vmem:[#allocation3 + $0x20] sm:$0xff]
    %v1737 = vld [vmem:[#allocation3 + $0x28] sm:$0xff]
    %v1738 = vld [vmem:[#allocation3 + $0x30] sm:$0xff]
    %v1739 = vld [vmem:[#allocation3 + $0x38] sm:$0xff]
    %v1740 = vld [vmem:[#allocation12] sm:$0xff]
    %v1741 = vld [vmem:[#allocation12 + $0x8] sm:$0xff]
    %v1742 = vld [vmem:[#allocation12 + $0x10] sm:$0xff]
    %v1743 = vld [vmem:[#allocation12 + $0x18] sm:$0xff]
    %v1744 = vld [vmem:[#allocation12 + $0x20] sm:$0xff]
    %v1745 = vld [vmem:[#allocation12 + $0x28] sm:$0xff]
    %v1746 = vld [vmem:[#allocation12 + $0x30] sm:$0xff]
    %v1747 = vld [vmem:[#allocation12 + $0x38] sm:$0xff]
    %v1748 = vld [vmem:[#allocation12 + $0x40] sm:$0xff]
    %v1749 = vld [vmem:[#allocation12 + $0x48] sm:$0xff]
    %v1750 = vld [vmem:[#allocation12 + $0x50] sm:$0xff]
    %v1751 = vld [vmem:[#allocation12 + $0x58] sm:$0xff]
    %v1752 = vld [vmem:[#allocation12 + $0x60] sm:$0xff]
    %v1753 = vld [vmem:[#allocation12 + $0x68] sm:$0xff]
    %v1754 = vld [vmem:[#allocation12 + $0x70] sm:$0xff]
    %v1755 = vld [vmem:[#allocation12 + $0x78] sm:$0xff]
    %v1756 = vld [vmem:[#allocation12 + $0x80] sm:$0xff]
    %v1757 = vld [vmem:[#allocation12 + $0x88] sm:$0xff]
    %v1758 = vld [vmem:[#allocation12 + $0x90] sm:$0xff]
    %v1759 = vld [vmem:[#allocation12 + $0x98] sm:$0xff]
    %v1760 = vld [vmem:[#allocation12 + $0xa0] sm:$0xff]
    %v1761 = vld [vmem:[#allocation12 + $0xa8] sm:$0xff]
    %v1762 = vld [vmem:[#allocation12 + $0xb0] sm:$0xff]
    %v1763 = vld [vmem:[#allocation12 + $0xb8] sm:$0xff]
    %v1764 = vld [vmem:[#allocation12 + $0xc0] sm:$0xff]
    %v1765 = vld [vmem:[#allocation12 + $0xc8] sm:$0xff]
    %v1766 = vld [vmem:[#allocation12 + $0xd0] sm:$0xff]
    %v1767 = vld [vmem:[#allocation12 + $0xd8] sm:$0xff]
    %v1768 = vld [vmem:[#allocation12 + $0xe0] sm:$0xff]
    %v1769 = vld [vmem:[#allocation12 + $0xe8] sm:$0xff]
    %v1770 = vld [vmem:[#allocation12 + $0xf0] sm:$0xff]
    %v1771 = vld [vmem:[#allocation12 + $0xf8] sm:$0xff]
    %v1772 = vld [vmem:[#allocation12 + $0x100] sm:$0xff]
    %v1773 = vld [vmem:[#allocation12 + $0x108] sm:$0xff]
    %v1774 = vld [vmem:[#allocation12 + $0x110] sm:$0xff]
    %v1775 = vld [vmem:[#allocation12 + $0x118] sm:$0xff]
    %v1776 = vld [vmem:[#allocation12 + $0x120] sm:$0xff]
    %v1777 = vld [vmem:[#allocation12 + $0x128] sm:$0xff]
    %v1778 = vld [vmem:[#allocation12 + $0x130] sm:$0xff]
    %v1779 = vld [vmem:[#allocation12 + $0x138] sm:$0xff]
    %v1780 = vld [vmem:[#allocation12 + $0x140] sm:$0xff]
    %v1781 = vld [vmem:[#allocation12 + $0x148] sm:$0xff]
    %v1782 = vld [vmem:[#allocation12 + $0x150] sm:$0xff]
    %v1783 = vld [vmem:[#allocation12 + $0x158] sm:$0xff]
    %v1784 = vld [vmem:[#allocation12 + $0x160] sm:$0xff]
    %v1785 = vld [vmem:[#allocation12 + $0x168] sm:$0xff]
    %v1786 = vld [vmem:[#allocation12 + $0x170] sm:$0xff]
    %v1787 = vld [vmem:[#allocation12 + $0x178] sm:$0xff]
    %v1788 = vld [vmem:[#allocation12 + $0x180] sm:$0xff]
    %v1789 = vld [vmem:[#allocation12 + $0x188] sm:$0xff]
    %v1790 = vld [vmem:[#allocation12 + $0x190] sm:$0xff]
    %v1791 = vld [vmem:[#allocation12 + $0x198] sm:$0xff]
    %v1792 = vld [vmem:[#allocation12 + $0x1a0] sm:$0xff]
    %v1793 = vld [vmem:[#allocation12 + $0x1a8] sm:$0xff]
    %v1794 = vld [vmem:[#allocation12 + $0x1b0] sm:$0xff]
    %v1795 = vld [vmem:[#allocation12 + $0x1b8] sm:$0xff]
    %v1796 = vld [vmem:[#allocation12 + $0x1c0] sm:$0xff]
    %v1797 = vld [vmem:[#allocation12 + $0x1c8] sm:$0xff]
    %v1798 = vld [vmem:[#allocation12 + $0x1d0] sm:$0xff]
    %v1799 = vld [vmem:[#allocation12 + $0x1d8] sm:$0xff]
    %v1800 = vld [vmem:[#allocation12 + $0x1e0] sm:$0xff]
    %v1801 = vld [vmem:[#allocation12 + $0x1e8] sm:$0xff]
    %v1802 = vld [vmem:[#allocation12 + $0x1f0] sm:$0xff]
    %v1803 = vld [vmem:[#allocation12 + $0x1f8] sm:$0xff]
    %v1804 = vld [vmem:[%s5] sm:$0xf]
    %v1806 = vperm.slane %v1804, 0
    %v1807 = vperm.slane %v1804, 1
    %v1808 = vperm.slane %v1804, 2
    %v1809 = vperm.slane %v1804, 3
    %1814 = vmatpush.msra.mxu0 %v1800
    %1815 = vmatpush.msra.mxu0 %v1796
    %1816 = vmatpush.msra.mxu0 %v1792
    %1817 = vmatpush.msra.mxu0 %v1788
    %1818 = vmatpush.msra.mxu0 %v1784
    %1819 = vmatpush.msra.mxu0 %v1780
    %1820 = vmatpush.msra.mxu0 %v1776
    %1821 = vmatpush.msra.mxu0 %v1772
    %1822 = vmatpush.msra.mxu0 %v1768
    %1823 = vmatpush.msra.mxu0 %v1764
    %1824 = vmatpush.msra.mxu0 %v1760
    %1825 = vmatpush.msra.mxu0 %v1756
    %1826 = vmatpush.msra.mxu0 %v1752
    %1827 = vmatpush.msra.mxu0 %v1748
    %1828 = vmatpush.msra.mxu0 %v1744
    %1829 = vmatpush.msra.mxu0 %v1740
    %1830 = vmatmul.f32.gmra.mxu0 %v1732
    %v1831 = vpop.f32.mrf.mxu0
    %v1832 = vadd.f32 %v1806, %v1831
    %1833 = vmatmul.f32.gmra.mxu0 %v1733
    %v1834 = vpop.f32.mrf.mxu0
    %v1835 = vadd.f32 %v1806, %v1834
    %1836 = vmatmul.f32.gmra.mxu0 %v1734
    %v1837 = vpop.f32.mrf.mxu0
    %v1838 = vadd.f32 %v1806, %v1837
    %1839 = vmatmul.f32.gmra.mxu0 %v1735
    %v1840 = vpop.f32.mrf.mxu0
    %v1841 = vadd.f32 %v1806, %v1840
    %1842 = vmatmul.f32.gmra.mxu0 %v1736
    %v1843 = vpop.f32.mrf.mxu0
    %v1844 = vadd.f32 %v1806, %v1843
    %1845 = vmatmul.f32.gmra.mxu0 %v1737
    %v1846 = vpop.f32.mrf.mxu0
    %v1847 = vadd.f32 %v1806, %v1846
    %1848 = vmatmul.f32.gmra.mxu0 %v1738
    %v1849 = vpop.f32.mrf.mxu0
    %v1850 = vadd.f32 %v1806, %v1849
    %1851 = vmatmul.f32.gmra.mxu0 %v1739
    %v1852 = vpop.f32.mrf.mxu0
    %v1853 = vadd.f32 %v1806, %v1852
    %1854 = vdwg.mxu0
    %1855 = vmatpush.msra.mxu0 %v1801
    %1856 = vmatpush.msra.mxu0 %v1797
    %1857 = vmatpush.msra.mxu0 %v1793
    %1858 = vmatpush.msra.mxu0 %v1789
    %1859 = vmatpush.msra.mxu0 %v1785
    %1860 = vmatpush.msra.mxu0 %v1781
    %1861 = vmatpush.msra.mxu0 %v1777
    %1862 = vmatpush.msra.mxu0 %v1773
    %1863 = vmatpush.msra.mxu0 %v1769
    %1864 = vmatpush.msra.mxu0 %v1765
    %1865 = vmatpush.msra.mxu0 %v1761
    %1866 = vmatpush.msra.mxu0 %v1757
    %1867 = vmatpush.msra.mxu0 %v1753
    %1868 = vmatpush.msra.mxu0 %v1749
    %1869 = vmatpush.msra.mxu0 %v1745
    %1870 = vmatpush.msra.mxu0 %v1741
    %1871 = vmatmul.f32.gmra.mxu0 %v1732
    %v1872 = vpop.f32.mrf.mxu0
    %v1873 = vadd.f32 %v1807, %v1872
    %1874 = vmatmul.f32.gmra.mxu0 %v1733
    %v1875 = vpop.f32.mrf.mxu0
    %v1876 = vadd.f32 %v1807, %v1875
    %1877 = vmatmul.f32.gmra.mxu0 %v1734
    %v1878 = vpop.f32.mrf.mxu0
    %v1879 = vadd.f32 %v1807, %v1878
    %1880 = vmatmul.f32.gmra.mxu0 %v1735
    %v1881 = vpop.f32.mrf.mxu0
    %v1882 = vadd.f32 %v1807, %v1881
    %1883 = vmatmul.f32.gmra.mxu0 %v1736
    %v1884 = vpop.f32.mrf.mxu0
    %v1885 = vadd.f32 %v1807, %v1884
    %1886 = vmatmul.f32.gmra.mxu0 %v1737
    %v1887 = vpop.f32.mrf.mxu0
    %v1888 = vadd.f32 %v1807, %v1887
    %1889 = vmatmul.f32.gmra.mxu0 %v1738
    %v1890 = vpop.f32.mrf.mxu0
    %v1891 = vadd.f32 %v1807, %v1890
    %1892 = vmatmul.f32.gmra.mxu0 %v1739
    %v1893 = vpop.f32.mrf.mxu0
    %v1894 = vadd.f32 %v1807, %v1893
    %1895 = vdwg.mxu0
    %1896 = vmatpush.msra.mxu0 %v1802
    %1897 = vmatpush.msra.mxu0 %v1798
    %1898 = vmatpush.msra.mxu0 %v1794
    %1899 = vmatpush.msra.mxu0 %v1790
    %1900 = vmatpush.msra.mxu0 %v1786
    %1901 = vmatpush.msra.mxu0 %v1782
    %1902 = vmatpush.msra.mxu0 %v1778
    %1903 = vmatpush.msra.mxu0 %v1774
    %1904 = vmatpush.msra.mxu0 %v1770
    %1905 = vmatpush.msra.mxu0 %v1766
    %1906 = vmatpush.msra.mxu0 %v1762
    %1907 = vmatpush.msra.mxu0 %v1758
    %1908 = vmatpush.msra.mxu0 %v1754
    %1909 = vmatpush.msra.mxu0 %v1750
    %1910 = vmatpush.msra.mxu0 %v1746
    %1911 = vmatpush.msra.mxu0 %v1742
    %1912 = vmatmul.f32.gmra.mxu0 %v1732
    %v1913 = vpop.f32.mrf.mxu0
    %v1914 = vadd.f32 %v1808, %v1913
    %1915 = vmatmul.f32.gmra.mxu0 %v1733
    %v1916 = vpop.f32.mrf.mxu0
    %v1917 = vadd.f32 %v1808, %v1916
    %1918 = vmatmul.f32.gmra.mxu0 %v1734
    %v1919 = vpop.f32.mrf.mxu0
    %v1920 = vadd.f32 %v1808, %v1919
    %1921 = vmatmul.f32.gmra.mxu0 %v1735
    %v1922 = vpop.f32.mrf.mxu0
    %v1923 = vadd.f32 %v1808, %v1922
    %1924 = vmatmul.f32.gmra.mxu0 %v1736
    %v1925 = vpop.f32.mrf.mxu0
    %v1926 = vadd.f32 %v1808, %v1925
    %1927 = vmatmul.f32.gmra.mxu0 %v1737
    %v1928 = vpop.f32.mrf.mxu0
    %v1929 = vadd.f32 %v1808, %v1928
    %1930 = vmatmul.f32.gmra.mxu0 %v1738
    %v1931 = vpop.f32.mrf.mxu0
    %v1932 = vadd.f32 %v1808, %v1931
    %1933 = vmatmul.f32.gmra.mxu0 %v1739
    %v1934 = vpop.f32.mrf.mxu0
    %v1935 = vadd.f32 %v1808, %v1934
    %1936 = vdwg.mxu0
    %1937 = vmatpush.msra.mxu0 %v1803
    %1938 = vmatpush.msra.mxu0 %v1799
    %1939 = vmatpush.msra.mxu0 %v1795
    %1940 = vmatpush.msra.mxu0 %v1791
    %1941 = vmatpush.msra.mxu0 %v1787
    %1942 = vmatpush.msra.mxu0 %v1783
    %1943 = vmatpush.msra.mxu0 %v1779
    %1944 = vmatpush.msra.mxu0 %v1775
    %1945 = vmatpush.msra.mxu0 %v1771
    %1946 = vmatpush.msra.mxu0 %v1767
    %1947 = vmatpush.msra.mxu0 %v1763
    %1948 = vmatpush.msra.mxu0 %v1759
    %1949 = vmatpush.msra.mxu0 %v1755
    %1950 = vmatpush.msra.mxu0 %v1751
    %1951 = vmatpush.msra.mxu0 %v1747
    %1952 = vmatpush.msra.mxu0 %v1743
    %1953 = vmatmul.f32.gmra.mxu0 %v1732
    %v1954 = vpop.f32.mrf.mxu0
    %v1955 = vadd.f32 %v1809, %v1954
    %1956 = vmatmul.f32.gmra.mxu0 %v1733
    %v1957 = vpop.f32.mrf.mxu0
    %v1958 = vadd.f32 %v1809, %v1957
    %1959 = vmatmul.f32.gmra.mxu0 %v1734
    %v1960 = vpop.f32.mrf.mxu0
    %v1961 = vadd.f32 %v1809, %v1960
    %1962 = vmatmul.f32.gmra.mxu0 %v1735
    %v1963 = vpop.f32.mrf.mxu0
    %v1964 = vadd.f32 %v1809, %v1963
    %1965 = vmatmul.f32.gmra.mxu0 %v1736
    %v1966 = vpop.f32.mrf.mxu0
    %v1967 = vadd.f32 %v1809, %v1966
    %1968 = vmatmul.f32.gmra.mxu0 %v1737
    %v1969 = vpop.f32.mrf.mxu0
    %v1970 = vadd.f32 %v1809, %v1969
    %1971 = vmatmul.f32.gmra.mxu0 %v1738
    %v1972 = vpop.f32.mrf.mxu0
    %v1973 = vadd.f32 %v1809, %v1972
    %1974 = vmatmul.f32.gmra.mxu0 %v1739
    %v1975 = vpop.f32.mrf.mxu0
    %v1976 = vadd.f32 %v1809, %v1975
    %1977 = vdwg.mxu0
    %1978 = vst [vmem:[#allocation2] sm:$0xff] %v1832
    %1979 = vst [vmem:[#allocation2 + $0x8] sm:$0xff] %v1873
    %1980 = vst [vmem:[#allocation2 + $0x10] sm:$0xff] %v1914
    %1981 = vst [vmem:[#allocation2 + $0x18] sm:$0xff] %v1955
    %1982 = vst [vmem:[#allocation2 + $0x20] sm:$0xff] %v1835
    %1983 = vst [vmem:[#allocation2 + $0x28] sm:$0xff] %v1876
    %1984 = vst [vmem:[#allocation2 + $0x30] sm:$0xff] %v1917
    %1985 = vst [vmem:[#allocation2 + $0x38] sm:$0xff] %v1958
    %1986 = vst [vmem:[#allocation2 + $0x40] sm:$0xff] %v1838
    %1987 = vst [vmem:[#allocation2 + $0x48] sm:$0xff] %v1879
    %1988 = vst [vmem:[#allocation2 + $0x50] sm:$0xff] %v1920
    %1989 = vst [vmem:[#allocation2 + $0x58] sm:$0xff] %v1961
    %1990 = vst [vmem:[#allocation2 + $0x60] sm:$0xff] %v1841
    %1991 = vst [vmem:[#allocation2 + $0x68] sm:$0xff] %v1882
    %1992 = vst [vmem:[#allocation2 + $0x70] sm:$0xff] %v1923
    %1993 = vst [vmem:[#allocation2 + $0x78] sm:$0xff] %v1964
    %1994 = vst [vmem:[#allocation2 + $0x80] sm:$0xff] %v1844
    %1995 = vst [vmem:[#allocation2 + $0x88] sm:$0xff] %v1885
    %1996 = vst [vmem:[#allocation2 + $0x90] sm:$0xff] %v1926
    %1997 = vst [vmem:[#allocation2 + $0x98] sm:$0xff] %v1967
    %1998 = vst [vmem:[#allocation2 + $0xa0] sm:$0xff] %v1847
    %1999 = vst [vmem:[#allocation2 + $0xa8] sm:$0xff] %v1888
    %2000 = vst [vmem:[#allocation2 + $0xb0] sm:$0xff] %v1929
    %2001 = vst [vmem:[#allocation2 + $0xb8] sm:$0xff] %v1970
    %2002 = vst [vmem:[#allocation2 + $0xc0] sm:$0xff] %v1850
    %2003 = vst [vmem:[#allocation2 + $0xc8] sm:$0xff] %v1891
    %2004 = vst [vmem:[#allocation2 + $0xd0] sm:$0xff] %v1932
    %2005 = vst [vmem:[#allocation2 + $0xd8] sm:$0xff] %v1973
    %2006 = vst [vmem:[#allocation2 + $0xe0] sm:$0xff] %v1853
    %2007 = vst [vmem:[#allocation2 + $0xe8] sm:$0xff] %v1894
    %2008 = vst [vmem:[#allocation2 + $0xf0] sm:$0xff] %v1935
    %2009 = vst [vmem:[#allocation2 + $0xf8] sm:$0xff] %v1976
    %v2010 = vld [vmem:[#allocation13] sm:$0xff]
    %v2011 = vld [vmem:[#allocation13 + $0x8] sm:$0xff]
    %v2012 = vld [vmem:[#allocation13 + $0x10] sm:$0xff]
    %v2013 = vld [vmem:[#allocation13 + $0x18] sm:$0xff]
    %v2014 = vld [vmem:[#allocation13 + $0x20] sm:$0xff]
    %v2015 = vld [vmem:[#allocation13 + $0x28] sm:$0xff]
    %v2016 = vld [vmem:[#allocation13 + $0x30] sm:$0xff]
    %v2017 = vld [vmem:[#allocation13 + $0x38] sm:$0xff]
    %v2018 = vld [vmem:[#allocation13 + $0x40] sm:$0xff]
    %v2019 = vld [vmem:[#allocation13 + $0x48] sm:$0xff]
    %v2020 = vld [vmem:[#allocation13 + $0x50] sm:$0xff]
    %v2021 = vld [vmem:[#allocation13 + $0x58] sm:$0xff]
    %v2022 = vld [vmem:[#allocation13 + $0x60] sm:$0xff]
    %v2023 = vld [vmem:[#allocation13 + $0x68] sm:$0xff]
    %v2024 = vld [vmem:[#allocation13 + $0x70] sm:$0xff]
    %v2025 = vld [vmem:[#allocation13 + $0x78] sm:$0xff]
    %v2026 = vld [vmem:[#allocation13 + $0x80] sm:$0xff]
    %v2027 = vld [vmem:[#allocation13 + $0x88] sm:$0xff]
    %v2028 = vld [vmem:[#allocation13 + $0x90] sm:$0xff]
    %v2029 = vld [vmem:[#allocation13 + $0x98] sm:$0xff]
    %v2030 = vld [vmem:[#allocation13 + $0xa0] sm:$0xff]
    %v2031 = vld [vmem:[#allocation13 + $0xa8] sm:$0xff]
    %v2032 = vld [vmem:[#allocation13 + $0xb0] sm:$0xff]
    %v2033 = vld [vmem:[#allocation13 + $0xb8] sm:$0xff]
    %v2034 = vld [vmem:[#allocation13 + $0xc0] sm:$0xff]
    %v2035 = vld [vmem:[#allocation13 + $0xc8] sm:$0xff]
    %v2036 = vld [vmem:[#allocation13 + $0xd0] sm:$0xff]
    %v2037 = vld [vmem:[#allocation13 + $0xd8] sm:$0xff]
    %v2038 = vld [vmem:[#allocation13 + $0xe0] sm:$0xff]
    %v2039 = vld [vmem:[#allocation13 + $0xe8] sm:$0xff]
    %v2040 = vld [vmem:[#allocation13 + $0xf0] sm:$0xff]
    %v2041 = vld [vmem:[#allocation13 + $0xf8] sm:$0xff]
    %v2042 = vld [vmem:[#allocation13 + $0x100] sm:$0xff]
    %v2043 = vld [vmem:[#allocation13 + $0x108] sm:$0xff]
    %v2044 = vld [vmem:[#allocation13 + $0x110] sm:$0xff]
    %v2045 = vld [vmem:[#allocation13 + $0x118] sm:$0xff]
    %v2046 = vld [vmem:[#allocation13 + $0x120] sm:$0xff]
    %v2047 = vld [vmem:[#allocation13 + $0x128] sm:$0xff]
    %v2048 = vld [vmem:[#allocation13 + $0x130] sm:$0xff]
    %v2049 = vld [vmem:[#allocation13 + $0x138] sm:$0xff]
    %v2050 = vld [vmem:[#allocation13 + $0x140] sm:$0xff]
    %v2051 = vld [vmem:[#allocation13 + $0x148] sm:$0xff]
    %v2052 = vld [vmem:[#allocation13 + $0x150] sm:$0xff]
    %v2053 = vld [vmem:[#allocation13 + $0x158] sm:$0xff]
    %v2054 = vld [vmem:[#allocation13 + $0x160] sm:$0xff]
    %v2055 = vld [vmem:[#allocation13 + $0x168] sm:$0xff]
    %v2056 = vld [vmem:[#allocation13 + $0x170] sm:$0xff]
    %v2057 = vld [vmem:[#allocation13 + $0x178] sm:$0xff]
    %v2058 = vld [vmem:[#allocation13 + $0x180] sm:$0xff]
    %v2059 = vld [vmem:[#allocation13 + $0x188] sm:$0xff]
    %v2060 = vld [vmem:[#allocation13 + $0x190] sm:$0xff]
    %v2061 = vld [vmem:[#allocation13 + $0x198] sm:$0xff]
    %v2062 = vld [vmem:[#allocation13 + $0x1a0] sm:$0xff]
    %v2063 = vld [vmem:[#allocation13 + $0x1a8] sm:$0xff]
    %v2064 = vld [vmem:[#allocation13 + $0x1b0] sm:$0xff]
    %v2065 = vld [vmem:[#allocation13 + $0x1b8] sm:$0xff]
    %v2066 = vld [vmem:[#allocation13 + $0x1c0] sm:$0xff]
    %v2067 = vld [vmem:[#allocation13 + $0x1c8] sm:$0xff]
    %v2068 = vld [vmem:[#allocation13 + $0x1d0] sm:$0xff]
    %v2069 = vld [vmem:[#allocation13 + $0x1d8] sm:$0xff]
    %v2070 = vld [vmem:[#allocation13 + $0x1e0] sm:$0xff]
    %v2071 = vld [vmem:[#allocation13 + $0x1e8] sm:$0xff]
    %v2072 = vld [vmem:[#allocation13 + $0x1f0] sm:$0xff]
    %v2073 = vld [vmem:[#allocation13 + $0x1f8] sm:$0xff]
    %s2074 = scalar_lea.vmem [#allocation15], 8
    %v2075 = vld [vmem:[%s2074] sm:$0xff]
    %s2076 = scalar_lea.vmem [#allocation15], 24
    %v2077 = vld [vmem:[%s2076] sm:$0xff]
    %v2078 = vld [vmem:[%s487] sm:$0xff]
    %v2079 = vld [vmem:[%s487 + $0x8] sm:$0xff]
    %v2080 = vld [vmem:[%s487 + $0x10] sm:$0xff]
    %v2081 = vld [vmem:[%s487 + $0x18] sm:$0xff]
    %2082 = vmatpush.msra.mxu0 %v2070
    %2083 = vmatpush.msra.mxu0 %v2066
    %2084 = vmatpush.msra.mxu0 %v2062
    %2085 = vmatpush.msra.mxu0 %v2058
    %2086 = vmatpush.msra.mxu0 %v2054
    %2087 = vmatpush.msra.mxu0 %v2050
    %2088 = vmatpush.msra.mxu0 %v2046
    %2089 = vmatpush.msra.mxu0 %v2042
    %2090 = vmatpush.msra.mxu0 %v2038
    %2091 = vmatpush.msra.mxu0 %v2034
    %2092 = vmatpush.msra.mxu0 %v2030
    %2093 = vmatpush.msra.mxu0 %v2026
    %2094 = vmatpush.msra.mxu0 %v2022
    %2095 = vmatpush.msra.mxu0 %v2018
    %2096 = vmatpush.msra.mxu0 %v2014
    %2097 = vmatpush.msra.mxu0 %v2010
    %2098 = vmatmul.f32.gmra.mxu0 %v2075
    %v2099 = vpop.f32.mrf.mxu0
    %v2100 = vadd.f32 0.0, %v2099
    %2101 = vdwg.mxu0
    %2102 = vmatpush.msra.mxu0 %v2071
    %2103 = vmatpush.msra.mxu0 %v2067
    %2104 = vmatpush.msra.mxu0 %v2063
    %2105 = vmatpush.msra.mxu0 %v2059
    %2106 = vmatpush.msra.mxu0 %v2055
    %2107 = vmatpush.msra.mxu0 %v2051
    %2108 = vmatpush.msra.mxu0 %v2047
    %2109 = vmatpush.msra.mxu0 %v2043
    %2110 = vmatpush.msra.mxu0 %v2039
    %2111 = vmatpush.msra.mxu0 %v2035
    %2112 = vmatpush.msra.mxu0 %v2031
    %2113 = vmatpush.msra.mxu0 %v2027
    %2114 = vmatpush.msra.mxu0 %v2023
    %2115 = vmatpush.msra.mxu0 %v2019
    %2116 = vmatpush.msra.mxu0 %v2015
    %2117 = vmatpush.msra.mxu0 %v2011
    %2118 = vmatmul.f32.gmra.mxu0 %v2075
    %v2119 = vpop.f32.mrf.mxu0
    %v2120 = vadd.f32 0.0, %v2119
    %2121 = vdwg.mxu0
    %2122 = vmatpush.msra.mxu0 %v2072
    %2123 = vmatpush.msra.mxu0 %v2068
    %2124 = vmatpush.msra.mxu0 %v2064
    %2125 = vmatpush.msra.mxu0 %v2060
    %2126 = vmatpush.msra.mxu0 %v2056
    %2127 = vmatpush.msra.mxu0 %v2052
    %2128 = vmatpush.msra.mxu0 %v2048
    %2129 = vmatpush.msra.mxu0 %v2044
    %2130 = vmatpush.msra.mxu0 %v2040
    %2131 = vmatpush.msra.mxu0 %v2036
    %2132 = vmatpush.msra.mxu0 %v2032
    %2133 = vmatpush.msra.mxu0 %v2028
    %2134 = vmatpush.msra.mxu0 %v2024
    %2135 = vmatpush.msra.mxu0 %v2020
    %2136 = vmatpush.msra.mxu0 %v2016
    %2137 = vmatpush.msra.mxu0 %v2012
    %2138 = vmatmul.f32.gmra.mxu0 %v2075
    %v2139 = vpop.f32.mrf.mxu0
    %v2140 = vadd.f32 0.0, %v2139
    %2141 = vdwg.mxu0
    %2142 = vmatpush.msra.mxu0 %v2073
    %2143 = vmatpush.msra.mxu0 %v2069
    %2144 = vmatpush.msra.mxu0 %v2065
    %2145 = vmatpush.msra.mxu0 %v2061
    %2146 = vmatpush.msra.mxu0 %v2057
    %2147 = vmatpush.msra.mxu0 %v2053
    %2148 = vmatpush.msra.mxu0 %v2049
    %2149 = vmatpush.msra.mxu0 %v2045
    %2150 = vmatpush.msra.mxu0 %v2041
    %2151 = vmatpush.msra.mxu0 %v2037
    %2152 = vmatpush.msra.mxu0 %v2033
    %2153 = vmatpush.msra.mxu0 %v2029
    %2154 = vmatpush.msra.mxu0 %v2025
    %2155 = vmatpush.msra.mxu0 %v2021
    %2156 = vmatpush.msra.mxu0 %v2017
    %2157 = vmatpush.msra.mxu0 %v2013
    %2158 = vmatmul.f32.gmra.mxu0 %v2075
    %v2159 = vpop.f32.mrf.mxu0
    %v2160 = vadd.f32 0.0, %v2159
    %2161 = vdwg.mxu0
    %v2162 = vadd.f32 %v2078, %v2100
    %v2163 = vadd.f32 %v2079, %v2120
    %v2164 = vadd.f32 %v2080, %v2140
    %v2165 = vadd.f32 %v2081, %v2160
    %v2166 = vxor.u32 %v2162, 2147483648
    %v2167 = vxor.u32 %v2163, 2147483648
    %v2168 = vxor.u32 %v2165, 2147483648
    %v2169 = vmul.f32 %v2166, 1.442695
    %v2170 = vpow.pop %v2169
    %v2171 = vmul.f32 %v2167, 1.442695
    %v2172 = vpow.pop %v2171
    %v2173 = vmul.f32 %v2168, 1.442695
    %v2174 = vpow.pop %v2173
    %v2175 = vadd.f32 %v2170, 1.0
    %v2176 = vadd.f32 %v2172, 1.0
    %v2177 = vadd.f32 %v2174, 1.0
    %v2178 = vrcp.pop %v2175
    %v2179 = vmul.f32 %v2175, %v2178
    %v2180 = vsub.f32 1.0, %v2179
    %v2181 = vmul.f32 %v2178, %v2180
    %v2182 = vadd.f32 %v2178, %v2181
    %vm2183 = vweird.f32 %v2175
    %vm2184 = vweird.f32 %v2178
    %vm2185 = vmor %vm2183, %vm2184
    %v2186 = vsel %vm2185, %v2178, %v2182
    %v2187 = vand.u32 2147483647, %v2175
    %vm2188 = vcmp.eq.f32.partialorder %v2187, 8.507059e+37
    %v2189 = vand.u32 %v2175, 2147483648
    %v2190 = vor.u32 1.1754944e-38, %v2189
    %v2191 = vsel %vm2188, %v2190, %v2186
    %v2192 = vmul.f32 1.0, %v2191
    %v2193 = vrcp.pop %v2176
    %v2194 = vmul.f32 %v2176, %v2193
    %v2195 = vsub.f32 1.0, %v2194
    %v2196 = vmul.f32 %v2193, %v2195
    %v2197 = vadd.f32 %v2193, %v2196
    %vm2198 = vweird.f32 %v2176
    %vm2199 = vweird.f32 %v2193
    %vm2200 = vmor %vm2198, %vm2199
    %v2201 = vsel %vm2200, %v2193, %v2197
    %v2202 = vand.u32 2147483647, %v2176
    %vm2203 = vcmp.eq.f32.partialorder %v2202, 8.507059e+37
    %v2204 = vand.u32 %v2176, 2147483648
    %v2205 = vor.u32 1.1754944e-38, %v2204
    %v2206 = vsel %vm2203, %v2205, %v2201
    %v2207 = vmul.f32 1.0, %v2206
    %v2208 = vrcp.pop %v2177
    %v2209 = vmul.f32 %v2177, %v2208
    %v2210 = vsub.f32 1.0, %v2209
    %v2211 = vmul.f32 %v2208, %v2210
    %v2212 = vadd.f32 %v2208, %v2211
    %vm2213 = vweird.f32 %v2177
    %vm2214 = vweird.f32 %v2208
    %vm2215 = vmor %vm2213, %vm2214
    %v2216 = vsel %vm2215, %v2208, %v2212
    %v2217 = vand.u32 2147483647, %v2177
    %vm2218 = vcmp.eq.f32.partialorder %v2217, 8.507059e+37
    %v2219 = vand.u32 %v2177, 2147483648
    %v2220 = vor.u32 1.1754944e-38, %v2219
    %v2221 = vsel %vm2218, %v2220, %v2216
    %v2222 = vmul.f32 1.0, %v2221
    %v2223 = vtanh.pop %v2164
    %v2224 = vmul.f32 %v2207, %v2077
    %v2225 = vmul.f32 %v2192, %v2223
    %v2226 = vadd.f32 %v2224, %v2225
    %v2227 = vtanh.pop %v2226
    %v2228 = vmul.f32 %v2222, %v2227
    %2229 = vst [vmem:[#allocation16] sm:$0xff] %v2228
    %v2230 = vld [vmem:[%s642] sm:$0xff]
    %v2231 = vld [vmem:[%s642 + $0x8] sm:$0xff]
    %v2232 = vld [vmem:[%s642 + $0x10] sm:$0xff]
    %v2233 = vld [vmem:[%s642 + $0x18] sm:$0xff]
    %2234 = vmatpush.msra.mxu0 %v2070
    %2235 = vmatpush.msra.mxu0 %v2066
    %2236 = vmatpush.msra.mxu0 %v2062
    %2237 = vmatpush.msra.mxu0 %v2058
    %2238 = vmatpush.msra.mxu0 %v2054
    %2239 = vmatpush.msra.mxu0 %v2050
    %2240 = vmatpush.msra.mxu0 %v2046
    %2241 = vmatpush.msra.mxu0 %v2042
    %2242 = vmatpush.msra.mxu0 %v2038
    %2243 = vmatpush.msra.mxu0 %v2034
    %2244 = vmatpush.msra.mxu0 %v2030
    %2245 = vmatpush.msra.mxu0 %v2026
    %2246 = vmatpush.msra.mxu0 %v2022
    %2247 = vmatpush.msra.mxu0 %v2018
    %2248 = vmatpush.msra.mxu0 %v2014
    %2249 = vmatpush.msra.mxu0 %v2010
    %2250 = vmatmul.f32.gmra.mxu0 %v2228
    %v2251 = vpop.f32.mrf.mxu0
    %v2252 = vadd.f32 0.0, %v2251
    %2253 = vdwg.mxu0
    %2254 = vmatpush.msra.mxu0 %v2071
    %2255 = vmatpush.msra.mxu0 %v2067
    %2256 = vmatpush.msra.mxu0 %v2063
    %2257 = vmatpush.msra.mxu0 %v2059
    %2258 = vmatpush.msra.mxu0 %v2055
    %2259 = vmatpush.msra.mxu0 %v2051
    %2260 = vmatpush.msra.mxu0 %v2047
    %2261 = vmatpush.msra.mxu0 %v2043
    %2262 = vmatpush.msra.mxu0 %v2039
    %2263 = vmatpush.msra.mxu0 %v2035
    %2264 = vmatpush.msra.mxu0 %v2031
    %2265 = vmatpush.msra.mxu0 %v2027
    %2266 = vmatpush.msra.mxu0 %v2023
    %2267 = vmatpush.msra.mxu0 %v2019
    %2268 = vmatpush.msra.mxu0 %v2015
    %2269 = vmatpush.msra.mxu0 %v2011
    %2270 = vmatmul.f32.gmra.mxu0 %v2228
    %v2271 = vpop.f32.mrf.mxu0
    %v2272 = vadd.f32 0.0, %v2271
    %2273 = vdwg.mxu0
    %2274 = vmatpush.msra.mxu0 %v2072
    %2275 = vmatpush.msra.mxu0 %v2068
    %2276 = vmatpush.msra.mxu0 %v2064
    %2277 = vmatpush.msra.mxu0 %v2060
    %2278 = vmatpush.msra.mxu0 %v2056
    %2279 = vmatpush.msra.mxu0 %v2052
    %2280 = vmatpush.msra.mxu0 %v2048
    %2281 = vmatpush.msra.mxu0 %v2044
    %2282 = vmatpush.msra.mxu0 %v2040
    %2283 = vmatpush.msra.mxu0 %v2036
    %2284 = vmatpush.msra.mxu0 %v2032
    %2285 = vmatpush.msra.mxu0 %v2028
    %2286 = vmatpush.msra.mxu0 %v2024
    %2287 = vmatpush.msra.mxu0 %v2020
    %2288 = vmatpush.msra.mxu0 %v2016
    %2289 = vmatpush.msra.mxu0 %v2012
    %2290 = vmatmul.f32.gmra.mxu0 %v2228
    %v2291 = vpop.f32.mrf.mxu0
    %v2292 = vadd.f32 0.0, %v2291
    %2293 = vdwg.mxu0
    %2294 = vmatpush.msra.mxu0 %v2073
    %2295 = vmatpush.msra.mxu0 %v2069
    %2296 = vmatpush.msra.mxu0 %v2065
    %2297 = vmatpush.msra.mxu0 %v2061
    %2298 = vmatpush.msra.mxu0 %v2057
    %2299 = vmatpush.msra.mxu0 %v2053
    %2300 = vmatpush.msra.mxu0 %v2049
    %2301 = vmatpush.msra.mxu0 %v2045
    %2302 = vmatpush.msra.mxu0 %v2041
    %2303 = vmatpush.msra.mxu0 %v2037
    %2304 = vmatpush.msra.mxu0 %v2033
    %2305 = vmatpush.msra.mxu0 %v2029
    %2306 = vmatpush.msra.mxu0 %v2025
    %2307 = vmatpush.msra.mxu0 %v2021
    %2308 = vmatpush.msra.mxu0 %v2017
    %2309 = vmatpush.msra.mxu0 %v2013
    %2310 = vmatmul.f32.gmra.mxu0 %v2228
    %v2311 = vpop.f32.mrf.mxu0
    %v2312 = vadd.f32 0.0, %v2311
    %2313 = vdwg.mxu0
    %v2314 = vadd.f32 %v2230, %v2252
    %v2315 = vadd.f32 %v2231, %v2272
    %v2316 = vadd.f32 %v2232, %v2292
    %v2317 = vadd.f32 %v2233, %v2312
    %v2318 = vxor.u32 %v2314, 2147483648
    %v2319 = vxor.u32 %v2315, 2147483648
    %v2320 = vxor.u32 %v2317, 2147483648
    %v2321 = vmul.f32 %v2318, 1.442695
    %v2322 = vpow.pop %v2321
    %v2323 = vmul.f32 %v2319, 1.442695
    %v2324 = vpow.pop %v2323
    %v2325 = vmul.f32 %v2320, 1.442695
    %v2326 = vpow.pop %v2325
    %v2327 = vadd.f32 %v2322, 1.0
    %v2328 = vadd.f32 %v2324, 1.0
    %v2329 = vadd.f32 %v2326, 1.0
    %v2330 = vrcp.pop %v2327
    %v2331 = vmul.f32 %v2327, %v2330
    %v2332 = vsub.f32 1.0, %v2331
    %v2333 = vmul.f32 %v2330, %v2332
    %v2334 = vadd.f32 %v2330, %v2333
    %vm2335 = vweird.f32 %v2327
    %vm2336 = vweird.f32 %v2330
    %vm2337 = vmor %vm2335, %vm2336
    %v2338 = vsel %vm2337, %v2330, %v2334
    %v2339 = vand.u32 2147483647, %v2327
    %vm2340 = vcmp.eq.f32.partialorder %v2339, 8.507059e+37
    %v2341 = vand.u32 %v2327, 2147483648
    %v2342 = vor.u32 1.1754944e-38, %v2341
    %v2343 = vsel %vm2340, %v2342, %v2338
    %v2344 = vmul.f32 1.0, %v2343
    %v2345 = vrcp.pop %v2328
    %v2346 = vmul.f32 %v2328, %v2345
    %v2347 = vsub.f32 1.0, %v2346
    %v2348 = vmul.f32 %v2345, %v2347
    %v2349 = vadd.f32 %v2345, %v2348
    %vm2350 = vweird.f32 %v2328
    %vm2351 = vweird.f32 %v2345
    %vm2352 = vmor %vm2350, %vm2351
    %v2353 = vsel %vm2352, %v2345, %v2349
    %v2354 = vand.u32 2147483647, %v2328
    %vm2355 = vcmp.eq.f32.partialorder %v2354, 8.507059e+37
    %v2356 = vand.u32 %v2328, 2147483648
    %v2357 = vor.u32 1.1754944e-38, %v2356
    %v2358 = vsel %vm2355, %v2357, %v2353
    %v2359 = vmul.f32 1.0, %v2358
    %v2360 = vrcp.pop %v2329
    %v2361 = vmul.f32 %v2329, %v2360
    %v2362 = vsub.f32 1.0, %v2361
    %v2363 = vmul.f32 %v2360, %v2362
    %v2364 = vadd.f32 %v2360, %v2363
    %vm2365 = vweird.f32 %v2329
    %vm2366 = vweird.f32 %v2360
    %vm2367 = vmor %vm2365, %vm2366
    %v2368 = vsel %vm2367, %v2360, %v2364
    %v2369 = vand.u32 2147483647, %v2329
    %vm2370 = vcmp.eq.f32.partialorder %v2369, 8.507059e+37
    %v2371 = vand.u32 %v2329, 2147483648
    %v2372 = vor.u32 1.1754944e-38, %v2371
    %v2373 = vsel %vm2370, %v2372, %v2368
    %v2374 = vmul.f32 1.0, %v2373
    %v2375 = vtanh.pop %v2316
    %v2376 = vmul.f32 %v2359, %v2226
    %v2377 = vmul.f32 %v2344, %v2375
    %v2378 = vadd.f32 %v2376, %v2377
    %v2379 = vtanh.pop %v2378
    %v2380 = vmul.f32 %v2374, %v2379
    %s2381 = scalar_lea.vmem [#allocation16], 8
    %2382 = vst [vmem:[%s2381] sm:$0xff] %v2380
    %v2383 = vld [vmem:[%s798] sm:$0xff]
    %v2384 = vld [vmem:[%s798 + $0x8] sm:$0xff]
    %v2385 = vld [vmem:[%s798 + $0x10] sm:$0xff]
    %v2386 = vld [vmem:[%s798 + $0x18] sm:$0xff]
    %2387 = vmatpush.msra.mxu0 %v2070
    %2388 = vmatpush.msra.mxu0 %v2066
    %2389 = vmatpush.msra.mxu0 %v2062
    %2390 = vmatpush.msra.mxu0 %v2058
    %2391 = vmatpush.msra.mxu0 %v2054
    %2392 = vmatpush.msra.mxu0 %v2050
    %2393 = vmatpush.msra.mxu0 %v2046
    %2394 = vmatpush.msra.mxu0 %v2042
    %2395 = vmatpush.msra.mxu0 %v2038
    %2396 = vmatpush.msra.mxu0 %v2034
    %2397 = vmatpush.msra.mxu0 %v2030
    %2398 = vmatpush.msra.mxu0 %v2026
    %2399 = vmatpush.msra.mxu0 %v2022
    %2400 = vmatpush.msra.mxu0 %v2018
    %2401 = vmatpush.msra.mxu0 %v2014
    %2402 = vmatpush.msra.mxu0 %v2010
    %2403 = vmatmul.f32.gmra.mxu0 %v2380
    %v2404 = vpop.f32.mrf.mxu0
    %v2405 = vadd.f32 0.0, %v2404
    %2406 = vdwg.mxu0
    %2407 = vmatpush.msra.mxu0 %v2071
    %2408 = vmatpush.msra.mxu0 %v2067
    %2409 = vmatpush.msra.mxu0 %v2063
    %2410 = vmatpush.msra.mxu0 %v2059
    %2411 = vmatpush.msra.mxu0 %v2055
    %2412 = vmatpush.msra.mxu0 %v2051
    %2413 = vmatpush.msra.mxu0 %v2047
    %2414 = vmatpush.msra.mxu0 %v2043
    %2415 = vmatpush.msra.mxu0 %v2039
    %2416 = vmatpush.msra.mxu0 %v2035
    %2417 = vmatpush.msra.mxu0 %v2031
    %2418 = vmatpush.msra.mxu0 %v2027
    %2419 = vmatpush.msra.mxu0 %v2023
    %2420 = vmatpush.msra.mxu0 %v2019
    %2421 = vmatpush.msra.mxu0 %v2015
    %2422 = vmatpush.msra.mxu0 %v2011
    %2423 = vmatmul.f32.gmra.mxu0 %v2380
    %v2424 = vpop.f32.mrf.mxu0
    %v2425 = vadd.f32 0.0, %v2424
    %2426 = vdwg.mxu0
    %2427 = vmatpush.msra.mxu0 %v2072
    %2428 = vmatpush.msra.mxu0 %v2068
    %2429 = vmatpush.msra.mxu0 %v2064
    %2430 = vmatpush.msra.mxu0 %v2060
    %2431 = vmatpush.msra.mxu0 %v2056
    %2432 = vmatpush.msra.mxu0 %v2052
    %2433 = vmatpush.msra.mxu0 %v2048
    %2434 = vmatpush.msra.mxu0 %v2044
    %2435 = vmatpush.msra.mxu0 %v2040
    %2436 = vmatpush.msra.mxu0 %v2036
    %2437 = vmatpush.msra.mxu0 %v2032
    %2438 = vmatpush.msra.mxu0 %v2028
    %2439 = vmatpush.msra.mxu0 %v2024
    %2440 = vmatpush.msra.mxu0 %v2020
    %2441 = vmatpush.msra.mxu0 %v2016
    %2442 = vmatpush.msra.mxu0 %v2012
    %2443 = vmatmul.f32.gmra.mxu0 %v2380
    %v2444 = vpop.f32.mrf.mxu0
    %v2445 = vadd.f32 0.0, %v2444
    %2446 = vdwg.mxu0
    %2447 = vmatpush.msra.mxu0 %v2073
    %2448 = vmatpush.msra.mxu0 %v2069
    %2449 = vmatpush.msra.mxu0 %v2065
    %2450 = vmatpush.msra.mxu0 %v2061
    %2451 = vmatpush.msra.mxu0 %v2057
    %2452 = vmatpush.msra.mxu0 %v2053
    %2453 = vmatpush.msra.mxu0 %v2049
    %2454 = vmatpush.msra.mxu0 %v2045
    %2455 = vmatpush.msra.mxu0 %v2041
    %2456 = vmatpush.msra.mxu0 %v2037
    %2457 = vmatpush.msra.mxu0 %v2033
    %2458 = vmatpush.msra.mxu0 %v2029
    %2459 = vmatpush.msra.mxu0 %v2025
    %2460 = vmatpush.msra.mxu0 %v2021
    %2461 = vmatpush.msra.mxu0 %v2017
    %2462 = vmatpush.msra.mxu0 %v2013
    %2463 = vmatmul.f32.gmra.mxu0 %v2380
    %v2464 = vpop.f32.mrf.mxu0
    %v2465 = vadd.f32 0.0, %v2464
    %2466 = vdwg.mxu0
    %v2467 = vadd.f32 %v2383, %v2405
    %v2468 = vadd.f32 %v2384, %v2425
    %v2469 = vadd.f32 %v2385, %v2445
    %v2470 = vadd.f32 %v2386, %v2465
    %v2471 = vxor.u32 %v2467, 2147483648
    %v2472 = vxor.u32 %v2468, 2147483648
    %v2473 = vxor.u32 %v2470, 2147483648
    %v2474 = vmul.f32 %v2471, 1.442695
    %v2475 = vpow.pop %v2474
    %v2476 = vmul.f32 %v2472, 1.442695
    %v2477 = vpow.pop %v2476
    %v2478 = vmul.f32 %v2473, 1.442695
    %v2479 = vpow.pop %v2478
    %v2480 = vadd.f32 %v2475, 1.0
    %v2481 = vadd.f32 %v2477, 1.0
    %v2482 = vadd.f32 %v2479, 1.0
    %v2483 = vrcp.pop %v2480
    %v2484 = vmul.f32 %v2480, %v2483
    %v2485 = vsub.f32 1.0, %v2484
    %v2486 = vmul.f32 %v2483, %v2485
    %v2487 = vadd.f32 %v2483, %v2486
    %vm2488 = vweird.f32 %v2480
    %vm2489 = vweird.f32 %v2483
    %vm2490 = vmor %vm2488, %vm2489
    %v2491 = vsel %vm2490, %v2483, %v2487
    %v2492 = vand.u32 2147483647, %v2480
    %vm2493 = vcmp.eq.f32.partialorder %v2492, 8.507059e+37
    %v2494 = vand.u32 %v2480, 2147483648
    %v2495 = vor.u32 1.1754944e-38, %v2494
    %v2496 = vsel %vm2493, %v2495, %v2491
    %v2497 = vmul.f32 1.0, %v2496
    %v2498 = vrcp.pop %v2481
    %v2499 = vmul.f32 %v2481, %v2498
    %v2500 = vsub.f32 1.0, %v2499
    %v2501 = vmul.f32 %v2498, %v2500
    %v2502 = vadd.f32 %v2498, %v2501
    %vm2503 = vweird.f32 %v2481
    %vm2504 = vweird.f32 %v2498
    %vm2505 = vmor %vm2503, %vm2504
    %v2506 = vsel %vm2505, %v2498, %v2502
    %v2507 = vand.u32 2147483647, %v2481
    %vm2508 = vcmp.eq.f32.partialorder %v2507, 8.507059e+37
    %v2509 = vand.u32 %v2481, 2147483648
    %v2510 = vor.u32 1.1754944e-38, %v2509
    %v2511 = vsel %vm2508, %v2510, %v2506
    %v2512 = vmul.f32 1.0, %v2511
    %v2513 = vrcp.pop %v2482
    %v2514 = vmul.f32 %v2482, %v2513
    %v2515 = vsub.f32 1.0, %v2514
    %v2516 = vmul.f32 %v2513, %v2515
    %v2517 = vadd.f32 %v2513, %v2516
    %vm2518 = vweird.f32 %v2482
    %vm2519 = vweird.f32 %v2513
    %vm2520 = vmor %vm2518, %vm2519
    %v2521 = vsel %vm2520, %v2513, %v2517
    %v2522 = vand.u32 2147483647, %v2482
    %vm2523 = vcmp.eq.f32.partialorder %v2522, 8.507059e+37
    %v2524 = vand.u32 %v2482, 2147483648
    %v2525 = vor.u32 1.1754944e-38, %v2524
    %v2526 = vsel %vm2523, %v2525, %v2521
    %v2527 = vmul.f32 1.0, %v2526
    %v2528 = vtanh.pop %v2469
    %v2529 = vmul.f32 %v2512, %v2378
    %v2530 = vmul.f32 %v2497, %v2528
    %v2531 = vadd.f32 %v2529, %v2530
    %v2532 = vtanh.pop %v2531
    %v2533 = vmul.f32 %v2527, %v2532
    %s2534 = scalar_lea.vmem [#allocation16], 16
    %2535 = vst [vmem:[%s2534] sm:$0xff] %v2533
    %v2536 = vld [vmem:[%s954] sm:$0xff]
    %v2537 = vld [vmem:[%s954 + $0x8] sm:$0xff]
    %v2538 = vld [vmem:[%s954 + $0x10] sm:$0xff]
    %v2539 = vld [vmem:[%s954 + $0x18] sm:$0xff]
    %2540 = vmatpush.msra.mxu0 %v2070
    %2541 = vmatpush.msra.mxu0 %v2066
    %2542 = vmatpush.msra.mxu0 %v2062
    %2543 = vmatpush.msra.mxu0 %v2058
    %2544 = vmatpush.msra.mxu0 %v2054
    %2545 = vmatpush.msra.mxu0 %v2050
    %2546 = vmatpush.msra.mxu0 %v2046
    %2547 = vmatpush.msra.mxu0 %v2042
    %2548 = vmatpush.msra.mxu0 %v2038
    %2549 = vmatpush.msra.mxu0 %v2034
    %2550 = vmatpush.msra.mxu0 %v2030
    %2551 = vmatpush.msra.mxu0 %v2026
    %2552 = vmatpush.msra.mxu0 %v2022
    %2553 = vmatpush.msra.mxu0 %v2018
    %2554 = vmatpush.msra.mxu0 %v2014
    %2555 = vmatpush.msra.mxu0 %v2010
    %2556 = vmatmul.f32.gmra.mxu0 %v2533
    %v2557 = vpop.f32.mrf.mxu0
    %v2558 = vadd.f32 0.0, %v2557
    %2559 = vdwg.mxu0
    %2560 = vmatpush.msra.mxu0 %v2071
    %2561 = vmatpush.msra.mxu0 %v2067
    %2562 = vmatpush.msra.mxu0 %v2063
    %2563 = vmatpush.msra.mxu0 %v2059
    %2564 = vmatpush.msra.mxu0 %v2055
    %2565 = vmatpush.msra.mxu0 %v2051
    %2566 = vmatpush.msra.mxu0 %v2047
    %2567 = vmatpush.msra.mxu0 %v2043
    %2568 = vmatpush.msra.mxu0 %v2039
    %2569 = vmatpush.msra.mxu0 %v2035
    %2570 = vmatpush.msra.mxu0 %v2031
    %2571 = vmatpush.msra.mxu0 %v2027
    %2572 = vmatpush.msra.mxu0 %v2023
    %2573 = vmatpush.msra.mxu0 %v2019
    %2574 = vmatpush.msra.mxu0 %v2015
    %2575 = vmatpush.msra.mxu0 %v2011
    %2576 = vmatmul.f32.gmra.mxu0 %v2533
    %v2577 = vpop.f32.mrf.mxu0
    %v2578 = vadd.f32 0.0, %v2577
    %2579 = vdwg.mxu0
    %2580 = vmatpush.msra.mxu0 %v2072
    %2581 = vmatpush.msra.mxu0 %v2068
    %2582 = vmatpush.msra.mxu0 %v2064
    %2583 = vmatpush.msra.mxu0 %v2060
    %2584 = vmatpush.msra.mxu0 %v2056
    %2585 = vmatpush.msra.mxu0 %v2052
    %2586 = vmatpush.msra.mxu0 %v2048
    %2587 = vmatpush.msra.mxu0 %v2044
    %2588 = vmatpush.msra.mxu0 %v2040
    %2589 = vmatpush.msra.mxu0 %v2036
    %2590 = vmatpush.msra.mxu0 %v2032
    %2591 = vmatpush.msra.mxu0 %v2028
    %2592 = vmatpush.msra.mxu0 %v2024
    %2593 = vmatpush.msra.mxu0 %v2020
    %2594 = vmatpush.msra.mxu0 %v2016
    %2595 = vmatpush.msra.mxu0 %v2012
    %2596 = vmatmul.f32.gmra.mxu0 %v2533
    %v2597 = vpop.f32.mrf.mxu0
    %v2598 = vadd.f32 0.0, %v2597
    %2599 = vdwg.mxu0
    %2600 = vmatpush.msra.mxu0 %v2073
    %2601 = vmatpush.msra.mxu0 %v2069
    %2602 = vmatpush.msra.mxu0 %v2065
    %2603 = vmatpush.msra.mxu0 %v2061
    %2604 = vmatpush.msra.mxu0 %v2057
    %2605 = vmatpush.msra.mxu0 %v2053
    %2606 = vmatpush.msra.mxu0 %v2049
    %2607 = vmatpush.msra.mxu0 %v2045
    %2608 = vmatpush.msra.mxu0 %v2041
    %2609 = vmatpush.msra.mxu0 %v2037
    %2610 = vmatpush.msra.mxu0 %v2033
    %2611 = vmatpush.msra.mxu0 %v2029
    %2612 = vmatpush.msra.mxu0 %v2025
    %2613 = vmatpush.msra.mxu0 %v2021
    %2614 = vmatpush.msra.mxu0 %v2017
    %2615 = vmatpush.msra.mxu0 %v2013
    %2616 = vmatmul.f32.gmra.mxu0 %v2533
    %v2617 = vpop.f32.mrf.mxu0
    %v2618 = vadd.f32 0.0, %v2617
    %2619 = vdwg.mxu0
    %v2620 = vadd.f32 %v2536, %v2558
    %v2621 = vadd.f32 %v2537, %v2578
    %v2622 = vadd.f32 %v2538, %v2598
    %v2623 = vadd.f32 %v2539, %v2618
    %v2624 = vxor.u32 %v2620, 2147483648
    %v2625 = vxor.u32 %v2621, 2147483648
    %v2626 = vxor.u32 %v2623, 2147483648
    %v2627 = vmul.f32 %v2624, 1.442695
    %v2628 = vpow.pop %v2627
    %v2629 = vmul.f32 %v2625, 1.442695
    %v2630 = vpow.pop %v2629
    %v2631 = vmul.f32 %v2626, 1.442695
    %v2632 = vpow.pop %v2631
    %v2633 = vadd.f32 %v2628, 1.0
    %v2634 = vadd.f32 %v2630, 1.0
    %v2635 = vadd.f32 %v2632, 1.0
    %v2636 = vrcp.pop %v2633
    %v2637 = vmul.f32 %v2633, %v2636
    %v2638 = vsub.f32 1.0, %v2637
    %v2639 = vmul.f32 %v2636, %v2638
    %v2640 = vadd.f32 %v2636, %v2639
    %vm2641 = vweird.f32 %v2633
    %vm2642 = vweird.f32 %v2636
    %vm2643 = vmor %vm2641, %vm2642
    %v2644 = vsel %vm2643, %v2636, %v2640
    %v2645 = vand.u32 2147483647, %v2633
    %vm2646 = vcmp.eq.f32.partialorder %v2645, 8.507059e+37
    %v2647 = vand.u32 %v2633, 2147483648
    %v2648 = vor.u32 1.1754944e-38, %v2647
    %v2649 = vsel %vm2646, %v2648, %v2644
    %v2650 = vmul.f32 1.0, %v2649
    %v2651 = vrcp.pop %v2634
    %v2652 = vmul.f32 %v2634, %v2651
    %v2653 = vsub.f32 1.0, %v2652
    %v2654 = vmul.f32 %v2651, %v2653
    %v2655 = vadd.f32 %v2651, %v2654
    %vm2656 = vweird.f32 %v2634
    %vm2657 = vweird.f32 %v2651
    %vm2658 = vmor %vm2656, %vm2657
    %v2659 = vsel %vm2658, %v2651, %v2655
    %v2660 = vand.u32 2147483647, %v2634
    %vm2661 = vcmp.eq.f32.partialorder %v2660, 8.507059e+37
    %v2662 = vand.u32 %v2634, 2147483648
    %v2663 = vor.u32 1.1754944e-38, %v2662
    %v2664 = vsel %vm2661, %v2663, %v2659
    %v2665 = vmul.f32 1.0, %v2664
    %v2666 = vrcp.pop %v2635
    %v2667 = vmul.f32 %v2635, %v2666
    %v2668 = vsub.f32 1.0, %v2667
    %v2669 = vmul.f32 %v2666, %v2668
    %v2670 = vadd.f32 %v2666, %v2669
    %vm2671 = vweird.f32 %v2635
    %vm2672 = vweird.f32 %v2666
    %vm2673 = vmor %vm2671, %vm2672
    %v2674 = vsel %vm2673, %v2666, %v2670
    %v2675 = vand.u32 2147483647, %v2635
    %vm2676 = vcmp.eq.f32.partialorder %v2675, 8.507059e+37
    %v2677 = vand.u32 %v2635, 2147483648
    %v2678 = vor.u32 1.1754944e-38, %v2677
    %v2679 = vsel %vm2676, %v2678, %v2674
    %v2680 = vmul.f32 1.0, %v2679
    %v2681 = vtanh.pop %v2622
    %v2682 = vmul.f32 %v2665, %v2531
    %v2683 = vmul.f32 %v2650, %v2681
    %v2684 = vadd.f32 %v2682, %v2683
    %v2685 = vtanh.pop %v2684
    %v2686 = vmul.f32 %v2680, %v2685
    %s2687 = scalar_lea.vmem [#allocation16], 24
    %2688 = vst [vmem:[%s2687] sm:$0xff] %v2686
    %v2689 = vld [vmem:[%s1110] sm:$0xff]
    %v2690 = vld [vmem:[%s1110 + $0x8] sm:$0xff]
    %v2691 = vld [vmem:[%s1110 + $0x10] sm:$0xff]
    %v2692 = vld [vmem:[%s1110 + $0x18] sm:$0xff]
    %2693 = vmatpush.msra.mxu0 %v2070
    %2694 = vmatpush.msra.mxu0 %v2066
    %2695 = vmatpush.msra.mxu0 %v2062
    %2696 = vmatpush.msra.mxu0 %v2058
    %2697 = vmatpush.msra.mxu0 %v2054
    %2698 = vmatpush.msra.mxu0 %v2050
    %2699 = vmatpush.msra.mxu0 %v2046
    %2700 = vmatpush.msra.mxu0 %v2042
    %2701 = vmatpush.msra.mxu0 %v2038
    %2702 = vmatpush.msra.mxu0 %v2034
    %2703 = vmatpush.msra.mxu0 %v2030
    %2704 = vmatpush.msra.mxu0 %v2026
    %2705 = vmatpush.msra.mxu0 %v2022
    %2706 = vmatpush.msra.mxu0 %v2018
    %2707 = vmatpush.msra.mxu0 %v2014
    %2708 = vmatpush.msra.mxu0 %v2010
    %2709 = vmatmul.f32.gmra.mxu0 %v2686
    %v2710 = vpop.f32.mrf.mxu0
    %v2711 = vadd.f32 0.0, %v2710
    %2712 = vdwg.mxu0
    %2713 = vmatpush.msra.mxu0 %v2071
    %2714 = vmatpush.msra.mxu0 %v2067
    %2715 = vmatpush.msra.mxu0 %v2063
    %2716 = vmatpush.msra.mxu0 %v2059
    %2717 = vmatpush.msra.mxu0 %v2055
    %2718 = vmatpush.msra.mxu0 %v2051
    %2719 = vmatpush.msra.mxu0 %v2047
    %2720 = vmatpush.msra.mxu0 %v2043
    %2721 = vmatpush.msra.mxu0 %v2039
    %2722 = vmatpush.msra.mxu0 %v2035
    %2723 = vmatpush.msra.mxu0 %v2031
    %2724 = vmatpush.msra.mxu0 %v2027
    %2725 = vmatpush.msra.mxu0 %v2023
    %2726 = vmatpush.msra.mxu0 %v2019
    %2727 = vmatpush.msra.mxu0 %v2015
    %2728 = vmatpush.msra.mxu0 %v2011
    %2729 = vmatmul.f32.gmra.mxu0 %v2686
    %v2730 = vpop.f32.mrf.mxu0
    %v2731 = vadd.f32 0.0, %v2730
    %2732 = vdwg.mxu0
    %2733 = vmatpush.msra.mxu0 %v2072
    %2734 = vmatpush.msra.mxu0 %v2068
    %2735 = vmatpush.msra.mxu0 %v2064
    %2736 = vmatpush.msra.mxu0 %v2060
    %2737 = vmatpush.msra.mxu0 %v2056
    %2738 = vmatpush.msra.mxu0 %v2052
    %2739 = vmatpush.msra.mxu0 %v2048
    %2740 = vmatpush.msra.mxu0 %v2044
    %2741 = vmatpush.msra.mxu0 %v2040
    %2742 = vmatpush.msra.mxu0 %v2036
    %2743 = vmatpush.msra.mxu0 %v2032
    %2744 = vmatpush.msra.mxu0 %v2028
    %2745 = vmatpush.msra.mxu0 %v2024
    %2746 = vmatpush.msra.mxu0 %v2020
    %2747 = vmatpush.msra.mxu0 %v2016
    %2748 = vmatpush.msra.mxu0 %v2012
    %2749 = vmatmul.f32.gmra.mxu0 %v2686
    %v2750 = vpop.f32.mrf.mxu0
    %v2751 = vadd.f32 0.0, %v2750
    %2752 = vdwg.mxu0
    %2753 = vmatpush.msra.mxu0 %v2073
    %2754 = vmatpush.msra.mxu0 %v2069
    %2755 = vmatpush.msra.mxu0 %v2065
    %2756 = vmatpush.msra.mxu0 %v2061
    %2757 = vmatpush.msra.mxu0 %v2057
    %2758 = vmatpush.msra.mxu0 %v2053
    %2759 = vmatpush.msra.mxu0 %v2049
    %2760 = vmatpush.msra.mxu0 %v2045
    %2761 = vmatpush.msra.mxu0 %v2041
    %2762 = vmatpush.msra.mxu0 %v2037
    %2763 = vmatpush.msra.mxu0 %v2033
    %2764 = vmatpush.msra.mxu0 %v2029
    %2765 = vmatpush.msra.mxu0 %v2025
    %2766 = vmatpush.msra.mxu0 %v2021
    %2767 = vmatpush.msra.mxu0 %v2017
    %2768 = vmatpush.msra.mxu0 %v2013
    %2769 = vmatmul.f32.gmra.mxu0 %v2686
    %v2770 = vpop.f32.mrf.mxu0
    %v2771 = vadd.f32 0.0, %v2770
    %2772 = vdwg.mxu0
    %v2773 = vadd.f32 %v2689, %v2711
    %v2774 = vadd.f32 %v2690, %v2731
    %v2775 = vadd.f32 %v2691, %v2751
    %v2776 = vadd.f32 %v2692, %v2771
    %v2777 = vxor.u32 %v2773, 2147483648
    %v2778 = vxor.u32 %v2774, 2147483648
    %v2779 = vxor.u32 %v2776, 2147483648
    %v2780 = vmul.f32 %v2777, 1.442695
    %v2781 = vpow.pop %v2780
    %v2782 = vmul.f32 %v2778, 1.442695
    %v2783 = vpow.pop %v2782
    %v2784 = vmul.f32 %v2779, 1.442695
    %v2785 = vpow.pop %v2784
    %v2786 = vadd.f32 %v2781, 1.0
    %v2787 = vadd.f32 %v2783, 1.0
    %v2788 = vadd.f32 %v2785, 1.0
    %v2789 = vrcp.pop %v2786
    %v2790 = vmul.f32 %v2786, %v2789
    %v2791 = vsub.f32 1.0, %v2790
    %v2792 = vmul.f32 %v2789, %v2791
    %v2793 = vadd.f32 %v2789, %v2792
    %vm2794 = vweird.f32 %v2786
    %vm2795 = vweird.f32 %v2789
    %vm2796 = vmor %vm2794, %vm2795
    %v2797 = vsel %vm2796, %v2789, %v2793
    %v2798 = vand.u32 2147483647, %v2786
    %vm2799 = vcmp.eq.f32.partialorder %v2798, 8.507059e+37
    %v2800 = vand.u32 %v2786, 2147483648
    %v2801 = vor.u32 1.1754944e-38, %v2800
    %v2802 = vsel %vm2799, %v2801, %v2797
    %v2803 = vmul.f32 1.0, %v2802
    %v2804 = vrcp.pop %v2787
    %v2805 = vmul.f32 %v2787, %v2804
    %v2806 = vsub.f32 1.0, %v2805
    %v2807 = vmul.f32 %v2804, %v2806
    %v2808 = vadd.f32 %v2804, %v2807
    %vm2809 = vweird.f32 %v2787
    %vm2810 = vweird.f32 %v2804
    %vm2811 = vmor %vm2809, %vm2810
    %v2812 = vsel %vm2811, %v2804, %v2808
    %v2813 = vand.u32 2147483647, %v2787
    %vm2814 = vcmp.eq.f32.partialorder %v2813, 8.507059e+37
    %v2815 = vand.u32 %v2787, 2147483648
    %v2816 = vor.u32 1.1754944e-38, %v2815
    %v2817 = vsel %vm2814, %v2816, %v2812
    %v2818 = vmul.f32 1.0, %v2817
    %v2819 = vrcp.pop %v2788
    %v2820 = vmul.f32 %v2788, %v2819
    %v2821 = vsub.f32 1.0, %v2820
    %v2822 = vmul.f32 %v2819, %v2821
    %v2823 = vadd.f32 %v2819, %v2822
    %vm2824 = vweird.f32 %v2788
    %vm2825 = vweird.f32 %v2819
    %vm2826 = vmor %vm2824, %vm2825
    %v2827 = vsel %vm2826, %v2819, %v2823
    %v2828 = vand.u32 2147483647, %v2788
    %vm2829 = vcmp.eq.f32.partialorder %v2828, 8.507059e+37
    %v2830 = vand.u32 %v2788, 2147483648
    %v2831 = vor.u32 1.1754944e-38, %v2830
    %v2832 = vsel %vm2829, %v2831, %v2827
    %v2833 = vmul.f32 1.0, %v2832
    %v2834 = vtanh.pop %v2775
    %v2835 = vmul.f32 %v2818, %v2684
    %v2836 = vmul.f32 %v2803, %v2834
    %v2837 = vadd.f32 %v2835, %v2836
    %v2838 = vtanh.pop %v2837
    %v2839 = vmul.f32 %v2833, %v2838
    %s2840 = scalar_lea.vmem [#allocation16], 32
    %2841 = vst [vmem:[%s2840] sm:$0xff] %v2839
    %v2842 = vld [vmem:[%s1266] sm:$0xff]
    %v2843 = vld [vmem:[%s1266 + $0x8] sm:$0xff]
    %v2844 = vld [vmem:[%s1266 + $0x10] sm:$0xff]
    %v2845 = vld [vmem:[%s1266 + $0x18] sm:$0xff]
    %2846 = vmatpush.msra.mxu0 %v2070
    %2847 = vmatpush.msra.mxu0 %v2066
    %2848 = vmatpush.msra.mxu0 %v2062
    %2849 = vmatpush.msra.mxu0 %v2058
    %2850 = vmatpush.msra.mxu0 %v2054
    %2851 = vmatpush.msra.mxu0 %v2050
    %2852 = vmatpush.msra.mxu0 %v2046
    %2853 = vmatpush.msra.mxu0 %v2042
    %2854 = vmatpush.msra.mxu0 %v2038
    %2855 = vmatpush.msra.mxu0 %v2034
    %2856 = vmatpush.msra.mxu0 %v2030
    %2857 = vmatpush.msra.mxu0 %v2026
    %2858 = vmatpush.msra.mxu0 %v2022
    %2859 = vmatpush.msra.mxu0 %v2018
    %2860 = vmatpush.msra.mxu0 %v2014
    %2861 = vmatpush.msra.mxu0 %v2010
    %2862 = vmatmul.f32.gmra.mxu0 %v2839
    %v2863 = vpop.f32.mrf.mxu0
    %v2864 = vadd.f32 0.0, %v2863
    %2865 = vdwg.mxu0
    %2866 = vmatpush.msra.mxu0 %v2071
    %2867 = vmatpush.msra.mxu0 %v2067
    %2868 = vmatpush.msra.mxu0 %v2063
    %2869 = vmatpush.msra.mxu0 %v2059
    %2870 = vmatpush.msra.mxu0 %v2055
    %2871 = vmatpush.msra.mxu0 %v2051
    %2872 = vmatpush.msra.mxu0 %v2047
    %2873 = vmatpush.msra.mxu0 %v2043
    %2874 = vmatpush.msra.mxu0 %v2039
    %2875 = vmatpush.msra.mxu0 %v2035
    %2876 = vmatpush.msra.mxu0 %v2031
    %2877 = vmatpush.msra.mxu0 %v2027
    %2878 = vmatpush.msra.mxu0 %v2023
    %2879 = vmatpush.msra.mxu0 %v2019
    %2880 = vmatpush.msra.mxu0 %v2015
    %2881 = vmatpush.msra.mxu0 %v2011
    %2882 = vmatmul.f32.gmra.mxu0 %v2839
    %v2883 = vpop.f32.mrf.mxu0
    %v2884 = vadd.f32 0.0, %v2883
    %2885 = vdwg.mxu0
    %2886 = vmatpush.msra.mxu0 %v2072
    %2887 = vmatpush.msra.mxu0 %v2068
    %2888 = vmatpush.msra.mxu0 %v2064
    %2889 = vmatpush.msra.mxu0 %v2060
    %2890 = vmatpush.msra.mxu0 %v2056
    %2891 = vmatpush.msra.mxu0 %v2052
    %2892 = vmatpush.msra.mxu0 %v2048
    %2893 = vmatpush.msra.mxu0 %v2044
    %2894 = vmatpush.msra.mxu0 %v2040
    %2895 = vmatpush.msra.mxu0 %v2036
    %2896 = vmatpush.msra.mxu0 %v2032
    %2897 = vmatpush.msra.mxu0 %v2028
    %2898 = vmatpush.msra.mxu0 %v2024
    %2899 = vmatpush.msra.mxu0 %v2020
    %2900 = vmatpush.msra.mxu0 %v2016
    %2901 = vmatpush.msra.mxu0 %v2012
    %2902 = vmatmul.f32.gmra.mxu0 %v2839
    %v2903 = vpop.f32.mrf.mxu0
    %v2904 = vadd.f32 0.0, %v2903
    %2905 = vdwg.mxu0
    %2906 = vmatpush.msra.mxu0 %v2073
    %2907 = vmatpush.msra.mxu0 %v2069
    %2908 = vmatpush.msra.mxu0 %v2065
    %2909 = vmatpush.msra.mxu0 %v2061
    %2910 = vmatpush.msra.mxu0 %v2057
    %2911 = vmatpush.msra.mxu0 %v2053
    %2912 = vmatpush.msra.mxu0 %v2049
    %2913 = vmatpush.msra.mxu0 %v2045
    %2914 = vmatpush.msra.mxu0 %v2041
    %2915 = vmatpush.msra.mxu0 %v2037
    %2916 = vmatpush.msra.mxu0 %v2033
    %2917 = vmatpush.msra.mxu0 %v2029
    %2918 = vmatpush.msra.mxu0 %v2025
    %2919 = vmatpush.msra.mxu0 %v2021
    %2920 = vmatpush.msra.mxu0 %v2017
    %2921 = vmatpush.msra.mxu0 %v2013
    %2922 = vmatmul.f32.gmra.mxu0 %v2839
    %v2923 = vpop.f32.mrf.mxu0
    %v2924 = vadd.f32 0.0, %v2923
    %2925 = vdwg.mxu0
    %v2926 = vadd.f32 %v2842, %v2864
    %v2927 = vadd.f32 %v2843, %v2884
    %v2928 = vadd.f32 %v2844, %v2904
    %v2929 = vadd.f32 %v2845, %v2924
    %v2930 = vxor.u32 %v2926, 2147483648
    %v2931 = vxor.u32 %v2927, 2147483648
    %v2932 = vxor.u32 %v2929, 2147483648
    %v2933 = vmul.f32 %v2930, 1.442695
    %v2934 = vpow.pop %v2933
    %v2935 = vmul.f32 %v2931, 1.442695
    %v2936 = vpow.pop %v2935
    %v2937 = vmul.f32 %v2932, 1.442695
    %v2938 = vpow.pop %v2937
    %v2939 = vadd.f32 %v2934, 1.0
    %v2940 = vadd.f32 %v2936, 1.0
    %v2941 = vadd.f32 %v2938, 1.0
    %v2942 = vrcp.pop %v2939
    %v2943 = vmul.f32 %v2939, %v2942
    %v2944 = vsub.f32 1.0, %v2943
    %v2945 = vmul.f32 %v2942, %v2944
    %v2946 = vadd.f32 %v2942, %v2945
    %vm2947 = vweird.f32 %v2939
    %vm2948 = vweird.f32 %v2942
    %vm2949 = vmor %vm2947, %vm2948
    %v2950 = vsel %vm2949, %v2942, %v2946
    %v2951 = vand.u32 2147483647, %v2939
    %vm2952 = vcmp.eq.f32.partialorder %v2951, 8.507059e+37
    %v2953 = vand.u32 %v2939, 2147483648
    %v2954 = vor.u32 1.1754944e-38, %v2953
    %v2955 = vsel %vm2952, %v2954, %v2950
    %v2956 = vmul.f32 1.0, %v2955
    %v2957 = vrcp.pop %v2940
    %v2958 = vmul.f32 %v2940, %v2957
    %v2959 = vsub.f32 1.0, %v2958
    %v2960 = vmul.f32 %v2957, %v2959
    %v2961 = vadd.f32 %v2957, %v2960
    %vm2962 = vweird.f32 %v2940
    %vm2963 = vweird.f32 %v2957
    %vm2964 = vmor %vm2962, %vm2963
    %v2965 = vsel %vm2964, %v2957, %v2961
    %v2966 = vand.u32 2147483647, %v2940
    %vm2967 = vcmp.eq.f32.partialorder %v2966, 8.507059e+37
    %v2968 = vand.u32 %v2940, 2147483648
    %v2969 = vor.u32 1.1754944e-38, %v2968
    %v2970 = vsel %vm2967, %v2969, %v2965
    %v2971 = vmul.f32 1.0, %v2970
    %v2972 = vrcp.pop %v2941
    %v2973 = vmul.f32 %v2941, %v2972
    %v2974 = vsub.f32 1.0, %v2973
    %v2975 = vmul.f32 %v2972, %v2974
    %v2976 = vadd.f32 %v2972, %v2975
    %vm2977 = vweird.f32 %v2941
    %vm2978 = vweird.f32 %v2972
    %vm2979 = vmor %vm2977, %vm2978
    %v2980 = vsel %vm2979, %v2972, %v2976
    %v2981 = vand.u32 2147483647, %v2941
    %vm2982 = vcmp.eq.f32.partialorder %v2981, 8.507059e+37
    %v2983 = vand.u32 %v2941, 2147483648
    %v2984 = vor.u32 1.1754944e-38, %v2983
    %v2985 = vsel %vm2982, %v2984, %v2980
    %v2986 = vmul.f32 1.0, %v2985
    %v2987 = vtanh.pop %v2928
    %v2988 = vmul.f32 %v2971, %v2837
    %v2989 = vmul.f32 %v2956, %v2987
    %v2990 = vadd.f32 %v2988, %v2989
    %v2991 = vtanh.pop %v2990
    %v2992 = vmul.f32 %v2986, %v2991
    %s2993 = scalar_lea.vmem [#allocation16], 40
    %2994 = vst [vmem:[%s2993] sm:$0xff] %v2992
    %v2995 = vld [vmem:[%s1422] sm:$0xff]
    %v2996 = vld [vmem:[%s1422 + $0x8] sm:$0xff]
    %v2997 = vld [vmem:[%s1422 + $0x10] sm:$0xff]
    %v2998 = vld [vmem:[%s1422 + $0x18] sm:$0xff]
    %2999 = vmatpush.msra.mxu0 %v2070
    %3000 = vmatpush.msra.mxu0 %v2066
    %3001 = vmatpush.msra.mxu0 %v2062
    %3002 = vmatpush.msra.mxu0 %v2058
    %3003 = vmatpush.msra.mxu0 %v2054
    %3004 = vmatpush.msra.mxu0 %v2050
    %3005 = vmatpush.msra.mxu0 %v2046
    %3006 = vmatpush.msra.mxu0 %v2042
    %3007 = vmatpush.msra.mxu0 %v2038
    %3008 = vmatpush.msra.mxu0 %v2034
    %3009 = vmatpush.msra.mxu0 %v2030
    %3010 = vmatpush.msra.mxu0 %v2026
    %3011 = vmatpush.msra.mxu0 %v2022
    %3012 = vmatpush.msra.mxu0 %v2018
    %3013 = vmatpush.msra.mxu0 %v2014
    %3014 = vmatpush.msra.mxu0 %v2010
    %3015 = vmatmul.f32.gmra.mxu0 %v2992
    %v3016 = vpop.f32.mrf.mxu0
    %v3017 = vadd.f32 0.0, %v3016
    %3018 = vdwg.mxu0
    %3019 = vmatpush.msra.mxu0 %v2071
    %3020 = vmatpush.msra.mxu0 %v2067
    %3021 = vmatpush.msra.mxu0 %v2063
    %3022 = vmatpush.msra.mxu0 %v2059
    %3023 = vmatpush.msra.mxu0 %v2055
    %3024 = vmatpush.msra.mxu0 %v2051
    %3025 = vmatpush.msra.mxu0 %v2047
    %3026 = vmatpush.msra.mxu0 %v2043
    %3027 = vmatpush.msra.mxu0 %v2039
    %3028 = vmatpush.msra.mxu0 %v2035
    %3029 = vmatpush.msra.mxu0 %v2031
    %3030 = vmatpush.msra.mxu0 %v2027
    %3031 = vmatpush.msra.mxu0 %v2023
    %3032 = vmatpush.msra.mxu0 %v2019
    %3033 = vmatpush.msra.mxu0 %v2015
    %3034 = vmatpush.msra.mxu0 %v2011
    %3035 = vmatmul.f32.gmra.mxu0 %v2992
    %v3036 = vpop.f32.mrf.mxu0
    %v3037 = vadd.f32 0.0, %v3036
    %3038 = vdwg.mxu0
    %3039 = vmatpush.msra.mxu0 %v2072
    %3040 = vmatpush.msra.mxu0 %v2068
    %3041 = vmatpush.msra.mxu0 %v2064
    %3042 = vmatpush.msra.mxu0 %v2060
    %3043 = vmatpush.msra.mxu0 %v2056
    %3044 = vmatpush.msra.mxu0 %v2052
    %3045 = vmatpush.msra.mxu0 %v2048
    %3046 = vmatpush.msra.mxu0 %v2044
    %3047 = vmatpush.msra.mxu0 %v2040
    %3048 = vmatpush.msra.mxu0 %v2036
    %3049 = vmatpush.msra.mxu0 %v2032
    %3050 = vmatpush.msra.mxu0 %v2028
    %3051 = vmatpush.msra.mxu0 %v2024
    %3052 = vmatpush.msra.mxu0 %v2020
    %3053 = vmatpush.msra.mxu0 %v2016
    %3054 = vmatpush.msra.mxu0 %v2012
    %3055 = vmatmul.f32.gmra.mxu0 %v2992
    %v3056 = vpop.f32.mrf.mxu0
    %v3057 = vadd.f32 0.0, %v3056
    %3058 = vdwg.mxu0
    %3059 = vmatpush.msra.mxu0 %v2073
    %3060 = vmatpush.msra.mxu0 %v2069
    %3061 = vmatpush.msra.mxu0 %v2065
    %3062 = vmatpush.msra.mxu0 %v2061
    %3063 = vmatpush.msra.mxu0 %v2057
    %3064 = vmatpush.msra.mxu0 %v2053
    %3065 = vmatpush.msra.mxu0 %v2049
    %3066 = vmatpush.msra.mxu0 %v2045
    %3067 = vmatpush.msra.mxu0 %v2041
    %3068 = vmatpush.msra.mxu0 %v2037
    %3069 = vmatpush.msra.mxu0 %v2033
    %3070 = vmatpush.msra.mxu0 %v2029
    %3071 = vmatpush.msra.mxu0 %v2025
    %3072 = vmatpush.msra.mxu0 %v2021
    %3073 = vmatpush.msra.mxu0 %v2017
    %3074 = vmatpush.msra.mxu0 %v2013
    %3075 = vmatmul.f32.gmra.mxu0 %v2992
    %v3076 = vpop.f32.mrf.mxu0
    %v3077 = vadd.f32 0.0, %v3076
    %3078 = vdwg.mxu0
    %v3079 = vadd.f32 %v2995, %v3017
    %v3080 = vadd.f32 %v2996, %v3037
    %v3081 = vadd.f32 %v2997, %v3057
    %v3082 = vadd.f32 %v2998, %v3077
    %v3083 = vxor.u32 %v3079, 2147483648
    %v3084 = vxor.u32 %v3080, 2147483648
    %v3085 = vxor.u32 %v3082, 2147483648
    %v3086 = vmul.f32 %v3083, 1.442695
    %v3087 = vpow.pop %v3086
    %v3088 = vmul.f32 %v3084, 1.442695
    %v3089 = vpow.pop %v3088
    %v3090 = vmul.f32 %v3085, 1.442695
    %v3091 = vpow.pop %v3090
    %v3092 = vadd.f32 %v3087, 1.0
    %v3093 = vadd.f32 %v3089, 1.0
    %v3094 = vadd.f32 %v3091, 1.0
    %v3095 = vrcp.pop %v3092
    %v3096 = vmul.f32 %v3092, %v3095
    %v3097 = vsub.f32 1.0, %v3096
    %v3098 = vmul.f32 %v3095, %v3097
    %v3099 = vadd.f32 %v3095, %v3098
    %vm3100 = vweird.f32 %v3092
    %vm3101 = vweird.f32 %v3095
    %vm3102 = vmor %vm3100, %vm3101
    %v3103 = vsel %vm3102, %v3095, %v3099
    %v3104 = vand.u32 2147483647, %v3092
    %vm3105 = vcmp.eq.f32.partialorder %v3104, 8.507059e+37
    %v3106 = vand.u32 %v3092, 2147483648
    %v3107 = vor.u32 1.1754944e-38, %v3106
    %v3108 = vsel %vm3105, %v3107, %v3103
    %v3109 = vmul.f32 1.0, %v3108
    %v3110 = vrcp.pop %v3093
    %v3111 = vmul.f32 %v3093, %v3110
    %v3112 = vsub.f32 1.0, %v3111
    %v3113 = vmul.f32 %v3110, %v3112
    %v3114 = vadd.f32 %v3110, %v3113
    %vm3115 = vweird.f32 %v3093
    %vm3116 = vweird.f32 %v3110
    %vm3117 = vmor %vm3115, %vm3116
    %v3118 = vsel %vm3117, %v3110, %v3114
    %v3119 = vand.u32 2147483647, %v3093
    %vm3120 = vcmp.eq.f32.partialorder %v3119, 8.507059e+37
    %v3121 = vand.u32 %v3093, 2147483648
    %v3122 = vor.u32 1.1754944e-38, %v3121
    %v3123 = vsel %vm3120, %v3122, %v3118
    %v3124 = vmul.f32 1.0, %v3123
    %v3125 = vrcp.pop %v3094
    %v3126 = vmul.f32 %v3094, %v3125
    %v3127 = vsub.f32 1.0, %v3126
    %v3128 = vmul.f32 %v3125, %v3127
    %v3129 = vadd.f32 %v3125, %v3128
    %vm3130 = vweird.f32 %v3094
    %vm3131 = vweird.f32 %v3125
    %vm3132 = vmor %vm3130, %vm3131
    %v3133 = vsel %vm3132, %v3125, %v3129
    %v3134 = vand.u32 2147483647, %v3094
    %vm3135 = vcmp.eq.f32.partialorder %v3134, 8.507059e+37
    %v3136 = vand.u32 %v3094, 2147483648
    %v3137 = vor.u32 1.1754944e-38, %v3136
    %v3138 = vsel %vm3135, %v3137, %v3133
    %v3139 = vmul.f32 1.0, %v3138
    %v3140 = vtanh.pop %v3081
    %v3141 = vmul.f32 %v3124, %v2990
    %v3142 = vmul.f32 %v3109, %v3140
    %v3143 = vadd.f32 %v3141, %v3142
    %v3144 = vtanh.pop %v3143
    %v3145 = vmul.f32 %v3139, %v3144
    %s3146 = scalar_lea.vmem [#allocation16], 48
    %3147 = vst [vmem:[%s3146] sm:$0xff] %v3145
    %v3148 = vld [vmem:[%s1578] sm:$0xff]
    %v3149 = vld [vmem:[%s1578 + $0x8] sm:$0xff]
    %v3150 = vld [vmem:[%s1578 + $0x10] sm:$0xff]
    %v3151 = vld [vmem:[%s1578 + $0x18] sm:$0xff]
    %3152 = vmatpush.msra.mxu0 %v2070
    %3153 = vmatpush.msra.mxu0 %v2066
    %3154 = vmatpush.msra.mxu0 %v2062
    %3155 = vmatpush.msra.mxu0 %v2058
    %3156 = vmatpush.msra.mxu0 %v2054
    %3157 = vmatpush.msra.mxu0 %v2050
    %3158 = vmatpush.msra.mxu0 %v2046
    %3159 = vmatpush.msra.mxu0 %v2042
    %3160 = vmatpush.msra.mxu0 %v2038
    %3161 = vmatpush.msra.mxu0 %v2034
    %3162 = vmatpush.msra.mxu0 %v2030
    %3163 = vmatpush.msra.mxu0 %v2026
    %3164 = vmatpush.msra.mxu0 %v2022
    %3165 = vmatpush.msra.mxu0 %v2018
    %3166 = vmatpush.msra.mxu0 %v2014
    %3167 = vmatpush.msra.mxu0 %v2010
    %3168 = vmatmul.f32.gmra.mxu0 %v3145
    %v3169 = vpop.f32.mrf.mxu0
    %v3170 = vadd.f32 0.0, %v3169
    %3171 = vdwg.mxu0
    %3172 = vmatpush.msra.mxu0 %v2071
    %3173 = vmatpush.msra.mxu0 %v2067
    %3174 = vmatpush.msra.mxu0 %v2063
    %3175 = vmatpush.msra.mxu0 %v2059
    %3176 = vmatpush.msra.mxu0 %v2055
    %3177 = vmatpush.msra.mxu0 %v2051
    %3178 = vmatpush.msra.mxu0 %v2047
    %3179 = vmatpush.msra.mxu0 %v2043
    %3180 = vmatpush.msra.mxu0 %v2039
    %3181 = vmatpush.msra.mxu0 %v2035
    %3182 = vmatpush.msra.mxu0 %v2031
    %3183 = vmatpush.msra.mxu0 %v2027
    %3184 = vmatpush.msra.mxu0 %v2023
    %3185 = vmatpush.msra.mxu0 %v2019
    %3186 = vmatpush.msra.mxu0 %v2015
    %3187 = vmatpush.msra.mxu0 %v2011
    %3188 = vmatmul.f32.gmra.mxu0 %v3145
    %v3189 = vpop.f32.mrf.mxu0
    %v3190 = vadd.f32 0.0, %v3189
    %3191 = vdwg.mxu0
    %3192 = vmatpush.msra.mxu0 %v2072
    %3193 = vmatpush.msra.mxu0 %v2068
    %3194 = vmatpush.msra.mxu0 %v2064
    %3195 = vmatpush.msra.mxu0 %v2060
    %3196 = vmatpush.msra.mxu0 %v2056
    %3197 = vmatpush.msra.mxu0 %v2052
    %3198 = vmatpush.msra.mxu0 %v2048
    %3199 = vmatpush.msra.mxu0 %v2044
    %3200 = vmatpush.msra.mxu0 %v2040
    %3201 = vmatpush.msra.mxu0 %v2036
    %3202 = vmatpush.msra.mxu0 %v2032
    %3203 = vmatpush.msra.mxu0 %v2028
    %3204 = vmatpush.msra.mxu0 %v2024
    %3205 = vmatpush.msra.mxu0 %v2020
    %3206 = vmatpush.msra.mxu0 %v2016
    %3207 = vmatpush.msra.mxu0 %v2012
    %3208 = vmatmul.f32.gmra.mxu0 %v3145
    %v3209 = vpop.f32.mrf.mxu0
    %v3210 = vadd.f32 0.0, %v3209
    %3211 = vdwg.mxu0
    %3212 = vmatpush.msra.mxu0 %v2073
    %3213 = vmatpush.msra.mxu0 %v2069
    %3214 = vmatpush.msra.mxu0 %v2065
    %3215 = vmatpush.msra.mxu0 %v2061
    %3216 = vmatpush.msra.mxu0 %v2057
    %3217 = vmatpush.msra.mxu0 %v2053
    %3218 = vmatpush.msra.mxu0 %v2049
    %3219 = vmatpush.msra.mxu0 %v2045
    %3220 = vmatpush.msra.mxu0 %v2041
    %3221 = vmatpush.msra.mxu0 %v2037
    %3222 = vmatpush.msra.mxu0 %v2033
    %3223 = vmatpush.msra.mxu0 %v2029
    %3224 = vmatpush.msra.mxu0 %v2025
    %3225 = vmatpush.msra.mxu0 %v2021
    %3226 = vmatpush.msra.mxu0 %v2017
    %3227 = vmatpush.msra.mxu0 %v2013
    %3228 = vmatmul.f32.gmra.mxu0 %v3145
    %v3229 = vpop.f32.mrf.mxu0
    %v3230 = vadd.f32 0.0, %v3229
    %3231 = vdwg.mxu0
    %v3232 = vadd.f32 %v3148, %v3170
    %v3233 = vadd.f32 %v3149, %v3190
    %v3234 = vadd.f32 %v3150, %v3210
    %v3235 = vadd.f32 %v3151, %v3230
    %v3236 = vxor.u32 %v3232, 2147483648
    %v3237 = vxor.u32 %v3233, 2147483648
    %v3238 = vxor.u32 %v3235, 2147483648
    %v3239 = vmul.f32 %v3236, 1.442695
    %v3240 = vpow.pop %v3239
    %v3241 = vmul.f32 %v3237, 1.442695
    %v3242 = vpow.pop %v3241
    %v3243 = vmul.f32 %v3238, 1.442695
    %v3244 = vpow.pop %v3243
    %v3245 = vadd.f32 %v3240, 1.0
    %v3246 = vadd.f32 %v3242, 1.0
    %v3247 = vadd.f32 %v3244, 1.0
    %v3248 = vrcp.pop %v3245
    %v3249 = vmul.f32 %v3245, %v3248
    %v3250 = vsub.f32 1.0, %v3249
    %v3251 = vmul.f32 %v3248, %v3250
    %v3252 = vadd.f32 %v3248, %v3251
    %vm3253 = vweird.f32 %v3245
    %vm3254 = vweird.f32 %v3248
    %vm3255 = vmor %vm3253, %vm3254
    %v3256 = vsel %vm3255, %v3248, %v3252
    %v3257 = vand.u32 2147483647, %v3245
    %vm3258 = vcmp.eq.f32.partialorder %v3257, 8.507059e+37
    %v3259 = vand.u32 %v3245, 2147483648
    %v3260 = vor.u32 1.1754944e-38, %v3259
    %v3261 = vsel %vm3258, %v3260, %v3256
    %v3262 = vmul.f32 1.0, %v3261
    %v3263 = vrcp.pop %v3246
    %v3264 = vmul.f32 %v3246, %v3263
    %v3265 = vsub.f32 1.0, %v3264
    %v3266 = vmul.f32 %v3263, %v3265
    %v3267 = vadd.f32 %v3263, %v3266
    %vm3268 = vweird.f32 %v3246
    %vm3269 = vweird.f32 %v3263
    %vm3270 = vmor %vm3268, %vm3269
    %v3271 = vsel %vm3270, %v3263, %v3267
    %v3272 = vand.u32 2147483647, %v3246
    %vm3273 = vcmp.eq.f32.partialorder %v3272, 8.507059e+37
    %v3274 = vand.u32 %v3246, 2147483648
    %v3275 = vor.u32 1.1754944e-38, %v3274
    %v3276 = vsel %vm3273, %v3275, %v3271
    %v3277 = vmul.f32 1.0, %v3276
    %v3278 = vrcp.pop %v3247
    %v3279 = vmul.f32 %v3247, %v3278
    %v3280 = vsub.f32 1.0, %v3279
    %v3281 = vmul.f32 %v3278, %v3280
    %v3282 = vadd.f32 %v3278, %v3281
    %vm3283 = vweird.f32 %v3247
    %vm3284 = vweird.f32 %v3278
    %vm3285 = vmor %vm3283, %vm3284
    %v3286 = vsel %vm3285, %v3278, %v3282
    %v3287 = vand.u32 2147483647, %v3247
    %vm3288 = vcmp.eq.f32.partialorder %v3287, 8.507059e+37
    %v3289 = vand.u32 %v3247, 2147483648
    %v3290 = vor.u32 1.1754944e-38, %v3289
    %v3291 = vsel %vm3288, %v3290, %v3286
    %v3292 = vmul.f32 1.0, %v3291
    %v3293 = vtanh.pop %v3234
    %v3294 = vmul.f32 %v3277, %v3143
    %v3295 = vmul.f32 %v3262, %v3293
    %v3296 = vadd.f32 %v3294, %v3295
    %v3297 = vtanh.pop %v3296
    %v3298 = vmul.f32 %v3292, %v3297
    %s3299 = scalar_lea.vmem [#allocation16], 56
    %3300 = vst [vmem:[%s3299] sm:$0xff] %v3298
    %3301 = vst [vmem:[#allocation17] sm:$0xff] %v1729
    %3302 = vst [vmem:[#allocation17 + $0x8] sm:$0xff] %v3298
    %3303 = vst [vmem:[#allocation17 + $0x10] sm:$0xff] %v1727
    %3304 = vst [vmem:[#allocation17 + $0x18] sm:$0xff] %v3296
    // Predicated region
    $region62: #{tpu_custom_call.1} parent=1 // pred_check
      _
    $region63: #{tpu_custom_call.1} parent=1 // pred_check_branch
      %3306 = sbr.rel (0) target = $region65
    $region64: #{tpu_custom_call.1} parent=1 // pred_region
      %3308 = vsyncadd [#allocation6], 0
      %s3309 = sshll.u32 [#allocation16], 4
      %s3310 = int_to_ptr.vmem [resolvable:$true] %s3309
      %s3311 = sshll.u32 %s8, 4
      %s3312 = int_to_ptr.hbm [resolvable:$true] %s3311
      %3317 = dma.vmem_to_hbm [thread:$0]  %s3310, 1024, %s3312, [#allocation6], 128, 128, 8
    $region65: #{tpu_custom_call.1} parent=1 // pred_fallthru
      _
    // Predicated region
    $region66: #{tpu_custom_call.1} parent=1 // pred_check
      _
    $region67: #{tpu_custom_call.1} parent=1 // pred_check_branch
      %3319 = sbr.rel (0) target = $region69
    $region68: #{tpu_custom_call.1} parent=1 // pred_region
      %3321 = vsyncadd [#allocation18], 0
      %s3322 = sshll.u32 [#allocation17], 4
      %s3323 = int_to_ptr.vmem [resolvable:$true] %s3322
      %s3324 = sshll.u32 %s9, 4
      %s3325 = int_to_ptr.hbm [resolvable:$true] %s3324
      %3330 = dma.vmem_to_hbm [thread:$0]  %s3323, 512, %s3325, [#allocation18], 128, 128, 8
    $region69: #{tpu_custom_call.1} parent=1 // pred_fallthru
      _
    // Predicated region
    $region70: #{tpu_custom_call.1} parent=1 // pred_check
      _
    $region71: #{tpu_custom_call.1} parent=1 // pred_check_branch
      %3332 = sbr.rel (0) target = $region73
    $region72: #{tpu_custom_call.1} parent=1 // pred_region
      %3334 = dma.done [#allocation6], 1024
    $region73: #{tpu_custom_call.1} parent=1 // pred_fallthru
      _
    // Predicated region
    $region74: #{tpu_custom_call.1} parent=1 // pred_check
      _
    $region75: #{tpu_custom_call.1} parent=1 // pred_check_branch
      %3336 = sbr.rel (0) target = $region77
    $region76: #{tpu_custom_call.1} parent=1 // pred_region
      %3338 = dma.done [#allocation18], 512
    $region77: #{tpu_custom_call.1} parent=1 // pred_fallthru
      _
    %3339 = vsyncpa [#allocation5], 1
    %3340 = vsyncpa [#allocation8], 1
    %3341 = vsyncpa [#allocation11], 1
    %3342 = vsyncpa [#allocation14], 1
    %3343 = vsyncpa [#allocation6], 1
    %3344 = vsyncpa [#allocation18], 1

</llo_original>
